<compile_context>
chip_gen: v5e
topology: v5e:2x2
jax: 0.10.0
libtpu: 0.0.40
codegen_flags: <defaults>
</compile_context>

<pallas_src>
import functools
import math

import jax
import jax.numpy as jnp
from jax.experimental import pallas as pl
from jax.experimental.pallas import tpu as pltpu

NEG = -1e30  # additive mask value (finite, exp() underflows to 0.0)


def _layernorm(y, gamma, beta):
    mu = jnp.mean(y, axis=-1, keepdims=True)
    d = y - mu
    var = jnp.mean(d * d, axis=-1, keepdims=True)
    return d * jax.lax.rsqrt(var + 1e-5) * gamma + beta


def fused_forward_kernel(
        x_ref,        # (1, B*S, 6)   stream input (buffer feature-padded to 6)
        abias_ref,    # (1, B*S, B*S) additive attention bias (0 / NEG)
        pmask_ref,    # (1, B*S, 1)   pooling row-validity mask
        emb_w_ref,    # (1, 6, D)
        emb_b_ref,    # (1, 1, D)
        wqkv_ref,     # (1, L, D, 3D)
        bqkv_ref,     # (1, L, 1, 3D)
        wo_ref,       # (1, L, D, D)
        bo_ref,       # (1, L, 1, D)
        ln1_ref,      # (1, L, 2, D)  [gamma; beta]
        w1_ref,       # (1, L, D, F)
        b1_ref,       # (1, L, 1, F)
        w2_ref,       # (1, L, F, D)
        b2_ref,       # (1, L, 1, D)
        ln2_ref,      # (1, L, 2, D)
        pattn_w_ref,  # (1, D)        CombinedPooling attn weight (shared)
        pattn_b_ref,  # (1, 1)
        wp_ref,       # (3D, D)       CombinedPooling linear (shared)
        bp_ref,       # (1, D)
        out_ref,      # (1, B, D)
        *, n_head, batch, seq):
    D = wo_ref.shape[-1]
    Dh = D // n_head
    L = wqkv_ref.shape[1]
    scale = 1.0 / math.sqrt(Dh)

    x = x_ref[0]              # (B*S, 6)
    abias = abias_ref[0]      # (B*S, B*S)
    pmask = pmask_ref[0]      # (B*S, 1)

    # ---- Embedding: Linear(d_input -> D) --------------------------------
    h = jnp.dot(x, emb_w_ref[0],
                preferred_element_type=jnp.float32) + emb_b_ref[0]

    # ---- Encoder stack (post-norm, masked MHA + ReLU FFN) ---------------
    for l in range(L):
        qkv = jnp.dot(h, wqkv_ref[0, l],
                      preferred_element_type=jnp.float32) + bqkv_ref[0, l]
        wo = wo_ref[0, l]
        attn = jnp.zeros_like(h)
        for hh in range(n_head):
            lo = hh * Dh
            q = qkv[:, lo:lo + Dh]
            k = qkv[:, D + lo:D + lo + Dh]
            v = qkv[:, 2 * D + lo:2 * D + lo + Dh]
            # scores over all batches at once; abias kills cross-batch and
            # padded-key attention.
            s = jax.lax.dot_general(q, k, (((1,), (1,)), ((), ())),
                                    preferred_element_type=jnp.float32)
            s = s * scale + abias
            s = s - jnp.max(s, axis=-1, keepdims=True)
            p = jnp.exp(s)
            p = p * pl.reciprocal(jnp.sum(p, axis=-1, keepdims=True),
                                  approx=True)
            o = jnp.dot(p, v, preferred_element_type=jnp.float32)   # (B*S, Dh)
            # fold the output projection into the head loop
            attn = attn + jnp.dot(o, wo[lo:lo + Dh, :],
                                  preferred_element_type=jnp.float32)
        attn = attn + bo_ref[0, l]
        ln1 = ln1_ref[0, l]
        h = _layernorm(h + attn, ln1[0:1], ln1[1:2])

        f = jnp.dot(h, w1_ref[0, l],
                    preferred_element_type=jnp.float32) + b1_ref[0, l]
        f = jnp.maximum(f, 0.0)
        f = jnp.dot(f, w2_ref[0, l],
                    preferred_element_type=jnp.float32) + b2_ref[0, l]
        ln2 = ln2_ref[0, l]
        h = _layernorm(h + f, ln2[0:1], ln2[1:2])

    # ---- CombinedPooling (per batch, over this stream's real rows) ------
    aw = pattn_w_ref[...]     # (1, D)
    ab = pattn_b_ref[...]     # (1, 1)
    wp = wp_ref[...]          # (3D, D)
    bp = bp_ref[...]          # (1, D)
    for b in range(batch):
        hb = h[b * seq:(b + 1) * seq, :]          # (S, D)
        pmb = pmask[b * seq:(b + 1) * seq, :]     # (S, 1)
        cnt = jnp.sum(pmb, axis=0, keepdims=True)                     # (1,1)
        mean_b = jnp.sum(hb * pmb, axis=0, keepdims=True) / cnt       # (1,D)
        max_b = jnp.max(jnp.where(pmb > 0.5, hb, NEG),
                        axis=0, keepdims=True)                        # (1,D)
        sc = jnp.sum(hb * aw, axis=-1, keepdims=True) + ab            # (S,1)
        sc = jnp.where(pmb > 0.5, sc, NEG)
        sc = sc - jnp.max(sc, axis=0, keepdims=True)
        e = jnp.exp(sc)
        e = e * pl.reciprocal(jnp.sum(e, axis=0, keepdims=True), approx=True)
        attn_b = jnp.sum(hb * e, axis=0, keepdims=True)               # (1,D)
        # concat([mean,max,attn]) @ wp  ==  sum of three partial matmuls
        out_b = (jnp.dot(mean_b, wp[:D], preferred_element_type=jnp.float32)
                 + jnp.dot(max_b, wp[D:2 * D],
                           preferred_element_type=jnp.float32)
                 + jnp.dot(attn_b, wp[2 * D:],
                           preferred_element_type=jnp.float32)
                 + bp)
        out_ref[0, b:b + 1, :] = out_b


# ---------------------------------------------------------------------------
# Host-side wrapper
# ---------------------------------------------------------------------------

def _attn_bias(valid, S):
    # valid: (B, S) 1.0 = real key.  Returns (B*S, B*S) additive bias with 0
    # where query row i may attend to key column j (same batch AND valid key),
    # NEG elsewhere.
    B = valid.shape[0]
    bid = jnp.arange(B * S) // S
    same = bid[:, None] == bid[None, :]
    keyok = valid.reshape(-1)[None, :] > 0.5
    return jnp.where(same & keyok, 0.0, NEG).astype(jnp.float32)


def bin_packing_transformer(params, ems_list, buffer, ems_mask, n_head):
    B, S_e, _ = ems_list.shape
    _, S_b, _ = buffer.shape
    D = params["wo"].shape[-1]
    S = max(S_e, S_b)
    f32 = jnp.float32

    # Stream 0 = EMS (d_input 6); stream 1 = buffer (d_input 3, zero-padded to
    # 6 features -- the padded weight rows are zero so the result is exact).
    # Both streams are padded to the common sequence length S.
    ems_in = jnp.pad(ems_list.astype(f32), ((0, 0), (0, S - S_e), (0, 0)))
    buf_in = jnp.pad(buffer.astype(f32), ((0, 0), (0, S - S_b), (0, 3)))
    x = jnp.stack([ems_in, buf_in], axis=0).reshape(2, B * S, 6)

    if ems_mask is None:
        ems_valid = jnp.ones((B, S_e), f32)
    else:
        ems_valid = ems_mask.astype(f32)
    ems_valid = jnp.pad(ems_valid, ((0, 0), (0, S - S_e)))
    buf_valid = jnp.broadcast_to((jnp.arange(S) < S_b).astype(f32), (B, S))
    abias = jnp.stack([_attn_bias(ems_valid, S), _attn_bias(buf_valid, S)], 0)

    # CombinedPooling (like the reference) pools over every original row of a
    # stream regardless of ems_mask; only seq-padding rows are excluded.
    ems_pool = jnp.broadcast_to((jnp.arange(S) < S_e).astype(f32), (B, S))
    buf_pool = jnp.broadcast_to((jnp.arange(S) < S_b).astype(f32), (B, S))
    pmask = jnp.stack([ems_pool, buf_pool], 0).reshape(2, B * S, 1)

    def per_stream(a):
        blk = (1,) + tuple(a.shape[1:])
        zeros = (0,) * (a.ndim - 1)
        return pl.BlockSpec(blk, lambda s, z=zeros: (s,) + z)

    def shared(a):
        zeros = (0,) * a.ndim
        return pl.BlockSpec(tuple(a.shape), lambda s, z=zeros: z)

    kernel = functools.partial(fused_forward_kernel,
                               n_head=n_head, batch=B, seq=S)

    args = (x, abias, pmask,
            params["emb_w"], params["emb_b"],
            params["wqkv"], params["bqkv"], params["wo"], params["bo"],
            params["ln1"], params["w1"], params["b1"], params["w2"],
            params["b2"], params["ln2"],
            params["pattn_w"], params["pattn_b"], params["wp"], params["bp"])
    n_shared = 4  # CombinedPooling params are shared between the two streams
    in_specs = ([per_stream(a) for a in args[:len(args) - n_shared]]
                + [shared(a) for a in args[len(args) - n_shared:]])

    out = pl.pallas_call(
        kernel,
        out_shape=jax.ShapeDtypeStruct((2, B, D), f32),
        grid=(2,),
        in_specs=in_specs,
        out_specs=pl.BlockSpec((1, B, D), lambda s: (s, 0, 0)),
        compiler_params=pltpu.CompilerParams(
            dimension_semantics=("parallel",)),
    )(*args)
    return out[0], out[1]


# ---------------------------------------------------------------------------
# Parameter init (deterministic, in-script)
# ---------------------------------------------------------------------------

def init_params(key, d_model, n_layers, d_ff):
    D, L, F = d_model, n_layers, d_ff
    ks = iter(jax.random.split(key, 16))

    def rnd(shape, scale=0.05):
        return jax.random.normal(next(ks), shape, jnp.float32) * scale

    emb_w_ems = rnd((6, D))
    emb_w_buf = jnp.zeros((6, D), jnp.float32).at[:3].set(rnd((3, D)))
    ones = jnp.ones((2, L, 1, D), jnp.float32)
    zeros = jnp.zeros((2, L, 1, D), jnp.float32)
    return dict(
        emb_w=jnp.stack([emb_w_ems, emb_w_buf], axis=0),   # (2, 6, D)
        emb_b=rnd((2, 1, D)),
        wqkv=rnd((2, L, D, 3 * D)),                        # fused Q|K|V
        bqkv=rnd((2, L, 1, 3 * D)),
        wo=rnd((2, L, D, D)),
        bo=rnd((2, L, 1, D)),
        ln1=jnp.concatenate([ones, zeros], axis=2),        # (2, L, 2, D)
        w1=rnd((2, L, D, F)),
        b1=rnd((2, L, 1, F)),
        w2=rnd((2, L, F, D)),
        b2=rnd((2, L, 1, D)),
        ln2=jnp.concatenate([ones, zeros], axis=2),
        # CombinedPooling -- a single module shared by both streams.
        pattn_w=rnd((1, D)),
        pattn_b=rnd((1, 1)),
        wp=rnd((3 * D, D)),
        bp=rnd((1, D)),
    )


# ---------------------------------------------------------------------------
# Example run
# ---------------------------------------------------------------------------

if __name__ == "__main__":
    B, S_EMS, S_BUF = 2, 8, 5
    D_MODEL, N_HEAD, N_LAYERS, D_FF = 32, 4, 2, 64

    key = jax.random.PRNGKey(0)
    k_ems, k_buf, k_params = jax.random.split(key, 3)

    ems_list = jax.random.normal(k_ems, (B, S_EMS, 6), jnp.float32)
    buffer = jax.random.normal(k_buf, (B, S_BUF, 3), jnp.float32)
    # 1.0 for real EMS entries; last two entries of batch 1 are padding.
    ems_mask = jnp.ones((B, S_EMS), jnp.float32).at[1, 6:].set(0.0)

    params = init_params(k_params, D_MODEL, N_LAYERS, D_FF)

    fwd = jax.jit(functools.partial(bin_packing_transformer, n_head=N_HEAD))
    ems_feat, buf_feat = fwd(params, ems_list, buffer, ems_mask)
    jax.block_until_ready((ems_feat, buf_feat))

    assert ems_feat.shape == (B, D_MODEL)
    assert buf_feat.shape == (B, D_MODEL)
    assert bool(jnp.all(jnp.isfinite(ems_feat)))
    assert bool(jnp.all(jnp.isfinite(buf_feat)))
    print("KERNEL_OK")
</pallas_src>

<mosaic_0001>
module attributes {stable_mosaic.version = 11 : i64} {
  func.func @fused_forward_kernel(%arg0: i32, %arg1: memref<1x16x6xf32, #tpu.memory_space<vmem>>, %arg2: memref<1x16x16xf32, #tpu.memory_space<vmem>>, %arg3: memref<1x16x1xf32, #tpu.memory_space<vmem>>, %arg4: memref<1x6x32xf32, #tpu.memory_space<vmem>>, %arg5: memref<1x1x32xf32, #tpu.memory_space<vmem>>, %arg6: memref<1x2x32x96xf32, #tpu.memory_space<vmem>>, %arg7: memref<1x2x1x96xf32, #tpu.memory_space<vmem>>, %arg8: memref<1x2x32x32xf32, #tpu.memory_space<vmem>>, %arg9: memref<1x2x1x32xf32, #tpu.memory_space<vmem>>, %arg10: memref<1x2x2x32xf32, #tpu.memory_space<vmem>>, %arg11: memref<1x2x32x64xf32, #tpu.memory_space<vmem>>, %arg12: memref<1x2x1x64xf32, #tpu.memory_space<vmem>>, %arg13: memref<1x2x64x32xf32, #tpu.memory_space<vmem>>, %arg14: memref<1x2x1x32xf32, #tpu.memory_space<vmem>>, %arg15: memref<1x2x2x32xf32, #tpu.memory_space<vmem>>, %arg16: memref<1x32xf32, #tpu.memory_space<vmem>>, %arg17: memref<1x1xf32, #tpu.memory_space<vmem>>, %arg18: memref<96x32xf32, #tpu.memory_space<vmem>>, %arg19: memref<1x32xf32, #tpu.memory_space<vmem>>, %arg20: memref<1x2x32xf32, #tpu.memory_space<vmem>>) attributes {dimension_semantics = [#tpu.dimension_semantics<parallel>], iteration_bounds = array<i64: 2>, scalar_prefetch = 0 : i64, scratch_operands = 0 : i64, tpu.core_type = #tpu.core_type<tc>, window_params = [{transform_indices = @transform_0, window_bounds = array<i64: 1, 16, 6>}, {transform_indices = @transform_1, window_bounds = array<i64: 1, 16, 16>}, {transform_indices = @transform_2, window_bounds = array<i64: 1, 16, 1>}, {transform_indices = @transform_3, window_bounds = array<i64: 1, 6, 32>}, {transform_indices = @transform_4, window_bounds = array<i64: 1, 1, 32>}, {transform_indices = @transform_5, window_bounds = array<i64: 1, 2, 32, 96>}, {transform_indices = @transform_6, window_bounds = array<i64: 1, 2, 1, 96>}, {transform_indices = @transform_7, window_bounds = array<i64: 1, 2, 32, 32>}, {transform_indices = @transform_8, window_bounds = array<i64: 1, 2, 1, 32>}, {transform_indices = @transform_9, window_bounds = array<i64: 1, 2, 2, 32>}, {transform_indices = @transform_10, window_bounds = array<i64: 1, 2, 32, 64>}, {transform_indices = @transform_11, window_bounds = array<i64: 1, 2, 1, 64>}, {transform_indices = @transform_12, window_bounds = array<i64: 1, 2, 64, 32>}, {transform_indices = @transform_13, window_bounds = array<i64: 1, 2, 1, 32>}, {transform_indices = @transform_14, window_bounds = array<i64: 1, 2, 2, 32>}, {pipeline_mode = #tpu.pipeline_mode<synchronous>, transform_indices = @transform_15, window_bounds = array<i64: 1, 32>}, {pipeline_mode = #tpu.pipeline_mode<synchronous>, transform_indices = @transform_16, window_bounds = array<i64: 1, 1>}, {pipeline_mode = #tpu.pipeline_mode<synchronous>, transform_indices = @transform_17, window_bounds = array<i64: 96, 32>}, {pipeline_mode = #tpu.pipeline_mode<synchronous>, transform_indices = @transform_18, window_bounds = array<i64: 1, 32>}, {transform_indices = @transform_19, window_bounds = array<i64: 1, 2, 32>}]} {
    %c0 = arith.constant 0 : index
    %c0_0 = arith.constant 0 : index
    %c0_1 = arith.constant 0 : index
    %0 = vector.load %arg1[%c0, %c0_0, %c0_1] : memref<1x16x6xf32, #tpu.memory_space<vmem>>, vector<1x16x6xf32>
    %1 = vector.shape_cast %0 : vector<1x16x6xf32> to vector<16x6xf32>
    %c0_2 = arith.constant 0 : index
    %c0_3 = arith.constant 0 : index
    %c0_4 = arith.constant 0 : index
    %2 = vector.load %arg2[%c0_2, %c0_3, %c0_4] : memref<1x16x16xf32, #tpu.memory_space<vmem>>, vector<1x16x16xf32>
    %3 = vector.shape_cast %2 : vector<1x16x16xf32> to vector<16x16xf32>
    %c0_5 = arith.constant 0 : index
    %c0_6 = arith.constant 0 : index
    %c0_7 = arith.constant 0 : index
    %4 = vector.load %arg3[%c0_5, %c0_6, %c0_7] : memref<1x16x1xf32, #tpu.memory_space<vmem>>, vector<1x16x1xf32>
    %5 = vector.shape_cast %4 : vector<1x16x1xf32> to vector<16x1xf32>
    %c0_8 = arith.constant 0 : index
    %c0_9 = arith.constant 0 : index
    %c0_10 = arith.constant 0 : index
    %6 = vector.load %arg4[%c0_8, %c0_9, %c0_10] : memref<1x6x32xf32, #tpu.memory_space<vmem>>, vector<1x6x32xf32>
    %7 = vector.shape_cast %6 : vector<1x6x32xf32> to vector<6x32xf32>
    %cst = arith.constant dense<0.000000e+00> : vector<16x32xf32>
    %8 = tpu.matmul %1, %7, %cst {dimension_numbers = #tpu.dot_dimension_numbers<[1], [0], [0], [1], [0, 0, 1, 1], [], []>} : vector<16x6xf32>, vector<6x32xf32>, vector<16x32xf32> -> vector<16x32xf32>
    %c0_11 = arith.constant 0 : index
    %c0_12 = arith.constant 0 : index
    %c0_13 = arith.constant 0 : index
    %9 = vector.load %arg5[%c0_11, %c0_12, %c0_13] : memref<1x1x32xf32, #tpu.memory_space<vmem>>, vector<1x1x32xf32>
    %10 = vector.shape_cast %9 : vector<1x1x32xf32> to vector<1x32xf32>
    %11 = vector.broadcast %10 : vector<1x32xf32> to vector<16x32xf32>
    %12 = arith.addf %8, %11 : vector<16x32xf32>
    %c0_14 = arith.constant 0 : index
    %c0_15 = arith.constant 0 : index
    %c0_16 = arith.constant 0 : index
    %c0_17 = arith.constant 0 : index
    %13 = vector.load %arg6[%c0_14, %c0_15, %c0_16, %c0_17] : memref<1x2x32x96xf32, #tpu.memory_space<vmem>>, vector<1x1x32x96xf32>
    %14 = vector.shape_cast %13 : vector<1x1x32x96xf32> to vector<32x96xf32>
    %cst_18 = arith.constant dense<0.000000e+00> : vector<16x96xf32>
    %15 = tpu.matmul %12, %14, %cst_18 {dimension_numbers = #tpu.dot_dimension_numbers<[1], [0], [0], [1], [0, 0, 1, 1], [], []>} : vector<16x32xf32>, vector<32x96xf32>, vector<16x96xf32> -> vector<16x96xf32>
    %c0_19 = arith.constant 0 : index
    %c0_20 = arith.constant 0 : index
    %c0_21 = arith.constant 0 : index
    %c0_22 = arith.constant 0 : index
    %16 = vector.load %arg7[%c0_19, %c0_20, %c0_21, %c0_22] : memref<1x2x1x96xf32, #tpu.memory_space<vmem>>, vector<1x1x1x96xf32>
    %17 = vector.shape_cast %16 : vector<1x1x1x96xf32> to vector<1x96xf32>
    %18 = vector.broadcast %17 : vector<1x96xf32> to vector<16x96xf32>
    %19 = arith.addf %15, %18 : vector<16x96xf32>
    %c0_23 = arith.constant 0 : index
    %c0_24 = arith.constant 0 : index
    %c0_25 = arith.constant 0 : index
    %c0_26 = arith.constant 0 : index
    %20 = vector.load %arg8[%c0_23, %c0_24, %c0_25, %c0_26] : memref<1x2x32x32xf32, #tpu.memory_space<vmem>>, vector<1x1x32x32xf32>
    %21 = vector.shape_cast %20 : vector<1x1x32x32xf32> to vector<32x32xf32>
    %cst_27 = arith.constant 0.000000e+00 : f32
    %22 = vector.broadcast %cst_27 : f32 to vector<16x32xf32>
    %23 = vector.extract_strided_slice %19 {offsets = [0, 0], sizes = [16, 8], strides = [1, 1]} : vector<16x96xf32> to vector<16x8xf32>
    %24 = vector.extract_strided_slice %19 {offsets = [0, 32], sizes = [16, 8], strides = [1, 1]} : vector<16x96xf32> to vector<16x8xf32>
    %25 = vector.extract_strided_slice %19 {offsets = [0, 64], sizes = [16, 8], strides = [1, 1]} : vector<16x96xf32> to vector<16x8xf32>
    %cst_28 = arith.constant dense<0.000000e+00> : vector<16x16xf32>
    %26 = tpu.matmul %23, %24, %cst_28 {dimension_numbers = #tpu.dot_dimension_numbers<[1], [1], [0], [0], [0, 0, 1, 0], [], []>} : vector<16x8xf32>, vector<16x8xf32>, vector<16x16xf32> -> vector<16x16xf32>
    %cst_29 = arith.constant 0.353553385 : f32
    %27 = vector.broadcast %cst_29 : f32 to vector<16x16xf32>
    %28 = arith.mulf %26, %27 : vector<16x16xf32>
    %29 = arith.addf %28, %3 : vector<16x16xf32>
    %cst_30 = arith.constant dense<0xFF800000> : vector<16xf32>
    %30 = vector.multi_reduction <maximumf>, %29, %cst_30 [1] : vector<16x16xf32> to vector<16xf32>
    %31 = vector.shape_cast %30 : vector<16xf32> to vector<16x1xf32>
    %32 = vector.broadcast %31 : vector<16x1xf32> to vector<16x16xf32>
    %33 = arith.subf %29, %32 : vector<16x16xf32>
    %34 = math.exp %33 : vector<16x16xf32>
    %cst_31 = arith.constant dense<0.000000e+00> : vector<16xf32>
    %35 = vector.multi_reduction <add>, %34, %cst_31 [1] : vector<16x16xf32> to vector<16xf32>
    %36 = vector.shape_cast %35 : vector<16xf32> to vector<16x1xf32>
    %37 = tpu.reciprocal %36 {approx = true} : vector<16x1xf32> -> vector<16x1xf32>
    %38 = vector.broadcast %37 : vector<16x1xf32> to vector<16x16xf32>
    %39 = arith.mulf %34, %38 : vector<16x16xf32>
    %cst_32 = arith.constant dense<0.000000e+00> : vector<16x8xf32>
    %40 = tpu.matmul %39, %25, %cst_32 {dimension_numbers = #tpu.dot_dimension_numbers<[1], [0], [0], [1], [0, 0, 1, 1], [], []>} : vector<16x16xf32>, vector<16x8xf32>, vector<16x8xf32> -> vector<16x8xf32>
    %41 = vector.extract_strided_slice %21 {offsets = [0, 0], sizes = [8, 32], strides = [1, 1]} : vector<32x32xf32> to vector<8x32xf32>
    %cst_33 = arith.constant dense<0.000000e+00> : vector<16x32xf32>
    %42 = tpu.matmul %40, %41, %cst_33 {dimension_numbers = #tpu.dot_dimension_numbers<[1], [0], [0], [1], [0, 0, 1, 1], [], []>} : vector<16x8xf32>, vector<8x32xf32>, vector<16x32xf32> -> vector<16x32xf32>
    %43 = arith.addf %22, %42 : vector<16x32xf32>
    %44 = vector.extract_strided_slice %19 {offsets = [0, 8], sizes = [16, 8], strides = [1, 1]} : vector<16x96xf32> to vector<16x8xf32>
    %45 = vector.extract_strided_slice %19 {offsets = [0, 40], sizes = [16, 8], strides = [1, 1]} : vector<16x96xf32> to vector<16x8xf32>
    %46 = vector.extract_strided_slice %19 {offsets = [0, 72], sizes = [16, 8], strides = [1, 1]} : vector<16x96xf32> to vector<16x8xf32>
    %cst_34 = arith.constant dense<0.000000e+00> : vector<16x16xf32>
    %47 = tpu.matmul %44, %45, %cst_34 {dimension_numbers = #tpu.dot_dimension_numbers<[1], [1], [0], [0], [0, 0, 1, 0], [], []>} : vector<16x8xf32>, vector<16x8xf32>, vector<16x16xf32> -> vector<16x16xf32>
    %cst_35 = arith.constant 0.353553385 : f32
    %48 = vector.broadcast %cst_35 : f32 to vector<16x16xf32>
    %49 = arith.mulf %47, %48 : vector<16x16xf32>
    %50 = arith.addf %49, %3 : vector<16x16xf32>
    %cst_36 = arith.constant dense<0xFF800000> : vector<16xf32>
    %51 = vector.multi_reduction <maximumf>, %50, %cst_36 [1] : vector<16x16xf32> to vector<16xf32>
    %52 = vector.shape_cast %51 : vector<16xf32> to vector<16x1xf32>
    %53 = vector.broadcast %52 : vector<16x1xf32> to vector<16x16xf32>
    %54 = arith.subf %50, %53 : vector<16x16xf32>
    %55 = math.exp %54 : vector<16x16xf32>
    %cst_37 = arith.constant dense<0.000000e+00> : vector<16xf32>
    %56 = vector.multi_reduction <add>, %55, %cst_37 [1] : vector<16x16xf32> to vector<16xf32>
    %57 = vector.shape_cast %56 : vector<16xf32> to vector<16x1xf32>
    %58 = tpu.reciprocal %57 {approx = true} : vector<16x1xf32> -> vector<16x1xf32>
    %59 = vector.broadcast %58 : vector<16x1xf32> to vector<16x16xf32>
    %60 = arith.mulf %55, %59 : vector<16x16xf32>
    %cst_38 = arith.constant dense<0.000000e+00> : vector<16x8xf32>
    %61 = tpu.matmul %60, %46, %cst_38 {dimension_numbers = #tpu.dot_dimension_numbers<[1], [0], [0], [1], [0, 0, 1, 1], [], []>} : vector<16x16xf32>, vector<16x8xf32>, vector<16x8xf32> -> vector<16x8xf32>
    %62 = vector.extract_strided_slice %21 {offsets = [8, 0], sizes = [8, 32], strides = [1, 1]} : vector<32x32xf32> to vector<8x32xf32>
    %cst_39 = arith.constant dense<0.000000e+00> : vector<16x32xf32>
    %63 = tpu.matmul %61, %62, %cst_39 {dimension_numbers = #tpu.dot_dimension_numbers<[1], [0], [0], [1], [0, 0, 1, 1], [], []>} : vector<16x8xf32>, vector<8x32xf32>, vector<16x32xf32> -> vector<16x32xf32>
    %64 = arith.addf %43, %63 : vector<16x32xf32>
    %65 = vector.extract_strided_slice %19 {offsets = [0, 16], sizes = [16, 8], strides = [1, 1]} : vector<16x96xf32> to vector<16x8xf32>
    %66 = vector.extract_strided_slice %19 {offsets = [0, 48], sizes = [16, 8], strides = [1, 1]} : vector<16x96xf32> to vector<16x8xf32>
    %67 = vector.extract_strided_slice %19 {offsets = [0, 80], sizes = [16, 8], strides = [1, 1]} : vector<16x96xf32> to vector<16x8xf32>
    %cst_40 = arith.constant dense<0.000000e+00> : vector<16x16xf32>
    %68 = tpu.matmul %65, %66, %cst_40 {dimension_numbers = #tpu.dot_dimension_numbers<[1], [1], [0], [0], [0, 0, 1, 0], [], []>} : vector<16x8xf32>, vector<16x8xf32>, vector<16x16xf32> -> vector<16x16xf32>
    %cst_41 = arith.constant 0.353553385 : f32
    %69 = vector.broadcast %cst_41 : f32 to vector<16x16xf32>
    %70 = arith.mulf %68, %69 : vector<16x16xf32>
    %71 = arith.addf %70, %3 : vector<16x16xf32>
    %cst_42 = arith.constant dense<0xFF800000> : vector<16xf32>
    %72 = vector.multi_reduction <maximumf>, %71, %cst_42 [1] : vector<16x16xf32> to vector<16xf32>
    %73 = vector.shape_cast %72 : vector<16xf32> to vector<16x1xf32>
    %74 = vector.broadcast %73 : vector<16x1xf32> to vector<16x16xf32>
    %75 = arith.subf %71, %74 : vector<16x16xf32>
    %76 = math.exp %75 : vector<16x16xf32>
    %cst_43 = arith.constant dense<0.000000e+00> : vector<16xf32>
    %77 = vector.multi_reduction <add>, %76, %cst_43 [1] : vector<16x16xf32> to vector<16xf32>
    %78 = vector.shape_cast %77 : vector<16xf32> to vector<16x1xf32>
    %79 = tpu.reciprocal %78 {approx = true} : vector<16x1xf32> -> vector<16x1xf32>
    %80 = vector.broadcast %79 : vector<16x1xf32> to vector<16x16xf32>
    %81 = arith.mulf %76, %80 : vector<16x16xf32>
    %cst_44 = arith.constant dense<0.000000e+00> : vector<16x8xf32>
    %82 = tpu.matmul %81, %67, %cst_44 {dimension_numbers = #tpu.dot_dimension_numbers<[1], [0], [0], [1], [0, 0, 1, 1], [], []>} : vector<16x16xf32>, vector<16x8xf32>, vector<16x8xf32> -> vector<16x8xf32>
    %83 = vector.extract_strided_slice %21 {offsets = [16, 0], sizes = [8, 32], strides = [1, 1]} : vector<32x32xf32> to vector<8x32xf32>
    %cst_45 = arith.constant dense<0.000000e+00> : vector<16x32xf32>
    %84 = tpu.matmul %82, %83, %cst_45 {dimension_numbers = #tpu.dot_dimension_numbers<[1], [0], [0], [1], [0, 0, 1, 1], [], []>} : vector<16x8xf32>, vector<8x32xf32>, vector<16x32xf32> -> vector<16x32xf32>
    %85 = arith.addf %64, %84 : vector<16x32xf32>
    %86 = vector.extract_strided_slice %19 {offsets = [0, 24], sizes = [16, 8], strides = [1, 1]} : vector<16x96xf32> to vector<16x8xf32>
    %87 = vector.extract_strided_slice %19 {offsets = [0, 56], sizes = [16, 8], strides = [1, 1]} : vector<16x96xf32> to vector<16x8xf32>
    %88 = vector.extract_strided_slice %19 {offsets = [0, 88], sizes = [16, 8], strides = [1, 1]} : vector<16x96xf32> to vector<16x8xf32>
    %cst_46 = arith.constant dense<0.000000e+00> : vector<16x16xf32>
    %89 = tpu.matmul %86, %87, %cst_46 {dimension_numbers = #tpu.dot_dimension_numbers<[1], [1], [0], [0], [0, 0, 1, 0], [], []>} : vector<16x8xf32>, vector<16x8xf32>, vector<16x16xf32> -> vector<16x16xf32>
    %cst_47 = arith.constant 0.353553385 : f32
    %90 = vector.broadcast %cst_47 : f32 to vector<16x16xf32>
    %91 = arith.mulf %89, %90 : vector<16x16xf32>
    %92 = arith.addf %91, %3 : vector<16x16xf32>
    %cst_48 = arith.constant dense<0xFF800000> : vector<16xf32>
    %93 = vector.multi_reduction <maximumf>, %92, %cst_48 [1] : vector<16x16xf32> to vector<16xf32>
    %94 = vector.shape_cast %93 : vector<16xf32> to vector<16x1xf32>
    %95 = vector.broadcast %94 : vector<16x1xf32> to vector<16x16xf32>
    %96 = arith.subf %92, %95 : vector<16x16xf32>
    %97 = math.exp %96 : vector<16x16xf32>
    %cst_49 = arith.constant dense<0.000000e+00> : vector<16xf32>
    %98 = vector.multi_reduction <add>, %97, %cst_49 [1] : vector<16x16xf32> to vector<16xf32>
    %99 = vector.shape_cast %98 : vector<16xf32> to vector<16x1xf32>
    %100 = tpu.reciprocal %99 {approx = true} : vector<16x1xf32> -> vector<16x1xf32>
    %101 = vector.broadcast %100 : vector<16x1xf32> to vector<16x16xf32>
    %102 = arith.mulf %97, %101 : vector<16x16xf32>
    %cst_50 = arith.constant dense<0.000000e+00> : vector<16x8xf32>
    %103 = tpu.matmul %102, %88, %cst_50 {dimension_numbers = #tpu.dot_dimension_numbers<[1], [0], [0], [1], [0, 0, 1, 1], [], []>} : vector<16x16xf32>, vector<16x8xf32>, vector<16x8xf32> -> vector<16x8xf32>
    %104 = vector.extract_strided_slice %21 {offsets = [24, 0], sizes = [8, 32], strides = [1, 1]} : vector<32x32xf32> to vector<8x32xf32>
    %cst_51 = arith.constant dense<0.000000e+00> : vector<16x32xf32>
    %105 = tpu.matmul %103, %104, %cst_51 {dimension_numbers = #tpu.dot_dimension_numbers<[1], [0], [0], [1], [0, 0, 1, 1], [], []>} : vector<16x8xf32>, vector<8x32xf32>, vector<16x32xf32> -> vector<16x32xf32>
    %106 = arith.addf %85, %105 : vector<16x32xf32>
    %c0_52 = arith.constant 0 : index
    %c0_53 = arith.constant 0 : index
    %c0_54 = arith.constant 0 : index
    %c0_55 = arith.constant 0 : index
    %107 = vector.load %arg9[%c0_52, %c0_53, %c0_54, %c0_55] : memref<1x2x1x32xf32, #tpu.memory_space<vmem>>, vector<1x1x1x32xf32>
    %108 = vector.shape_cast %107 : vector<1x1x1x32xf32> to vector<1x32xf32>
    %109 = vector.broadcast %108 : vector<1x32xf32> to vector<16x32xf32>
    %110 = arith.addf %106, %109 : vector<16x32xf32>
    %c0_56 = arith.constant 0 : index
    %c0_57 = arith.constant 0 : index
    %c0_58 = arith.constant 0 : index
    %c0_59 = arith.constant 0 : index
    %111 = vector.load %arg10[%c0_56, %c0_57, %c0_58, %c0_59] : memref<1x2x2x32xf32, #tpu.memory_space<vmem>>, vector<1x1x2x32xf32>
    %112 = vector.shape_cast %111 : vector<1x1x2x32xf32> to vector<2x32xf32>
    %113 = arith.addf %12, %110 : vector<16x32xf32>
    %114 = vector.extract_strided_slice %112 {offsets = [0, 0], sizes = [1, 32], strides = [1, 1]} : vector<2x32xf32> to vector<1x32xf32>
    %115 = vector.extract_strided_slice %112 {offsets = [1, 0], sizes = [1, 32], strides = [1, 1]} : vector<2x32xf32> to vector<1x32xf32>
    %cst_60 = arith.constant dense<0.000000e+00> : vector<16xf32>
    %116 = vector.multi_reduction <add>, %113, %cst_60 [1] : vector<16x32xf32> to vector<16xf32>
    %117 = vector.shape_cast %116 : vector<16xf32> to vector<16x1xf32>
    %cst_61 = arith.constant 3.200000e+01 : f32
    %118 = vector.broadcast %cst_61 : f32 to vector<16x1xf32>
    %119 = arith.divf %117, %118 : vector<16x1xf32>
    %120 = vector.broadcast %119 : vector<16x1xf32> to vector<16x32xf32>
    %121 = arith.subf %113, %120 : vector<16x32xf32>
    %122 = arith.mulf %121, %121 : vector<16x32xf32>
    %cst_62 = arith.constant dense<0.000000e+00> : vector<16xf32>
    %123 = vector.multi_reduction <add>, %122, %cst_62 [1] : vector<16x32xf32> to vector<16xf32>
    %124 = vector.shape_cast %123 : vector<16xf32> to vector<16x1xf32>
    %cst_63 = arith.constant 3.200000e+01 : f32
    %125 = vector.broadcast %cst_63 : f32 to vector<16x1xf32>
    %126 = arith.divf %124, %125 : vector<16x1xf32>
    %cst_64 = arith.constant 9.99999974E-6 : f32
    %127 = vector.broadcast %cst_64 : f32 to vector<16x1xf32>
    %128 = arith.addf %126, %127 : vector<16x1xf32>
    %129 = math.rsqrt %128 : vector<16x1xf32>
    %130 = vector.broadcast %129 : vector<16x1xf32> to vector<16x32xf32>
    %131 = arith.mulf %121, %130 : vector<16x32xf32>
    %132 = vector.broadcast %114 : vector<1x32xf32> to vector<16x32xf32>
    %133 = arith.mulf %131, %132 : vector<16x32xf32>
    %134 = vector.broadcast %115 : vector<1x32xf32> to vector<16x32xf32>
    %135 = arith.addf %133, %134 : vector<16x32xf32>
    %c0_65 = arith.constant 0 : index
    %c0_66 = arith.constant 0 : index
    %c0_67 = arith.constant 0 : index
    %c0_68 = arith.constant 0 : index
    %136 = vector.load %arg11[%c0_65, %c0_66, %c0_67, %c0_68] : memref<1x2x32x64xf32, #tpu.memory_space<vmem>>, vector<1x1x32x64xf32>
    %137 = vector.shape_cast %136 : vector<1x1x32x64xf32> to vector<32x64xf32>
    %cst_69 = arith.constant dense<0.000000e+00> : vector<16x64xf32>
    %138 = tpu.matmul %135, %137, %cst_69 {dimension_numbers = #tpu.dot_dimension_numbers<[1], [0], [0], [1], [0, 0, 1, 1], [], []>} : vector<16x32xf32>, vector<32x64xf32>, vector<16x64xf32> -> vector<16x64xf32>
    %c0_70 = arith.constant 0 : index
    %c0_71 = arith.constant 0 : index
    %c0_72 = arith.constant 0 : index
    %c0_73 = arith.constant 0 : index
    %139 = vector.load %arg12[%c0_70, %c0_71, %c0_72, %c0_73] : memref<1x2x1x64xf32, #tpu.memory_space<vmem>>, vector<1x1x1x64xf32>
    %140 = vector.shape_cast %139 : vector<1x1x1x64xf32> to vector<1x64xf32>
    %141 = vector.broadcast %140 : vector<1x64xf32> to vector<16x64xf32>
    %142 = arith.addf %138, %141 : vector<16x64xf32>
    %cst_74 = arith.constant 0.000000e+00 : f32
    %143 = vector.broadcast %cst_74 : f32 to vector<16x64xf32>
    %144 = arith.maximumf %142, %143 : vector<16x64xf32>
    %c0_75 = arith.constant 0 : index
    %c0_76 = arith.constant 0 : index
    %c0_77 = arith.constant 0 : index
    %c0_78 = arith.constant 0 : index
    %145 = vector.load %arg13[%c0_75, %c0_76, %c0_77, %c0_78] : memref<1x2x64x32xf32, #tpu.memory_space<vmem>>, vector<1x1x64x32xf32>
    %146 = vector.shape_cast %145 : vector<1x1x64x32xf32> to vector<64x32xf32>
    %cst_79 = arith.constant dense<0.000000e+00> : vector<16x32xf32>
    %147 = tpu.matmul %144, %146, %cst_79 {dimension_numbers = #tpu.dot_dimension_numbers<[1], [0], [0], [1], [0, 0, 1, 1], [], []>} : vector<16x64xf32>, vector<64x32xf32>, vector<16x32xf32> -> vector<16x32xf32>
    %c0_80 = arith.constant 0 : index
    %c0_81 = arith.constant 0 : index
    %c0_82 = arith.constant 0 : index
    %c0_83 = arith.constant 0 : index
    %148 = vector.load %arg14[%c0_80, %c0_81, %c0_82, %c0_83] : memref<1x2x1x32xf32, #tpu.memory_space<vmem>>, vector<1x1x1x32xf32>
    %149 = vector.shape_cast %148 : vector<1x1x1x32xf32> to vector<1x32xf32>
    %150 = vector.broadcast %149 : vector<1x32xf32> to vector<16x32xf32>
    %151 = arith.addf %147, %150 : vector<16x32xf32>
    %c0_84 = arith.constant 0 : index
    %c0_85 = arith.constant 0 : index
    %c0_86 = arith.constant 0 : index
    %c0_87 = arith.constant 0 : index
    %152 = vector.load %arg15[%c0_84, %c0_85, %c0_86, %c0_87] : memref<1x2x2x32xf32, #tpu.memory_space<vmem>>, vector<1x1x2x32xf32>
    %153 = vector.shape_cast %152 : vector<1x1x2x32xf32> to vector<2x32xf32>
    %154 = arith.addf %135, %151 : vector<16x32xf32>
    %155 = vector.extract_strided_slice %153 {offsets = [0, 0], sizes = [1, 32], strides = [1, 1]} : vector<2x32xf32> to vector<1x32xf32>
    %156 = vector.extract_strided_slice %153 {offsets = [1, 0], sizes = [1, 32], strides = [1, 1]} : vector<2x32xf32> to vector<1x32xf32>
    %cst_88 = arith.constant dense<0.000000e+00> : vector<16xf32>
    %157 = vector.multi_reduction <add>, %154, %cst_88 [1] : vector<16x32xf32> to vector<16xf32>
    %158 = vector.shape_cast %157 : vector<16xf32> to vector<16x1xf32>
    %cst_89 = arith.constant 3.200000e+01 : f32
    %159 = vector.broadcast %cst_89 : f32 to vector<16x1xf32>
    %160 = arith.divf %158, %159 : vector<16x1xf32>
    %161 = vector.broadcast %160 : vector<16x1xf32> to vector<16x32xf32>
    %162 = arith.subf %154, %161 : vector<16x32xf32>
    %163 = arith.mulf %162, %162 : vector<16x32xf32>
    %cst_90 = arith.constant dense<0.000000e+00> : vector<16xf32>
    %164 = vector.multi_reduction <add>, %163, %cst_90 [1] : vector<16x32xf32> to vector<16xf32>
    %165 = vector.shape_cast %164 : vector<16xf32> to vector<16x1xf32>
    %cst_91 = arith.constant 3.200000e+01 : f32
    %166 = vector.broadcast %cst_91 : f32 to vector<16x1xf32>
    %167 = arith.divf %165, %166 : vector<16x1xf32>
    %cst_92 = arith.constant 9.99999974E-6 : f32
    %168 = vector.broadcast %cst_92 : f32 to vector<16x1xf32>
    %169 = arith.addf %167, %168 : vector<16x1xf32>
    %170 = math.rsqrt %169 : vector<16x1xf32>
    %171 = vector.broadcast %170 : vector<16x1xf32> to vector<16x32xf32>
    %172 = arith.mulf %162, %171 : vector<16x32xf32>
    %173 = vector.broadcast %155 : vector<1x32xf32> to vector<16x32xf32>
    %174 = arith.mulf %172, %173 : vector<16x32xf32>
    %175 = vector.broadcast %156 : vector<1x32xf32> to vector<16x32xf32>
    %176 = arith.addf %174, %175 : vector<16x32xf32>
    %c0_93 = arith.constant 0 : index
    %c1 = arith.constant 1 : index
    %c0_94 = arith.constant 0 : index
    %c0_95 = arith.constant 0 : index
    %177 = vector.load %arg6[%c0_93, %c1, %c0_94, %c0_95] : memref<1x2x32x96xf32, #tpu.memory_space<vmem>>, vector<1x1x32x96xf32>
    %178 = vector.shape_cast %177 : vector<1x1x32x96xf32> to vector<32x96xf32>
    %cst_96 = arith.constant dense<0.000000e+00> : vector<16x96xf32>
    %179 = tpu.matmul %176, %178, %cst_96 {dimension_numbers = #tpu.dot_dimension_numbers<[1], [0], [0], [1], [0, 0, 1, 1], [], []>} : vector<16x32xf32>, vector<32x96xf32>, vector<16x96xf32> -> vector<16x96xf32>
    %c0_97 = arith.constant 0 : index
    %c1_98 = arith.constant 1 : index
    %c0_99 = arith.constant 0 : index
    %c0_100 = arith.constant 0 : index
    %180 = vector.load %arg7[%c0_97, %c1_98, %c0_99, %c0_100] : memref<1x2x1x96xf32, #tpu.memory_space<vmem>>, vector<1x1x1x96xf32>
    %181 = vector.shape_cast %180 : vector<1x1x1x96xf32> to vector<1x96xf32>
    %182 = vector.broadcast %181 : vector<1x96xf32> to vector<16x96xf32>
    %183 = arith.addf %179, %182 : vector<16x96xf32>
    %c0_101 = arith.constant 0 : index
    %c1_102 = arith.constant 1 : index
    %c0_103 = arith.constant 0 : index
    %c0_104 = arith.constant 0 : index
    %184 = vector.load %arg8[%c0_101, %c1_102, %c0_103, %c0_104] : memref<1x2x32x32xf32, #tpu.memory_space<vmem>>, vector<1x1x32x32xf32>
    %185 = vector.shape_cast %184 : vector<1x1x32x32xf32> to vector<32x32xf32>
    %cst_105 = arith.constant 0.000000e+00 : f32
    %186 = vector.broadcast %cst_105 : f32 to vector<16x32xf32>
    %187 = vector.extract_strided_slice %183 {offsets = [0, 0], sizes = [16, 8], strides = [1, 1]} : vector<16x96xf32> to vector<16x8xf32>
    %188 = vector.extract_strided_slice %183 {offsets = [0, 32], sizes = [16, 8], strides = [1, 1]} : vector<16x96xf32> to vector<16x8xf32>
    %189 = vector.extract_strided_slice %183 {offsets = [0, 64], sizes = [16, 8], strides = [1, 1]} : vector<16x96xf32> to vector<16x8xf32>
    %cst_106 = arith.constant dense<0.000000e+00> : vector<16x16xf32>
    %190 = tpu.matmul %187, %188, %cst_106 {dimension_numbers = #tpu.dot_dimension_numbers<[1], [1], [0], [0], [0, 0, 1, 0], [], []>} : vector<16x8xf32>, vector<16x8xf32>, vector<16x16xf32> -> vector<16x16xf32>
    %cst_107 = arith.constant 0.353553385 : f32
    %191 = vector.broadcast %cst_107 : f32 to vector<16x16xf32>
    %192 = arith.mulf %190, %191 : vector<16x16xf32>
    %193 = arith.addf %192, %3 : vector<16x16xf32>
    %cst_108 = arith.constant dense<0xFF800000> : vector<16xf32>
    %194 = vector.multi_reduction <maximumf>, %193, %cst_108 [1] : vector<16x16xf32> to vector<16xf32>
    %195 = vector.shape_cast %194 : vector<16xf32> to vector<16x1xf32>
    %196 = vector.broadcast %195 : vector<16x1xf32> to vector<16x16xf32>
    %197 = arith.subf %193, %196 : vector<16x16xf32>
    %198 = math.exp %197 : vector<16x16xf32>
    %cst_109 = arith.constant dense<0.000000e+00> : vector<16xf32>
    %199 = vector.multi_reduction <add>, %198, %cst_109 [1] : vector<16x16xf32> to vector<16xf32>
    %200 = vector.shape_cast %199 : vector<16xf32> to vector<16x1xf32>
    %201 = tpu.reciprocal %200 {approx = true} : vector<16x1xf32> -> vector<16x1xf32>
    %202 = vector.broadcast %201 : vector<16x1xf32> to vector<16x16xf32>
    %203 = arith.mulf %198, %202 : vector<16x16xf32>
    %cst_110 = arith.constant dense<0.000000e+00> : vector<16x8xf32>
    %204 = tpu.matmul %203, %189, %cst_110 {dimension_numbers = #tpu.dot_dimension_numbers<[1], [0], [0], [1], [0, 0, 1, 1], [], []>} : vector<16x16xf32>, vector<16x8xf32>, vector<16x8xf32> -> vector<16x8xf32>
    %205 = vector.extract_strided_slice %185 {offsets = [0, 0], sizes = [8, 32], strides = [1, 1]} : vector<32x32xf32> to vector<8x32xf32>
    %cst_111 = arith.constant dense<0.000000e+00> : vector<16x32xf32>
    %206 = tpu.matmul %204, %205, %cst_111 {dimension_numbers = #tpu.dot_dimension_numbers<[1], [0], [0], [1], [0, 0, 1, 1], [], []>} : vector<16x8xf32>, vector<8x32xf32>, vector<16x32xf32> -> vector<16x32xf32>
    %207 = arith.addf %186, %206 : vector<16x32xf32>
    %208 = vector.extract_strided_slice %183 {offsets = [0, 8], sizes = [16, 8], strides = [1, 1]} : vector<16x96xf32> to vector<16x8xf32>
    %209 = vector.extract_strided_slice %183 {offsets = [0, 40], sizes = [16, 8], strides = [1, 1]} : vector<16x96xf32> to vector<16x8xf32>
    %210 = vector.extract_strided_slice %183 {offsets = [0, 72], sizes = [16, 8], strides = [1, 1]} : vector<16x96xf32> to vector<16x8xf32>
    %cst_112 = arith.constant dense<0.000000e+00> : vector<16x16xf32>
    %211 = tpu.matmul %208, %209, %cst_112 {dimension_numbers = #tpu.dot_dimension_numbers<[1], [1], [0], [0], [0, 0, 1, 0], [], []>} : vector<16x8xf32>, vector<16x8xf32>, vector<16x16xf32> -> vector<16x16xf32>
    %cst_113 = arith.constant 0.353553385 : f32
    %212 = vector.broadcast %cst_113 : f32 to vector<16x16xf32>
    %213 = arith.mulf %211, %212 : vector<16x16xf32>
    %214 = arith.addf %213, %3 : vector<16x16xf32>
    %cst_114 = arith.constant dense<0xFF800000> : vector<16xf32>
    %215 = vector.multi_reduction <maximumf>, %214, %cst_114 [1] : vector<16x16xf32> to vector<16xf32>
    %216 = vector.shape_cast %215 : vector<16xf32> to vector<16x1xf32>
    %217 = vector.broadcast %216 : vector<16x1xf32> to vector<16x16xf32>
    %218 = arith.subf %214, %217 : vector<16x16xf32>
    %219 = math.exp %218 : vector<16x16xf32>
    %cst_115 = arith.constant dense<0.000000e+00> : vector<16xf32>
    %220 = vector.multi_reduction <add>, %219, %cst_115 [1] : vector<16x16xf32> to vector<16xf32>
    %221 = vector.shape_cast %220 : vector<16xf32> to vector<16x1xf32>
    %222 = tpu.reciprocal %221 {approx = true} : vector<16x1xf32> -> vector<16x1xf32>
    %223 = vector.broadcast %222 : vector<16x1xf32> to vector<16x16xf32>
    %224 = arith.mulf %219, %223 : vector<16x16xf32>
    %cst_116 = arith.constant dense<0.000000e+00> : vector<16x8xf32>
    %225 = tpu.matmul %224, %210, %cst_116 {dimension_numbers = #tpu.dot_dimension_numbers<[1], [0], [0], [1], [0, 0, 1, 1], [], []>} : vector<16x16xf32>, vector<16x8xf32>, vector<16x8xf32> -> vector<16x8xf32>
    %226 = vector.extract_strided_slice %185 {offsets = [8, 0], sizes = [8, 32], strides = [1, 1]} : vector<32x32xf32> to vector<8x32xf32>
    %cst_117 = arith.constant dense<0.000000e+00> : vector<16x32xf32>
    %227 = tpu.matmul %225, %226, %cst_117 {dimension_numbers = #tpu.dot_dimension_numbers<[1], [0], [0], [1], [0, 0, 1, 1], [], []>} : vector<16x8xf32>, vector<8x32xf32>, vector<16x32xf32> -> vector<16x32xf32>
    %228 = arith.addf %207, %227 : vector<16x32xf32>
    %229 = vector.extract_strided_slice %183 {offsets = [0, 16], sizes = [16, 8], strides = [1, 1]} : vector<16x96xf32> to vector<16x8xf32>
    %230 = vector.extract_strided_slice %183 {offsets = [0, 48], sizes = [16, 8], strides = [1, 1]} : vector<16x96xf32> to vector<16x8xf32>
    %231 = vector.extract_strided_slice %183 {offsets = [0, 80], sizes = [16, 8], strides = [1, 1]} : vector<16x96xf32> to vector<16x8xf32>
    %cst_118 = arith.constant dense<0.000000e+00> : vector<16x16xf32>
    %232 = tpu.matmul %229, %230, %cst_118 {dimension_numbers = #tpu.dot_dimension_numbers<[1], [1], [0], [0], [0, 0, 1, 0], [], []>} : vector<16x8xf32>, vector<16x8xf32>, vector<16x16xf32> -> vector<16x16xf32>
    %cst_119 = arith.constant 0.353553385 : f32
    %233 = vector.broadcast %cst_119 : f32 to vector<16x16xf32>
    %234 = arith.mulf %232, %233 : vector<16x16xf32>
    %235 = arith.addf %234, %3 : vector<16x16xf32>
    %cst_120 = arith.constant dense<0xFF800000> : vector<16xf32>
    %236 = vector.multi_reduction <maximumf>, %235, %cst_120 [1] : vector<16x16xf32> to vector<16xf32>
    %237 = vector.shape_cast %236 : vector<16xf32> to vector<16x1xf32>
    %238 = vector.broadcast %237 : vector<16x1xf32> to vector<16x16xf32>
    %239 = arith.subf %235, %238 : vector<16x16xf32>
    %240 = math.exp %239 : vector<16x16xf32>
    %cst_121 = arith.constant dense<0.000000e+00> : vector<16xf32>
    %241 = vector.multi_reduction <add>, %240, %cst_121 [1] : vector<16x16xf32> to vector<16xf32>
    %242 = vector.shape_cast %241 : vector<16xf32> to vector<16x1xf32>
    %243 = tpu.reciprocal %242 {approx = true} : vector<16x1xf32> -> vector<16x1xf32>
    %244 = vector.broadcast %243 : vector<16x1xf32> to vector<16x16xf32>
    %245 = arith.mulf %240, %244 : vector<16x16xf32>
    %cst_122 = arith.constant dense<0.000000e+00> : vector<16x8xf32>
    %246 = tpu.matmul %245, %231, %cst_122 {dimension_numbers = #tpu.dot_dimension_numbers<[1], [0], [0], [1], [0, 0, 1, 1], [], []>} : vector<16x16xf32>, vector<16x8xf32>, vector<16x8xf32> -> vector<16x8xf32>
    %247 = vector.extract_strided_slice %185 {offsets = [16, 0], sizes = [8, 32], strides = [1, 1]} : vector<32x32xf32> to vector<8x32xf32>
    %cst_123 = arith.constant dense<0.000000e+00> : vector<16x32xf32>
    %248 = tpu.matmul %246, %247, %cst_123 {dimension_numbers = #tpu.dot_dimension_numbers<[1], [0], [0], [1], [0, 0, 1, 1], [], []>} : vector<16x8xf32>, vector<8x32xf32>, vector<16x32xf32> -> vector<16x32xf32>
    %249 = arith.addf %228, %248 : vector<16x32xf32>
    %250 = vector.extract_strided_slice %183 {offsets = [0, 24], sizes = [16, 8], strides = [1, 1]} : vector<16x96xf32> to vector<16x8xf32>
    %251 = vector.extract_strided_slice %183 {offsets = [0, 56], sizes = [16, 8], strides = [1, 1]} : vector<16x96xf32> to vector<16x8xf32>
    %252 = vector.extract_strided_slice %183 {offsets = [0, 88], sizes = [16, 8], strides = [1, 1]} : vector<16x96xf32> to vector<16x8xf32>
    %cst_124 = arith.constant dense<0.000000e+00> : vector<16x16xf32>
    %253 = tpu.matmul %250, %251, %cst_124 {dimension_numbers = #tpu.dot_dimension_numbers<[1], [1], [0], [0], [0, 0, 1, 0], [], []>} : vector<16x8xf32>, vector<16x8xf32>, vector<16x16xf32> -> vector<16x16xf32>
    %cst_125 = arith.constant 0.353553385 : f32
    %254 = vector.broadcast %cst_125 : f32 to vector<16x16xf32>
    %255 = arith.mulf %253, %254 : vector<16x16xf32>
    %256 = arith.addf %255, %3 : vector<16x16xf32>
    %cst_126 = arith.constant dense<0xFF800000> : vector<16xf32>
    %257 = vector.multi_reduction <maximumf>, %256, %cst_126 [1] : vector<16x16xf32> to vector<16xf32>
    %258 = vector.shape_cast %257 : vector<16xf32> to vector<16x1xf32>
    %259 = vector.broadcast %258 : vector<16x1xf32> to vector<16x16xf32>
    %260 = arith.subf %256, %259 : vector<16x16xf32>
    %261 = math.exp %260 : vector<16x16xf32>
    %cst_127 = arith.constant dense<0.000000e+00> : vector<16xf32>
    %262 = vector.multi_reduction <add>, %261, %cst_127 [1] : vector<16x16xf32> to vector<16xf32>
    %263 = vector.shape_cast %262 : vector<16xf32> to vector<16x1xf32>
    %264 = tpu.reciprocal %263 {approx = true} : vector<16x1xf32> -> vector<16x1xf32>
    %265 = vector.broadcast %264 : vector<16x1xf32> to vector<16x16xf32>
    %266 = arith.mulf %261, %265 : vector<16x16xf32>
    %cst_128 = arith.constant dense<0.000000e+00> : vector<16x8xf32>
    %267 = tpu.matmul %266, %252, %cst_128 {dimension_numbers = #tpu.dot_dimension_numbers<[1], [0], [0], [1], [0, 0, 1, 1], [], []>} : vector<16x16xf32>, vector<16x8xf32>, vector<16x8xf32> -> vector<16x8xf32>
    %268 = vector.extract_strided_slice %185 {offsets = [24, 0], sizes = [8, 32], strides = [1, 1]} : vector<32x32xf32> to vector<8x32xf32>
    %cst_129 = arith.constant dense<0.000000e+00> : vector<16x32xf32>
    %269 = tpu.matmul %267, %268, %cst_129 {dimension_numbers = #tpu.dot_dimension_numbers<[1], [0], [0], [1], [0, 0, 1, 1], [], []>} : vector<16x8xf32>, vector<8x32xf32>, vector<16x32xf32> -> vector<16x32xf32>
    %270 = arith.addf %249, %269 : vector<16x32xf32>
    %c0_130 = arith.constant 0 : index
    %c1_131 = arith.constant 1 : index
    %c0_132 = arith.constant 0 : index
    %c0_133 = arith.constant 0 : index
    %271 = vector.load %arg9[%c0_130, %c1_131, %c0_132, %c0_133] : memref<1x2x1x32xf32, #tpu.memory_space<vmem>>, vector<1x1x1x32xf32>
    %272 = vector.shape_cast %271 : vector<1x1x1x32xf32> to vector<1x32xf32>
    %273 = vector.broadcast %272 : vector<1x32xf32> to vector<16x32xf32>
    %274 = arith.addf %270, %273 : vector<16x32xf32>
    %c0_134 = arith.constant 0 : index
    %c1_135 = arith.constant 1 : index
    %c0_136 = arith.constant 0 : index
    %c0_137 = arith.constant 0 : index
    %275 = vector.load %arg10[%c0_134, %c1_135, %c0_136, %c0_137] : memref<1x2x2x32xf32, #tpu.memory_space<vmem>>, vector<1x1x2x32xf32>
    %276 = vector.shape_cast %275 : vector<1x1x2x32xf32> to vector<2x32xf32>
    %277 = arith.addf %176, %274 : vector<16x32xf32>
    %278 = vector.extract_strided_slice %276 {offsets = [0, 0], sizes = [1, 32], strides = [1, 1]} : vector<2x32xf32> to vector<1x32xf32>
    %279 = vector.extract_strided_slice %276 {offsets = [1, 0], sizes = [1, 32], strides = [1, 1]} : vector<2x32xf32> to vector<1x32xf32>
    %cst_138 = arith.constant dense<0.000000e+00> : vector<16xf32>
    %280 = vector.multi_reduction <add>, %277, %cst_138 [1] : vector<16x32xf32> to vector<16xf32>
    %281 = vector.shape_cast %280 : vector<16xf32> to vector<16x1xf32>
    %cst_139 = arith.constant 3.200000e+01 : f32
    %282 = vector.broadcast %cst_139 : f32 to vector<16x1xf32>
    %283 = arith.divf %281, %282 : vector<16x1xf32>
    %284 = vector.broadcast %283 : vector<16x1xf32> to vector<16x32xf32>
    %285 = arith.subf %277, %284 : vector<16x32xf32>
    %286 = arith.mulf %285, %285 : vector<16x32xf32>
    %cst_140 = arith.constant dense<0.000000e+00> : vector<16xf32>
    %287 = vector.multi_reduction <add>, %286, %cst_140 [1] : vector<16x32xf32> to vector<16xf32>
    %288 = vector.shape_cast %287 : vector<16xf32> to vector<16x1xf32>
    %cst_141 = arith.constant 3.200000e+01 : f32
    %289 = vector.broadcast %cst_141 : f32 to vector<16x1xf32>
    %290 = arith.divf %288, %289 : vector<16x1xf32>
    %cst_142 = arith.constant 9.99999974E-6 : f32
    %291 = vector.broadcast %cst_142 : f32 to vector<16x1xf32>
    %292 = arith.addf %290, %291 : vector<16x1xf32>
    %293 = math.rsqrt %292 : vector<16x1xf32>
    %294 = vector.broadcast %293 : vector<16x1xf32> to vector<16x32xf32>
    %295 = arith.mulf %285, %294 : vector<16x32xf32>
    %296 = vector.broadcast %278 : vector<1x32xf32> to vector<16x32xf32>
    %297 = arith.mulf %295, %296 : vector<16x32xf32>
    %298 = vector.broadcast %279 : vector<1x32xf32> to vector<16x32xf32>
    %299 = arith.addf %297, %298 : vector<16x32xf32>
    %c0_143 = arith.constant 0 : index
    %c1_144 = arith.constant 1 : index
    %c0_145 = arith.constant 0 : index
    %c0_146 = arith.constant 0 : index
    %300 = vector.load %arg11[%c0_143, %c1_144, %c0_145, %c0_146] : memref<1x2x32x64xf32, #tpu.memory_space<vmem>>, vector<1x1x32x64xf32>
    %301 = vector.shape_cast %300 : vector<1x1x32x64xf32> to vector<32x64xf32>
    %cst_147 = arith.constant dense<0.000000e+00> : vector<16x64xf32>
    %302 = tpu.matmul %299, %301, %cst_147 {dimension_numbers = #tpu.dot_dimension_numbers<[1], [0], [0], [1], [0, 0, 1, 1], [], []>} : vector<16x32xf32>, vector<32x64xf32>, vector<16x64xf32> -> vector<16x64xf32>
    %c0_148 = arith.constant 0 : index
    %c1_149 = arith.constant 1 : index
    %c0_150 = arith.constant 0 : index
    %c0_151 = arith.constant 0 : index
    %303 = vector.load %arg12[%c0_148, %c1_149, %c0_150, %c0_151] : memref<1x2x1x64xf32, #tpu.memory_space<vmem>>, vector<1x1x1x64xf32>
    %304 = vector.shape_cast %303 : vector<1x1x1x64xf32> to vector<1x64xf32>
    %305 = vector.broadcast %304 : vector<1x64xf32> to vector<16x64xf32>
    %306 = arith.addf %302, %305 : vector<16x64xf32>
    %cst_152 = arith.constant 0.000000e+00 : f32
    %307 = vector.broadcast %cst_152 : f32 to vector<16x64xf32>
    %308 = arith.maximumf %306, %307 : vector<16x64xf32>
    %c0_153 = arith.constant 0 : index
    %c1_154 = arith.constant 1 : index
    %c0_155 = arith.constant 0 : index
    %c0_156 = arith.constant 0 : index
    %309 = vector.load %arg13[%c0_153, %c1_154, %c0_155, %c0_156] : memref<1x2x64x32xf32, #tpu.memory_space<vmem>>, vector<1x1x64x32xf32>
    %310 = vector.shape_cast %309 : vector<1x1x64x32xf32> to vector<64x32xf32>
    %cst_157 = arith.constant dense<0.000000e+00> : vector<16x32xf32>
    %311 = tpu.matmul %308, %310, %cst_157 {dimension_numbers = #tpu.dot_dimension_numbers<[1], [0], [0], [1], [0, 0, 1, 1], [], []>} : vector<16x64xf32>, vector<64x32xf32>, vector<16x32xf32> -> vector<16x32xf32>
    %c0_158 = arith.constant 0 : index
    %c1_159 = arith.constant 1 : index
    %c0_160 = arith.constant 0 : index
    %c0_161 = arith.constant 0 : index
    %312 = vector.load %arg14[%c0_158, %c1_159, %c0_160, %c0_161] : memref<1x2x1x32xf32, #tpu.memory_space<vmem>>, vector<1x1x1x32xf32>
    %313 = vector.shape_cast %312 : vector<1x1x1x32xf32> to vector<1x32xf32>
    %314 = vector.broadcast %313 : vector<1x32xf32> to vector<16x32xf32>
    %315 = arith.addf %311, %314 : vector<16x32xf32>
    %c0_162 = arith.constant 0 : index
    %c1_163 = arith.constant 1 : index
    %c0_164 = arith.constant 0 : index
    %c0_165 = arith.constant 0 : index
    %316 = vector.load %arg15[%c0_162, %c1_163, %c0_164, %c0_165] : memref<1x2x2x32xf32, #tpu.memory_space<vmem>>, vector<1x1x2x32xf32>
    %317 = vector.shape_cast %316 : vector<1x1x2x32xf32> to vector<2x32xf32>
    %318 = arith.addf %299, %315 : vector<16x32xf32>
    %319 = vector.extract_strided_slice %317 {offsets = [0, 0], sizes = [1, 32], strides = [1, 1]} : vector<2x32xf32> to vector<1x32xf32>
    %320 = vector.extract_strided_slice %317 {offsets = [1, 0], sizes = [1, 32], strides = [1, 1]} : vector<2x32xf32> to vector<1x32xf32>
    %cst_166 = arith.constant dense<0.000000e+00> : vector<16xf32>
    %321 = vector.multi_reduction <add>, %318, %cst_166 [1] : vector<16x32xf32> to vector<16xf32>
    %322 = vector.shape_cast %321 : vector<16xf32> to vector<16x1xf32>
    %cst_167 = arith.constant 3.200000e+01 : f32
    %323 = vector.broadcast %cst_167 : f32 to vector<16x1xf32>
    %324 = arith.divf %322, %323 : vector<16x1xf32>
    %325 = vector.broadcast %324 : vector<16x1xf32> to vector<16x32xf32>
    %326 = arith.subf %318, %325 : vector<16x32xf32>
    %327 = arith.mulf %326, %326 : vector<16x32xf32>
    %cst_168 = arith.constant dense<0.000000e+00> : vector<16xf32>
    %328 = vector.multi_reduction <add>, %327, %cst_168 [1] : vector<16x32xf32> to vector<16xf32>
    %329 = vector.shape_cast %328 : vector<16xf32> to vector<16x1xf32>
    %cst_169 = arith.constant 3.200000e+01 : f32
    %330 = vector.broadcast %cst_169 : f32 to vector<16x1xf32>
    %331 = arith.divf %329, %330 : vector<16x1xf32>
    %cst_170 = arith.constant 9.99999974E-6 : f32
    %332 = vector.broadcast %cst_170 : f32 to vector<16x1xf32>
    %333 = arith.addf %331, %332 : vector<16x1xf32>
    %334 = math.rsqrt %333 : vector<16x1xf32>
    %335 = vector.broadcast %334 : vector<16x1xf32> to vector<16x32xf32>
    %336 = arith.mulf %326, %335 : vector<16x32xf32>
    %337 = vector.broadcast %319 : vector<1x32xf32> to vector<16x32xf32>
    %338 = arith.mulf %336, %337 : vector<16x32xf32>
    %339 = vector.broadcast %320 : vector<1x32xf32> to vector<16x32xf32>
    %340 = arith.addf %338, %339 : vector<16x32xf32>
    %c0_171 = arith.constant 0 : index
    %c0_172 = arith.constant 0 : index
    %341 = vector.load %arg16[%c0_171, %c0_172] : memref<1x32xf32, #tpu.memory_space<vmem>>, vector<1x32xf32>
    %c0_173 = arith.constant 0 : index
    %c0_174 = arith.constant 0 : index
    %342 = vector.load %arg17[%c0_173, %c0_174] : memref<1x1xf32, #tpu.memory_space<vmem>>, vector<1x1xf32>
    %c0_175 = arith.constant 0 : index
    %c0_176 = arith.constant 0 : index
    %343 = vector.load %arg18[%c0_175, %c0_176] : memref<96x32xf32, #tpu.memory_space<vmem>>, vector<96x32xf32>
    %c0_177 = arith.constant 0 : index
    %c0_178 = arith.constant 0 : index
    %344 = vector.load %arg19[%c0_177, %c0_178] : memref<1x32xf32, #tpu.memory_space<vmem>>, vector<1x32xf32>
    %345 = vector.extract_strided_slice %340 {offsets = [0, 0], sizes = [8, 32], strides = [1, 1]} : vector<16x32xf32> to vector<8x32xf32>
    %346 = vector.extract_strided_slice %5 {offsets = [0, 0], sizes = [8, 1], strides = [1, 1]} : vector<16x1xf32> to vector<8x1xf32>
    %cst_179 = arith.constant dense<0.000000e+00> : vector<1xf32>
    %347 = vector.multi_reduction <add>, %346, %cst_179 [0] : vector<8x1xf32> to vector<1xf32>
    %348 = vector.shape_cast %347 : vector<1xf32> to vector<1x1xf32>
    %349 = vector.broadcast %346 : vector<8x1xf32> to vector<8x32xf32>
    %350 = arith.mulf %345, %349 : vector<8x32xf32>
    %cst_180 = arith.constant dense<0.000000e+00> : vector<32xf32>
    %351 = vector.multi_reduction <add>, %350, %cst_180 [0] : vector<8x32xf32> to vector<32xf32>
    %352 = vector.shape_cast %351 : vector<32xf32> to vector<1x32xf32>
    %353 = vector.broadcast %348 : vector<1x1xf32> to vector<1x32xf32>
    %354 = arith.divf %352, %353 : vector<1x32xf32>
    %cst_181 = arith.constant 5.000000e-01 : f32
    %355 = vector.broadcast %cst_181 : f32 to vector<8x1xf32>
    %356 = arith.cmpf ogt, %346, %355 : vector<8x1xf32>
    %cst_182 = arith.constant -1.000000e+30 : f32
    %357 = vector.shape_cast %356 : vector<8x1xi1> to vector<8x1xi1>
    %358 = vector.broadcast %357 : vector<8x1xi1> to vector<8x32xi1>
    %359 = vector.broadcast %cst_182 : f32 to vector<8x32xf32>
    %360 = arith.select %358, %345, %359 : vector<8x32xi1>, vector<8x32xf32>
    %cst_183 = arith.constant dense<0xFF800000> : vector<32xf32>
    %361 = vector.multi_reduction <maximumf>, %360, %cst_183 [0] : vector<8x32xf32> to vector<32xf32>
    %362 = vector.shape_cast %361 : vector<32xf32> to vector<1x32xf32>
    %363 = vector.broadcast %341 : vector<1x32xf32> to vector<8x32xf32>
    %364 = arith.mulf %345, %363 : vector<8x32xf32>
    %cst_184 = arith.constant dense<0.000000e+00> : vector<8xf32>
    %365 = vector.multi_reduction <add>, %364, %cst_184 [1] : vector<8x32xf32> to vector<8xf32>
    %366 = vector.shape_cast %365 : vector<8xf32> to vector<8x1xf32>
    %367 = vector.broadcast %342 : vector<1x1xf32> to vector<8x1xf32>
    %368 = arith.addf %366, %367 : vector<8x1xf32>
    %cst_185 = arith.constant 5.000000e-01 : f32
    %369 = vector.broadcast %cst_185 : f32 to vector<8x1xf32>
    %370 = arith.cmpf ogt, %346, %369 : vector<8x1xf32>
    %cst_186 = arith.constant -1.000000e+30 : f32
    %371 = vector.broadcast %cst_186 : f32 to vector<8x1xf32>
    %372 = arith.select %370, %368, %371 : vector<8x1xi1>, vector<8x1xf32>
    %cst_187 = arith.constant dense<0xFF800000> : vector<1xf32>
    %373 = vector.multi_reduction <maximumf>, %372, %cst_187 [0] : vector<8x1xf32> to vector<1xf32>
    %374 = vector.shape_cast %373 : vector<1xf32> to vector<1x1xf32>
    %375 = vector.broadcast %374 : vector<1x1xf32> to vector<8x1xf32>
    %376 = arith.subf %372, %375 : vector<8x1xf32>
    %377 = math.exp %376 : vector<8x1xf32>
    %cst_188 = arith.constant dense<0.000000e+00> : vector<1xf32>
    %378 = vector.multi_reduction <add>, %377, %cst_188 [0] : vector<8x1xf32> to vector<1xf32>
    %379 = vector.shape_cast %378 : vector<1xf32> to vector<1x1xf32>
    %380 = tpu.reciprocal %379 {approx = true} : vector<1x1xf32> -> vector<1x1xf32>
    %381 = vector.broadcast %380 : vector<1x1xf32> to vector<8x1xf32>
    %382 = arith.mulf %377, %381 : vector<8x1xf32>
    %383 = vector.broadcast %382 : vector<8x1xf32> to vector<8x32xf32>
    %384 = arith.mulf %345, %383 : vector<8x32xf32>
    %cst_189 = arith.constant dense<0.000000e+00> : vector<32xf32>
    %385 = vector.multi_reduction <add>, %384, %cst_189 [0] : vector<8x32xf32> to vector<32xf32>
    %386 = vector.shape_cast %385 : vector<32xf32> to vector<1x32xf32>
    %387 = vector.extract_strided_slice %343 {offsets = [0, 0], sizes = [32, 32], strides = [1, 1]} : vector<96x32xf32> to vector<32x32xf32>
    %cst_190 = arith.constant dense<0.000000e+00> : vector<1x32xf32>
    %388 = tpu.matmul %354, %387, %cst_190 {dimension_numbers = #tpu.dot_dimension_numbers<[1], [0], [0], [1], [0, 0, 1, 1], [], []>} : vector<1x32xf32>, vector<32x32xf32>, vector<1x32xf32> -> vector<1x32xf32>
    %389 = vector.extract_strided_slice %343 {offsets = [32, 0], sizes = [32, 32], strides = [1, 1]} : vector<96x32xf32> to vector<32x32xf32>
    %cst_191 = arith.constant dense<0.000000e+00> : vector<1x32xf32>
    %390 = tpu.matmul %362, %389, %cst_191 {dimension_numbers = #tpu.dot_dimension_numbers<[1], [0], [0], [1], [0, 0, 1, 1], [], []>} : vector<1x32xf32>, vector<32x32xf32>, vector<1x32xf32> -> vector<1x32xf32>
    %391 = arith.addf %388, %390 : vector<1x32xf32>
    %392 = vector.extract_strided_slice %343 {offsets = [64, 0], sizes = [32, 32], strides = [1, 1]} : vector<96x32xf32> to vector<32x32xf32>
    %cst_192 = arith.constant dense<0.000000e+00> : vector<1x32xf32>
    %393 = tpu.matmul %386, %392, %cst_192 {dimension_numbers = #tpu.dot_dimension_numbers<[1], [0], [0], [1], [0, 0, 1, 1], [], []>} : vector<1x32xf32>, vector<32x32xf32>, vector<1x32xf32> -> vector<1x32xf32>
    %394 = arith.addf %391, %393 : vector<1x32xf32>
    %395 = arith.addf %394, %344 : vector<1x32xf32>
    %c0_193 = arith.constant 0 : index
    %c0_194 = arith.constant 0 : index
    %c0_195 = arith.constant 0 : index
    %396 = vector.load %arg20[%c0_193, %c0_194, %c0_195] : memref<1x2x32xf32, #tpu.memory_space<vmem>>, vector<1x1x32xf32>
    %397 = vector.shape_cast %396 : vector<1x1x32xf32> to vector<1x32xf32>
    %398 = vector.shape_cast %395 : vector<1x32xf32> to vector<1x1x32xf32>
    tpu.vector_store %arg20[%c0_193, %c0_194, %c0_195], %398 {strides = array<i32>} : memref<1x2x32xf32, #tpu.memory_space<vmem>>, vector<1x1x32xf32>,
    %399 = vector.extract_strided_slice %340 {offsets = [8, 0], sizes = [8, 32], strides = [1, 1]} : vector<16x32xf32> to vector<8x32xf32>
    %400 = vector.extract_strided_slice %5 {offsets = [8, 0], sizes = [8, 1], strides = [1, 1]} : vector<16x1xf32> to vector<8x1xf32>
    %cst_196 = arith.constant dense<0.000000e+00> : vector<1xf32>
    %401 = vector.multi_reduction <add>, %400, %cst_196 [0] : vector<8x1xf32> to vector<1xf32>
    %402 = vector.shape_cast %401 : vector<1xf32> to vector<1x1xf32>
    %403 = vector.broadcast %400 : vector<8x1xf32> to vector<8x32xf32>
    %404 = arith.mulf %399, %403 : vector<8x32xf32>
    %cst_197 = arith.constant dense<0.000000e+00> : vector<32xf32>
    %405 = vector.multi_reduction <add>, %404, %cst_197 [0] : vector<8x32xf32> to vector<32xf32>
    %406 = vector.shape_cast %405 : vector<32xf32> to vector<1x32xf32>
    %407 = vector.broadcast %402 : vector<1x1xf32> to vector<1x32xf32>
    %408 = arith.divf %406, %407 : vector<1x32xf32>
    %cst_198 = arith.constant 5.000000e-01 : f32
    %409 = vector.broadcast %cst_198 : f32 to vector<8x1xf32>
    %410 = arith.cmpf ogt, %400, %409 : vector<8x1xf32>
    %cst_199 = arith.constant -1.000000e+30 : f32
    %411 = vector.shape_cast %410 : vector<8x1xi1> to vector<8x1xi1>
    %412 = vector.broadcast %411 : vector<8x1xi1> to vector<8x32xi1>
    %413 = vector.broadcast %cst_199 : f32 to vector<8x32xf32>
    %414 = arith.select %412, %399, %413 : vector<8x32xi1>, vector<8x32xf32>
    %cst_200 = arith.constant dense<0xFF800000> : vector<32xf32>
    %415 = vector.multi_reduction <maximumf>, %414, %cst_200 [0] : vector<8x32xf32> to vector<32xf32>
    %416 = vector.shape_cast %415 : vector<32xf32> to vector<1x32xf32>
    %417 = vector.broadcast %341 : vector<1x32xf32> to vector<8x32xf32>
    %418 = arith.mulf %399, %417 : vector<8x32xf32>
    %cst_201 = arith.constant dense<0.000000e+00> : vector<8xf32>
    %419 = vector.multi_reduction <add>, %418, %cst_201 [1] : vector<8x32xf32> to vector<8xf32>
    %420 = vector.shape_cast %419 : vector<8xf32> to vector<8x1xf32>
    %421 = vector.broadcast %342 : vector<1x1xf32> to vector<8x1xf32>
    %422 = arith.addf %420, %421 : vector<8x1xf32>
    %cst_202 = arith.constant 5.000000e-01 : f32
    %423 = vector.broadcast %cst_202 : f32 to vector<8x1xf32>
    %424 = arith.cmpf ogt, %400, %423 : vector<8x1xf32>
    %cst_203 = arith.constant -1.000000e+30 : f32
    %425 = vector.broadcast %cst_203 : f32 to vector<8x1xf32>
    %426 = arith.select %424, %422, %425 : vector<8x1xi1>, vector<8x1xf32>
    %cst_204 = arith.constant dense<0xFF800000> : vector<1xf32>
    %427 = vector.multi_reduction <maximumf>, %426, %cst_204 [0] : vector<8x1xf32> to vector<1xf32>
    %428 = vector.shape_cast %427 : vector<1xf32> to vector<1x1xf32>
    %429 = vector.broadcast %428 : vector<1x1xf32> to vector<8x1xf32>
    %430 = arith.subf %426, %429 : vector<8x1xf32>
    %431 = math.exp %430 : vector<8x1xf32>
    %cst_205 = arith.constant dense<0.000000e+00> : vector<1xf32>
    %432 = vector.multi_reduction <add>, %431, %cst_205 [0] : vector<8x1xf32> to vector<1xf32>
    %433 = vector.shape_cast %432 : vector<1xf32> to vector<1x1xf32>
    %434 = tpu.reciprocal %433 {approx = true} : vector<1x1xf32> -> vector<1x1xf32>
    %435 = vector.broadcast %434 : vector<1x1xf32> to vector<8x1xf32>
    %436 = arith.mulf %431, %435 : vector<8x1xf32>
    %437 = vector.broadcast %436 : vector<8x1xf32> to vector<8x32xf32>
    %438 = arith.mulf %399, %437 : vector<8x32xf32>
    %cst_206 = arith.constant dense<0.000000e+00> : vector<32xf32>
    %439 = vector.multi_reduction <add>, %438, %cst_206 [0] : vector<8x32xf32> to vector<32xf32>
    %440 = vector.shape_cast %439 : vector<32xf32> to vector<1x32xf32>
    %441 = vector.extract_strided_slice %343 {offsets = [0, 0], sizes = [32, 32], strides = [1, 1]} : vector<96x32xf32> to vector<32x32xf32>
    %cst_207 = arith.constant dense<0.000000e+00> : vector<1x32xf32>
    %442 = tpu.matmul %408, %441, %cst_207 {dimension_numbers = #tpu.dot_dimension_numbers<[1], [0], [0], [1], [0, 0, 1, 1], [], []>} : vector<1x32xf32>, vector<32x32xf32>, vector<1x32xf32> -> vector<1x32xf32>
    %443 = vector.extract_strided_slice %343 {offsets = [32, 0], sizes = [32, 32], strides = [1, 1]} : vector<96x32xf32> to vector<32x32xf32>
    %cst_208 = arith.constant dense<0.000000e+00> : vector<1x32xf32>
    %444 = tpu.matmul %416, %443, %cst_208 {dimension_numbers = #tpu.dot_dimension_numbers<[1], [0], [0], [1], [0, 0, 1, 1], [], []>} : vector<1x32xf32>, vector<32x32xf32>, vector<1x32xf32> -> vector<1x32xf32>
    %445 = arith.addf %442, %444 : vector<1x32xf32>
    %446 = vector.extract_strided_slice %343 {offsets = [64, 0], sizes = [32, 32], strides = [1, 1]} : vector<96x32xf32> to vector<32x32xf32>
    %cst_209 = arith.constant dense<0.000000e+00> : vector<1x32xf32>
    %447 = tpu.matmul %440, %446, %cst_209 {dimension_numbers = #tpu.dot_dimension_numbers<[1], [0], [0], [1], [0, 0, 1, 1], [], []>} : vector<1x32xf32>, vector<32x32xf32>, vector<1x32xf32> -> vector<1x32xf32>
    %448 = arith.addf %445, %447 : vector<1x32xf32>
    %449 = arith.addf %448, %344 : vector<1x32xf32>
    %c0_210 = arith.constant 0 : index
    %c1_211 = arith.constant 1 : index
    %c0_212 = arith.constant 0 : index
    %450 = vector.load %arg20[%c0_210, %c1_211, %c0_212] : memref<1x2x32xf32, #tpu.memory_space<vmem>>, vector<1x1x32xf32>
    %451 = vector.shape_cast %450 : vector<1x1x32xf32> to vector<1x32xf32>
    %452 = vector.shape_cast %449 : vector<1x32xf32> to vector<1x1x32xf32>
    tpu.vector_store %arg20[%c0_210, %c1_211, %c0_212], %452 {strides = array<i32>} : memref<1x2x32xf32, #tpu.memory_space<vmem>>, vector<1x1x32xf32>,
    return
  }
  func.func @transform_0(%arg0: i32) -> (i32, i32, i32) {
    %c0_i32 = arith.constant 0 : i32
    %c0_i32_0 = arith.constant 0 : i32
    %c0_i32_1 = arith.constant 0 : i32
    return %arg0, %c0_i32, %c0_i32_0 : i32, i32, i32
  }
  func.func @transform_1(%arg0: i32) -> (i32, i32, i32) {
    %c0_i32 = arith.constant 0 : i32
    %c0_i32_0 = arith.constant 0 : i32
    %c0_i32_1 = arith.constant 0 : i32
    return %arg0, %c0_i32, %c0_i32_0 : i32, i32, i32
  }
  func.func @transform_2(%arg0: i32) -> (i32, i32, i32) {
    %c0_i32 = arith.constant 0 : i32
    %c0_i32_0 = arith.constant 0 : i32
    %c0_i32_1 = arith.constant 0 : i32
    return %arg0, %c0_i32, %c0_i32_0 : i32, i32, i32
  }
  func.func @transform_3(%arg0: i32) -> (i32, i32, i32) {
    %c0_i32 = arith.constant 0 : i32
    %c0_i32_0 = arith.constant 0 : i32
    %c0_i32_1 = arith.constant 0 : i32
    return %arg0, %c0_i32, %c0_i32_0 : i32, i32, i32
  }
  func.func @transform_4(%arg0: i32) -> (i32, i32, i32) {
    %c0_i32 = arith.constant 0 : i32
    %c0_i32_0 = arith.constant 0 : i32
    %c0_i32_1 = arith.constant 0 : i32
    return %arg0, %c0_i32, %c0_i32_0 : i32, i32, i32
  }
  func.func @transform_5(%arg0: i32) -> (i32, i32, i32, i32) {
    %c0_i32 = arith.constant 0 : i32
    %c0_i32_0 = arith.constant 0 : i32
    %c0_i32_1 = arith.constant 0 : i32
    %c0_i32_2 = arith.constant 0 : i32
    return %arg0, %c0_i32, %c0_i32_0, %c0_i32_1 : i32, i32, i32, i32
  }
  func.func @transform_6(%arg0: i32) -> (i32, i32, i32, i32) {
    %c0_i32 = arith.constant 0 : i32
    %c0_i32_0 = arith.constant 0 : i32
    %c0_i32_1 = arith.constant 0 : i32
    %c0_i32_2 = arith.constant 0 : i32
    return %arg0, %c0_i32, %c0_i32_0, %c0_i32_1 : i32, i32, i32, i32
  }
  func.func @transform_7(%arg0: i32) -> (i32, i32, i32, i32) {
    %c0_i32 = arith.constant 0 : i32
    %c0_i32_0 = arith.constant 0 : i32
    %c0_i32_1 = arith.constant 0 : i32
    %c0_i32_2 = arith.constant 0 : i32
    return %arg0, %c0_i32, %c0_i32_0, %c0_i32_1 : i32, i32, i32, i32
  }
  func.func @transform_8(%arg0: i32) -> (i32, i32, i32, i32) {
    %c0_i32 = arith.constant 0 : i32
    %c0_i32_0 = arith.constant 0 : i32
    %c0_i32_1 = arith.constant 0 : i32
    %c0_i32_2 = arith.constant 0 : i32
    return %arg0, %c0_i32, %c0_i32_0, %c0_i32_1 : i32, i32, i32, i32
  }
  func.func @transform_9(%arg0: i32) -> (i32, i32, i32, i32) {
    %c0_i32 = arith.constant 0 : i32
    %c0_i32_0 = arith.constant 0 : i32
    %c0_i32_1 = arith.constant 0 : i32
    %c0_i32_2 = arith.constant 0 : i32
    return %arg0, %c0_i32, %c0_i32_0, %c0_i32_1 : i32, i32, i32, i32
  }
  func.func @transform_10(%arg0: i32) -> (i32, i32, i32, i32) {
    %c0_i32 = arith.constant 0 : i32
    %c0_i32_0 = arith.constant 0 : i32
    %c0_i32_1 = arith.constant 0 : i32
    %c0_i32_2 = arith.constant 0 : i32
    return %arg0, %c0_i32, %c0_i32_0, %c0_i32_1 : i32, i32, i32, i32
  }
  func.func @transform_11(%arg0: i32) -> (i32, i32, i32, i32) {
    %c0_i32 = arith.constant 0 : i32
    %c0_i32_0 = arith.constant 0 : i32
    %c0_i32_1 = arith.constant 0 : i32
    %c0_i32_2 = arith.constant 0 : i32
    return %arg0, %c0_i32, %c0_i32_0, %c0_i32_1 : i32, i32, i32, i32
  }
  func.func @transform_12(%arg0: i32) -> (i32, i32, i32, i32) {
    %c0_i32 = arith.constant 0 : i32
    %c0_i32_0 = arith.constant 0 : i32
    %c0_i32_1 = arith.constant 0 : i32
    %c0_i32_2 = arith.constant 0 : i32
    return %arg0, %c0_i32, %c0_i32_0, %c0_i32_1 : i32, i32, i32, i32
  }
  func.func @transform_13(%arg0: i32) -> (i32, i32, i32, i32) {
    %c0_i32 = arith.constant 0 : i32
    %c0_i32_0 = arith.constant 0 : i32
    %c0_i32_1 = arith.constant 0 : i32
    %c0_i32_2 = arith.constant 0 : i32
    return %arg0, %c0_i32, %c0_i32_0, %c0_i32_1 : i32, i32, i32, i32
  }
  func.func @transform_14(%arg0: i32) -> (i32, i32, i32, i32) {
    %c0_i32 = arith.constant 0 : i32
    %c0_i32_0 = arith.constant 0 : i32
    %c0_i32_1 = arith.constant 0 : i32
    %c0_i32_2 = arith.constant 0 : i32
    return %arg0, %c0_i32, %c0_i32_0, %c0_i32_1 : i32, i32, i32, i32
  }
  func.func @transform_15(%arg0: i32) -> (i32, i32) {
    %c0_i32 = arith.constant 0 : i32
    %c0_i32_0 = arith.constant 0 : i32
    %c0_i32_1 = arith.constant 0 : i32
    return %c0_i32, %c0_i32_0 : i32, i32
  }
  func.func @transform_16(%arg0: i32) -> (i32, i32) {
    %c0_i32 = arith.constant 0 : i32
    %c0_i32_0 = arith.constant 0 : i32
    %c0_i32_1 = arith.constant 0 : i32
    return %c0_i32, %c0_i32_0 : i32, i32
  }
  func.func @transform_17(%arg0: i32) -> (i32, i32) {
    %c0_i32 = arith.constant 0 : i32
    %c0_i32_0 = arith.constant 0 : i32
    %c0_i32_1 = arith.constant 0 : i32
    return %c0_i32, %c0_i32_0 : i32, i32
  }
  func.func @transform_18(%arg0: i32) -> (i32, i32) {
    %c0_i32 = arith.constant 0 : i32
    %c0_i32_0 = arith.constant 0 : i32
    %c0_i32_1 = arith.constant 0 : i32
    return %c0_i32, %c0_i32_0 : i32, i32
  }
  func.func @transform_19(%arg0: i32) -> (i32, i32, i32) {
    %c0_i32 = arith.constant 0 : i32
    %c0_i32_0 = arith.constant 0 : i32
    %c0_i32_1 = arith.constant 0 : i32
    return %arg0, %c0_i32, %c0_i32_0 : i32, i32, i32
  }
}

</mosaic_0001>

<llo_original>
// kernel: bin_packing_transformer.1
$region0: #{bin_packing_transformer.1}
  #allocation0 [shape = 'u32[]', space=smem, size = 0x4, offset = 0x4, fixed_abs, tag = 'smem constant byte address 0x4 - core index']
  #allocation1 [shape = 'u32[72,128]{1,0:T(1,128)}', space=vmem, size = 0x9000, scoped, tag = 'internal scratch']
  #allocation2 [shape = 'f32[1,1]{1,0:T(1,128)S(1)}', space=vmem, size = 0x200, scoped, tag = 'scoped memory for bin_packing_transformer.1']
  %s0 = inlined_call_operand.vmem [shape: f32[2,16,6], index: 0, kind: input, shape index: {}]
  %s1 = inlined_call_operand.vmem [shape: f32[2,16,16], index: 1, kind: input, shape index: {}]
  %s2 = inlined_call_operand.vmem [shape: f32[2,16,1], index: 2, kind: input, shape index: {}]
  %s3 = inlined_call_operand.vmem [shape: f32[2,6,32], index: 3, kind: input, shape index: {}]
  %s4 = inlined_call_operand.vmem [shape: f32[2,1,32], index: 4, kind: input, shape index: {}]
  %s5 = inlined_call_operand.vmem [shape: f32[2,2,32,96], index: 5, kind: input, shape index: {}]
  %s6 = inlined_call_operand.vmem [shape: f32[2,2,1,96], index: 6, kind: input, shape index: {}]
  %s7 = inlined_call_operand.vmem [shape: f32[2,2,32,32], index: 7, kind: input, shape index: {}]
  %s8 = inlined_call_operand.vmem [shape: f32[2,2,1,32], index: 8, kind: input, shape index: {}]
  %s9 = inlined_call_operand.vmem [shape: f32[2,2,2,32], index: 9, kind: input, shape index: {}]
  %s10 = inlined_call_operand.vmem [shape: f32[2,2,32,64], index: 10, kind: input, shape index: {}]
  %s11 = inlined_call_operand.vmem [shape: f32[2,2,1,64], index: 11, kind: input, shape index: {}]
  %s12 = inlined_call_operand.vmem [shape: f32[2,2,64,32], index: 12, kind: input, shape index: {}]
  %s13 = inlined_call_operand.vmem [shape: f32[2,2,1,32], index: 13, kind: input, shape index: {}]
  %s14 = inlined_call_operand.vmem [shape: f32[2,2,2,32], index: 14, kind: input, shape index: {}]
  %s15 = inlined_call_operand.vmem [shape: f32[1,32], index: 15, kind: input, shape index: {}]
  %s16 = inlined_call_operand.<no memory space> [shape: f32[1,1], index: 16, kind: input, shape index: {}]
  %s17 = inlined_call_operand.vmem [shape: f32[96,32], index: 17, kind: input, shape index: {}]
  %s18 = inlined_call_operand.vmem [shape: f32[1,32], index: 18, kind: input, shape index: {}]
  %s19 = inlined_call_operand.vmem [shape: f32[2,2,32], index: 19, kind: output, shape index: {}]
  %s20 = sld [smem:[#allocation0]]
  $region109: #{bin_packing_transformer.1} parent=0
    _
  %s22 = ssub.s32 1, %s20
  %s23 = scalar_select 0, %s22, %s20
  %v24 = vstv %s16
  %25 = vst [vmem:[#allocation2] sm:$0x1] %v24
  loop: start=0, step=1, limit=4
  $region2: #{bin_packing_transformer.1} parent=0 // loop_pre_header
    _
  $region3: #{bin_packing_transformer.1} parent=0 // loop_header
    %s27 = sphi 0, %s31
    %p28 = scmp.ge.s32.totalorder %s27, 4
    %s37 = sphi 0, %s39
    %s40 = sphi 0, %s37
    %s41 = sphi 0, %s40
    %s57 = sphi 0, %s41
    %s63 = sphi 0, %s65
    %s66 = sphi 0, %s63
    %s67 = sphi 0, %s66
    %s83 = sphi 0, %s67
    %s89 = sphi 0, %s91
    %s92 = sphi 0, %s89
    %s93 = sphi 0, %s92
    %s109 = sphi 0, %s93
    %s115 = sphi 0, %s117
    %s118 = sphi 0, %s115
    %s119 = sphi 0, %s118
    %s135 = sphi 0, %s119
    %s141 = sphi 0, %s143
    %s144 = sphi 0, %s141
    %s145 = sphi 0, %s144
    %s161 = sphi 0, %s145
    %s167 = sphi 0, %s169
    %s170 = sphi 0, %s167
    %s171 = sphi 0, %s170
    %s187 = sphi 0, %s171
    %s193 = sphi 0, %s195
    %s196 = sphi 0, %s193
    %s197 = sphi 0, %s196
    %s213 = sphi 0, %s197
    %s219 = sphi 0, %s221
    %s222 = sphi 0, %s219
    %s223 = sphi 0, %s222
    %s239 = sphi 0, %s223
    %s245 = sphi 0, %s247
    %s248 = sphi 0, %s245
    %s249 = sphi 0, %s248
    %s265 = sphi 0, %s249
    %s271 = sphi 0, %s273
    %s274 = sphi 0, %s271
    %s275 = sphi 0, %s274
    %s291 = sphi 0, %s275
    %s297 = sphi 0, %s299
    %s300 = sphi 0, %s297
    %s301 = sphi 0, %s300
    %s317 = sphi 0, %s301
    %s323 = sphi 0, %s325
    %s326 = sphi 0, %s323
    %s327 = sphi 0, %s326
    %s343 = sphi 0, %s327
    %s349 = sphi 0, %s351
    %s352 = sphi 0, %s349
    %s353 = sphi 0, %s352
    %s369 = sphi 0, %s353
    %s375 = sphi 0, %s377
    %s378 = sphi 0, %s375
    %s379 = sphi 0, %s378
    %s395 = sphi 0, %s379
    %s401 = sphi 0, %s403
    %s404 = sphi 0, %s401
    %s405 = sphi 0, %s404
    %s421 = sphi 0, %s405
    %s425 = sphi 0, %s425
    %s427 = sphi 0, %s425
    %s428 = sphi 0, %s427
    %s442 = sphi 0, %s428
    %s446 = sphi 0, %s446
    %s448 = sphi 0, %s446
    %s449 = sphi 0, %s448
    %s463 = sphi 0, %s449
    %s467 = sphi 0, %s467
    %s469 = sphi 0, %s467
    %s470 = sphi 0, %s469
    %s484 = sphi 0, %s470
    %s488 = sphi 0, %s488
    %s490 = sphi 0, %s488
    %s491 = sphi 0, %s490
    %s505 = sphi 0, %s491
    %s511 = sphi 0, %s513
    %s514 = sphi 0, %s511
    %s515 = sphi 0, %s514
    %s531 = sphi 0, %s515
  $region4: #{bin_packing_transformer.1} parent=0 // loop_header_branch
    %30 = sbr.rel (%p28) target = $region8
  $region5: #{bin_packing_transformer.1} parent=0 // loop_body
    %s32 = ssub.s32 %s27, 1
    %s33 = ssub.s32 %s27, 2
    %s34 = sadd.s32 %s27, 1
    %s35 = ssub.s32 %s27, %s34
    %p36 = scmp.eq.s32.totalorder %s35, 0
    %s38 = sadd.s32 %s37, 1
    %s39 = scalar_select %p36, %s37, %s38
    %p42 = pneg %p36
    %p43 = scmp.eq.s32.totalorder %s27, 1
    %p44 = por %p42, %p43
    %p45 = scmp.ne.s32.totalorder %s37, %s40
    %p46 = scmp.eq.s32.totalorder %s27, 0
    %p47 = por %p45, %p46
    %p48 = scmp.ne.s32.totalorder %s37, %s40
    %p49 = scmp.eq.s32.totalorder %s32, 1
    %p50 = por %p48, %p49
    %p51 = scmp.ne.s32.totalorder %s40, %s41
    %p52 = scmp.eq.s32.totalorder %s32, 0
    %p53 = por %p51, %p52
    %p54 = scmp.ne.s32.totalorder %s40, %s41
    %p55 = scmp.eq.s32.totalorder %s33, 1
    %p56 = por %p54, %p55
    %p58 = scmp.ne.s32.totalorder %s41, %s57
    %p59 = scmp.eq.s32.totalorder %s33, 0
    %p60 = por %p58, %p59
    %s61 = ssub.s32 %s27, %s34
    %p62 = scmp.eq.s32.totalorder %s61, 0
    %s64 = sadd.s32 %s63, 1
    %s65 = scalar_select %p62, %s63, %s64
    %p68 = pneg %p62
    %p69 = scmp.eq.s32.totalorder %s27, 1
    %p70 = por %p68, %p69
    %p71 = scmp.ne.s32.totalorder %s63, %s66
    %p72 = scmp.eq.s32.totalorder %s27, 0
    %p73 = por %p71, %p72
    %p74 = scmp.ne.s32.totalorder %s63, %s66
    %p75 = scmp.eq.s32.totalorder %s32, 1
    %p76 = por %p74, %p75
    %p77 = scmp.ne.s32.totalorder %s66, %s67
    %p78 = scmp.eq.s32.totalorder %s32, 0
    %p79 = por %p77, %p78
    %p80 = scmp.ne.s32.totalorder %s66, %s67
    %p81 = scmp.eq.s32.totalorder %s33, 1
    %p82 = por %p80, %p81
    %p84 = scmp.ne.s32.totalorder %s67, %s83
    %p85 = scmp.eq.s32.totalorder %s33, 0
    %p86 = por %p84, %p85
    %s87 = ssub.s32 %s27, %s34
    %p88 = scmp.eq.s32.totalorder %s87, 0
    %s90 = sadd.s32 %s89, 1
    %s91 = scalar_select %p88, %s89, %s90
    %p94 = pneg %p88
    %p95 = scmp.eq.s32.totalorder %s27, 1
    %p96 = por %p94, %p95
    %p97 = scmp.ne.s32.totalorder %s89, %s92
    %p98 = scmp.eq.s32.totalorder %s27, 0
    %p99 = por %p97, %p98
    %p100 = scmp.ne.s32.totalorder %s89, %s92
    %p101 = scmp.eq.s32.totalorder %s32, 1
    %p102 = por %p100, %p101
    %p103 = scmp.ne.s32.totalorder %s92, %s93
    %p104 = scmp.eq.s32.totalorder %s32, 0
    %p105 = por %p103, %p104
    %p106 = scmp.ne.s32.totalorder %s92, %s93
    %p107 = scmp.eq.s32.totalorder %s33, 1
    %p108 = por %p106, %p107
    %p110 = scmp.ne.s32.totalorder %s93, %s109
    %p111 = scmp.eq.s32.totalorder %s33, 0
    %p112 = por %p110, %p111
    %s113 = ssub.s32 %s27, %s34
    %p114 = scmp.eq.s32.totalorder %s113, 0
    %s116 = sadd.s32 %s115, 1
    %s117 = scalar_select %p114, %s115, %s116
    %p120 = pneg %p114
    %p121 = scmp.eq.s32.totalorder %s27, 1
    %p122 = por %p120, %p121
    %p123 = scmp.ne.s32.totalorder %s115, %s118
    %p124 = scmp.eq.s32.totalorder %s27, 0
    %p125 = por %p123, %p124
    %p126 = scmp.ne.s32.totalorder %s115, %s118
    %p127 = scmp.eq.s32.totalorder %s32, 1
    %p128 = por %p126, %p127
    %p129 = scmp.ne.s32.totalorder %s118, %s119
    %p130 = scmp.eq.s32.totalorder %s32, 0
    %p131 = por %p129, %p130
    %p132 = scmp.ne.s32.totalorder %s118, %s119
    %p133 = scmp.eq.s32.totalorder %s33, 1
    %p134 = por %p132, %p133
    %p136 = scmp.ne.s32.totalorder %s119, %s135
    %p137 = scmp.eq.s32.totalorder %s33, 0
    %p138 = por %p136, %p137
    %s139 = ssub.s32 %s27, %s34
    %p140 = scmp.eq.s32.totalorder %s139, 0
    %s142 = sadd.s32 %s141, 1
    %s143 = scalar_select %p140, %s141, %s142
    %p146 = pneg %p140
    %p147 = scmp.eq.s32.totalorder %s27, 1
    %p148 = por %p146, %p147
    %p149 = scmp.ne.s32.totalorder %s141, %s144
    %p150 = scmp.eq.s32.totalorder %s27, 0
    %p151 = por %p149, %p150
    %p152 = scmp.ne.s32.totalorder %s141, %s144
    %p153 = scmp.eq.s32.totalorder %s32, 1
    %p154 = por %p152, %p153
    %p155 = scmp.ne.s32.totalorder %s144, %s145
    %p156 = scmp.eq.s32.totalorder %s32, 0
    %p157 = por %p155, %p156
    %p158 = scmp.ne.s32.totalorder %s144, %s145
    %p159 = scmp.eq.s32.totalorder %s33, 1
    %p160 = por %p158, %p159
    %p162 = scmp.ne.s32.totalorder %s145, %s161
    %p163 = scmp.eq.s32.totalorder %s33, 0
    %p164 = por %p162, %p163
    %s165 = ssub.s32 %s27, %s34
    %p166 = scmp.eq.s32.totalorder %s165, 0
    %s168 = sadd.s32 %s167, 1
    %s169 = scalar_select %p166, %s167, %s168
    %p172 = pneg %p166
    %p173 = scmp.eq.s32.totalorder %s27, 1
    %p174 = por %p172, %p173
    %p175 = scmp.ne.s32.totalorder %s167, %s170
    %p176 = scmp.eq.s32.totalorder %s27, 0
    %p177 = por %p175, %p176
    %p178 = scmp.ne.s32.totalorder %s167, %s170
    %p179 = scmp.eq.s32.totalorder %s32, 1
    %p180 = por %p178, %p179
    %p181 = scmp.ne.s32.totalorder %s170, %s171
    %p182 = scmp.eq.s32.totalorder %s32, 0
    %p183 = por %p181, %p182
    %p184 = scmp.ne.s32.totalorder %s170, %s171
    %p185 = scmp.eq.s32.totalorder %s33, 1
    %p186 = por %p184, %p185
    %p188 = scmp.ne.s32.totalorder %s171, %s187
    %p189 = scmp.eq.s32.totalorder %s33, 0
    %p190 = por %p188, %p189
    %s191 = ssub.s32 %s27, %s34
    %p192 = scmp.eq.s32.totalorder %s191, 0
    %s194 = sadd.s32 %s193, 1
    %s195 = scalar_select %p192, %s193, %s194
    %p198 = pneg %p192
    %p199 = scmp.eq.s32.totalorder %s27, 1
    %p200 = por %p198, %p199
    %p201 = scmp.ne.s32.totalorder %s193, %s196
    %p202 = scmp.eq.s32.totalorder %s27, 0
    %p203 = por %p201, %p202
    %p204 = scmp.ne.s32.totalorder %s193, %s196
    %p205 = scmp.eq.s32.totalorder %s32, 1
    %p206 = por %p204, %p205
    %p207 = scmp.ne.s32.totalorder %s196, %s197
    %p208 = scmp.eq.s32.totalorder %s32, 0
    %p209 = por %p207, %p208
    %p210 = scmp.ne.s32.totalorder %s196, %s197
    %p211 = scmp.eq.s32.totalorder %s33, 1
    %p212 = por %p210, %p211
    %p214 = scmp.ne.s32.totalorder %s197, %s213
    %p215 = scmp.eq.s32.totalorder %s33, 0
    %p216 = por %p214, %p215
    %s217 = ssub.s32 %s27, %s34
    %p218 = scmp.eq.s32.totalorder %s217, 0
    %s220 = sadd.s32 %s219, 1
    %s221 = scalar_select %p218, %s219, %s220
    %p224 = pneg %p218
    %p225 = scmp.eq.s32.totalorder %s27, 1
    %p226 = por %p224, %p225
    %p227 = scmp.ne.s32.totalorder %s219, %s222
    %p228 = scmp.eq.s32.totalorder %s27, 0
    %p229 = por %p227, %p228
    %p230 = scmp.ne.s32.totalorder %s219, %s222
    %p231 = scmp.eq.s32.totalorder %s32, 1
    %p232 = por %p230, %p231
    %p233 = scmp.ne.s32.totalorder %s222, %s223
    %p234 = scmp.eq.s32.totalorder %s32, 0
    %p235 = por %p233, %p234
    %p236 = scmp.ne.s32.totalorder %s222, %s223
    %p237 = scmp.eq.s32.totalorder %s33, 1
    %p238 = por %p236, %p237
    %p240 = scmp.ne.s32.totalorder %s223, %s239
    %p241 = scmp.eq.s32.totalorder %s33, 0
    %p242 = por %p240, %p241
    %s243 = ssub.s32 %s27, %s34
    %p244 = scmp.eq.s32.totalorder %s243, 0
    %s246 = sadd.s32 %s245, 1
    %s247 = scalar_select %p244, %s245, %s246
    %p250 = pneg %p244
    %p251 = scmp.eq.s32.totalorder %s27, 1
    %p252 = por %p250, %p251
    %p253 = scmp.ne.s32.totalorder %s245, %s248
    %p254 = scmp.eq.s32.totalorder %s27, 0
    %p255 = por %p253, %p254
    %p256 = scmp.ne.s32.totalorder %s245, %s248
    %p257 = scmp.eq.s32.totalorder %s32, 1
    %p258 = por %p256, %p257
    %p259 = scmp.ne.s32.totalorder %s248, %s249
    %p260 = scmp.eq.s32.totalorder %s32, 0
    %p261 = por %p259, %p260
    %p262 = scmp.ne.s32.totalorder %s248, %s249
    %p263 = scmp.eq.s32.totalorder %s33, 1
    %p264 = por %p262, %p263
    %p266 = scmp.ne.s32.totalorder %s249, %s265
    %p267 = scmp.eq.s32.totalorder %s33, 0
    %p268 = por %p266, %p267
    %s269 = ssub.s32 %s27, %s34
    %p270 = scmp.eq.s32.totalorder %s269, 0
    %s272 = sadd.s32 %s271, 1
    %s273 = scalar_select %p270, %s271, %s272
    %p276 = pneg %p270
    %p277 = scmp.eq.s32.totalorder %s27, 1
    %p278 = por %p276, %p277
    %p279 = scmp.ne.s32.totalorder %s271, %s274
    %p280 = scmp.eq.s32.totalorder %s27, 0
    %p281 = por %p279, %p280
    %p282 = scmp.ne.s32.totalorder %s271, %s274
    %p283 = scmp.eq.s32.totalorder %s32, 1
    %p284 = por %p282, %p283
    %p285 = scmp.ne.s32.totalorder %s274, %s275
    %p286 = scmp.eq.s32.totalorder %s32, 0
    %p287 = por %p285, %p286
    %p288 = scmp.ne.s32.totalorder %s274, %s275
    %p289 = scmp.eq.s32.totalorder %s33, 1
    %p290 = por %p288, %p289
    %p292 = scmp.ne.s32.totalorder %s275, %s291
    %p293 = scmp.eq.s32.totalorder %s33, 0
    %p294 = por %p292, %p293
    %s295 = ssub.s32 %s27, %s34
    %p296 = scmp.eq.s32.totalorder %s295, 0
    %s298 = sadd.s32 %s297, 1
    %s299 = scalar_select %p296, %s297, %s298
    %p302 = pneg %p296
    %p303 = scmp.eq.s32.totalorder %s27, 1
    %p304 = por %p302, %p303
    %p305 = scmp.ne.s32.totalorder %s297, %s300
    %p306 = scmp.eq.s32.totalorder %s27, 0
    %p307 = por %p305, %p306
    %p308 = scmp.ne.s32.totalorder %s297, %s300
    %p309 = scmp.eq.s32.totalorder %s32, 1
    %p310 = por %p308, %p309
    %p311 = scmp.ne.s32.totalorder %s300, %s301
    %p312 = scmp.eq.s32.totalorder %s32, 0
    %p313 = por %p311, %p312
    %p314 = scmp.ne.s32.totalorder %s300, %s301
    %p315 = scmp.eq.s32.totalorder %s33, 1
    %p316 = por %p314, %p315
    %p318 = scmp.ne.s32.totalorder %s301, %s317
    %p319 = scmp.eq.s32.totalorder %s33, 0
    %p320 = por %p318, %p319
    %s321 = ssub.s32 %s27, %s34
    %p322 = scmp.eq.s32.totalorder %s321, 0
    %s324 = sadd.s32 %s323, 1
    %s325 = scalar_select %p322, %s323, %s324
    %p328 = pneg %p322
    %p329 = scmp.eq.s32.totalorder %s27, 1
    %p330 = por %p328, %p329
    %p331 = scmp.ne.s32.totalorder %s323, %s326
    %p332 = scmp.eq.s32.totalorder %s27, 0
    %p333 = por %p331, %p332
    %p334 = scmp.ne.s32.totalorder %s323, %s326
    %p335 = scmp.eq.s32.totalorder %s32, 1
    %p336 = por %p334, %p335
    %p337 = scmp.ne.s32.totalorder %s326, %s327
    %p338 = scmp.eq.s32.totalorder %s32, 0
    %p339 = por %p337, %p338
    %p340 = scmp.ne.s32.totalorder %s326, %s327
    %p341 = scmp.eq.s32.totalorder %s33, 1
    %p342 = por %p340, %p341
    %p344 = scmp.ne.s32.totalorder %s327, %s343
    %p345 = scmp.eq.s32.totalorder %s33, 0
    %p346 = por %p344, %p345
    %s347 = ssub.s32 %s27, %s34
    %p348 = scmp.eq.s32.totalorder %s347, 0
    %s350 = sadd.s32 %s349, 1
    %s351 = scalar_select %p348, %s349, %s350
    %p354 = pneg %p348
    %p355 = scmp.eq.s32.totalorder %s27, 1
    %p356 = por %p354, %p355
    %p357 = scmp.ne.s32.totalorder %s349, %s352
    %p358 = scmp.eq.s32.totalorder %s27, 0
    %p359 = por %p357, %p358
    %p360 = scmp.ne.s32.totalorder %s349, %s352
    %p361 = scmp.eq.s32.totalorder %s32, 1
    %p362 = por %p360, %p361
    %p363 = scmp.ne.s32.totalorder %s352, %s353
    %p364 = scmp.eq.s32.totalorder %s32, 0
    %p365 = por %p363, %p364
    %p366 = scmp.ne.s32.totalorder %s352, %s353
    %p367 = scmp.eq.s32.totalorder %s33, 1
    %p368 = por %p366, %p367
    %p370 = scmp.ne.s32.totalorder %s353, %s369
    %p371 = scmp.eq.s32.totalorder %s33, 0
    %p372 = por %p370, %p371
    %s373 = ssub.s32 %s27, %s34
    %p374 = scmp.eq.s32.totalorder %s373, 0
    %s376 = sadd.s32 %s375, 1
    %s377 = scalar_select %p374, %s375, %s376
    %p380 = pneg %p374
    %p381 = scmp.eq.s32.totalorder %s27, 1
    %p382 = por %p380, %p381
    %p383 = scmp.ne.s32.totalorder %s375, %s378
    %p384 = scmp.eq.s32.totalorder %s27, 0
    %p385 = por %p383, %p384
    %p386 = scmp.ne.s32.totalorder %s375, %s378
    %p387 = scmp.eq.s32.totalorder %s32, 1
    %p388 = por %p386, %p387
    %p389 = scmp.ne.s32.totalorder %s378, %s379
    %p390 = scmp.eq.s32.totalorder %s32, 0
    %p391 = por %p389, %p390
    %p392 = scmp.ne.s32.totalorder %s378, %s379
    %p393 = scmp.eq.s32.totalorder %s33, 1
    %p394 = por %p392, %p393
    %p396 = scmp.ne.s32.totalorder %s379, %s395
    %p397 = scmp.eq.s32.totalorder %s33, 0
    %p398 = por %p396, %p397
    %s399 = ssub.s32 %s27, %s34
    %p400 = scmp.eq.s32.totalorder %s399, 0
    %s402 = sadd.s32 %s401, 1
    %s403 = scalar_select %p400, %s401, %s402
    %p406 = pneg %p400
    %p407 = scmp.eq.s32.totalorder %s27, 1
    %p408 = por %p406, %p407
    %p409 = scmp.ne.s32.totalorder %s401, %s404
    %p410 = scmp.eq.s32.totalorder %s27, 0
    %p411 = por %p409, %p410
    %p412 = scmp.ne.s32.totalorder %s401, %s404
    %p413 = scmp.eq.s32.totalorder %s32, 1
    %p414 = por %p412, %p413
    %p415 = scmp.ne.s32.totalorder %s404, %s405
    %p416 = scmp.eq.s32.totalorder %s32, 0
    %p417 = por %p415, %p416
    %p418 = scmp.ne.s32.totalorder %s404, %s405
    %p419 = scmp.eq.s32.totalorder %s33, 1
    %p420 = por %p418, %p419
    %p422 = scmp.ne.s32.totalorder %s405, %s421
    %p423 = scmp.eq.s32.totalorder %s33, 0
    %p424 = por %p422, %p423
    %s426 = sadd.s32 %s425, 1
    %p429 = scmp.eq.s32.totalorder %s27, 1
    %p430 = scmp.ne.s32.totalorder %s425, %s427
    %p431 = scmp.eq.s32.totalorder %s27, 0
    %p432 = por %p430, %p431
    %p433 = scmp.ne.s32.totalorder %s425, %s427
    %p434 = scmp.eq.s32.totalorder %s32, 1
    %p435 = por %p433, %p434
    %p436 = scmp.ne.s32.totalorder %s427, %s428
    %p437 = scmp.eq.s32.totalorder %s32, 0
    %p438 = por %p436, %p437
    %p439 = scmp.ne.s32.totalorder %s427, %s428
    %p440 = scmp.eq.s32.totalorder %s33, 1
    %p441 = por %p439, %p440
    %p443 = scmp.ne.s32.totalorder %s428, %s442
    %p444 = scmp.eq.s32.totalorder %s33, 0
    %p445 = por %p443, %p444
    %s447 = sadd.s32 %s446, 1
    %p450 = scmp.eq.s32.totalorder %s27, 1
    %p451 = scmp.ne.s32.totalorder %s446, %s448
    %p452 = scmp.eq.s32.totalorder %s27, 0
    %p453 = por %p451, %p452
    %p454 = scmp.ne.s32.totalorder %s446, %s448
    %p455 = scmp.eq.s32.totalorder %s32, 1
    %p456 = por %p454, %p455
    %p457 = scmp.ne.s32.totalorder %s448, %s449
    %p458 = scmp.eq.s32.totalorder %s32, 0
    %p459 = por %p457, %p458
    %p460 = scmp.ne.s32.totalorder %s448, %s449
    %p461 = scmp.eq.s32.totalorder %s33, 1
    %p462 = por %p460, %p461
    %p464 = scmp.ne.s32.totalorder %s449, %s463
    %p465 = scmp.eq.s32.totalorder %s33, 0
    %p466 = por %p464, %p465
    %s468 = sadd.s32 %s467, 1
    %p471 = scmp.eq.s32.totalorder %s27, 1
    %p472 = scmp.ne.s32.totalorder %s467, %s469
    %p473 = scmp.eq.s32.totalorder %s27, 0
    %p474 = por %p472, %p473
    %p475 = scmp.ne.s32.totalorder %s467, %s469
    %p476 = scmp.eq.s32.totalorder %s32, 1
    %p477 = por %p475, %p476
    %p478 = scmp.ne.s32.totalorder %s469, %s470
    %p479 = scmp.eq.s32.totalorder %s32, 0
    %p480 = por %p478, %p479
    %p481 = scmp.ne.s32.totalorder %s469, %s470
    %p482 = scmp.eq.s32.totalorder %s33, 1
    %p483 = por %p481, %p482
    %p485 = scmp.ne.s32.totalorder %s470, %s484
    %p486 = scmp.eq.s32.totalorder %s33, 0
    %p487 = por %p485, %p486
    %s489 = sadd.s32 %s488, 1
    %p492 = scmp.eq.s32.totalorder %s27, 1
    %p493 = scmp.ne.s32.totalorder %s488, %s490
    %p494 = scmp.eq.s32.totalorder %s27, 0
    %p495 = por %p493, %p494
    %p496 = scmp.ne.s32.totalorder %s488, %s490
    %p497 = scmp.eq.s32.totalorder %s32, 1
    %p498 = por %p496, %p497
    %p499 = scmp.ne.s32.totalorder %s490, %s491
    %p500 = scmp.eq.s32.totalorder %s32, 0
    %p501 = por %p499, %p500
    %p502 = scmp.ne.s32.totalorder %s490, %s491
    %p503 = scmp.eq.s32.totalorder %s33, 1
    %p504 = por %p502, %p503
    %p506 = scmp.ne.s32.totalorder %s491, %s505
    %p507 = scmp.eq.s32.totalorder %s33, 0
    %p508 = por %p506, %p507
    %s509 = ssub.s32 %s27, %s34
    %p510 = scmp.eq.s32.totalorder %s509, 0
    %s512 = sadd.s32 %s511, 1
    %s513 = scalar_select %p510, %s511, %s512
    %p516 = pneg %p510
    %p517 = scmp.eq.s32.totalorder %s27, 1
    %p518 = por %p516, %p517
    %p519 = scmp.ne.s32.totalorder %s511, %s514
    %p520 = scmp.eq.s32.totalorder %s27, 0
    %p521 = por %p519, %p520
    %p522 = scmp.ne.s32.totalorder %s511, %s514
    %p523 = scmp.eq.s32.totalorder %s32, 1
    %p524 = por %p522, %p523
    %p525 = scmp.ne.s32.totalorder %s514, %s515
    %p526 = scmp.eq.s32.totalorder %s32, 0
    %p527 = por %p525, %p526
    %p528 = scmp.ne.s32.totalorder %s514, %s515
    %p529 = scmp.eq.s32.totalorder %s33, 1
    %p530 = por %p528, %p529
    %p532 = scmp.ne.s32.totalorder %s515, %s531
    %p533 = scmp.eq.s32.totalorder %s33, 0
    %p534 = por %p532, %p533
    %p535 = scmp.le.s32.totalorder 1, %s27
    %p536 = scmp.lt.s32.totalorder %s27, 3
    %p537 = pnand %p535, %p536
    %p538 = pneg %p537
    // Predicated region
    $region9: #{bin_packing_transformer.1} parent=5 // pred_check
      _
    $region10: #{bin_packing_transformer.1} parent=5 // pred_check_branch
      %540 = sbr.rel (%p537) target = $region12
    $region11: #{bin_packing_transformer.1} parent=5 // pred_region
      %s541 = ssub.s32 %s27, 1
      // Predicated region
      $region13: #{bin_packing_transformer.1} parent=11 // pred_check
        %p542 = pneg %p438
      $region14: #{bin_packing_transformer.1} parent=11 // pred_check_branch
        %544 = sbr.rel (%p542) target = $region16
      $region15: #{bin_packing_transformer.1} parent=11 // pred_region
        _
      $region16: #{bin_packing_transformer.1} parent=11 // pred_fallthru
        _
      // Predicated region
      $region17: #{bin_packing_transformer.1} parent=11 // pred_check
        %p545 = pneg %p459
      $region18: #{bin_packing_transformer.1} parent=11 // pred_check_branch
        %547 = sbr.rel (%p545) target = $region20
      $region19: #{bin_packing_transformer.1} parent=11 // pred_region
        _
      $region20: #{bin_packing_transformer.1} parent=11 // pred_fallthru
        _
      // Predicated region
      $region21: #{bin_packing_transformer.1} parent=11 // pred_check
        %p548 = pneg %p480
      $region22: #{bin_packing_transformer.1} parent=11 // pred_check_branch
        %550 = sbr.rel (%p548) target = $region24
      $region23: #{bin_packing_transformer.1} parent=11 // pred_region
        _
      $region24: #{bin_packing_transformer.1} parent=11 // pred_fallthru
        _
      // Predicated region
      $region25: #{bin_packing_transformer.1} parent=11 // pred_check
        %p551 = pneg %p501
      $region26: #{bin_packing_transformer.1} parent=11 // pred_check_branch
        %553 = sbr.rel (%p551) target = $region28
      $region27: #{bin_packing_transformer.1} parent=11 // pred_region
        _
      $region28: #{bin_packing_transformer.1} parent=11 // pred_fallthru
        _
    $region12: #{bin_packing_transformer.1} parent=5 // pred_fallthru
      _
    %p554 = scmp.lt.s32.totalorder %s27, 2
    // Predicated region
    $region29: #{bin_packing_transformer.1} parent=5 // pred_check
      %p555 = pneg %p554
    $region30: #{bin_packing_transformer.1} parent=5 // pred_check_branch
      %557 = sbr.rel (%p555) target = $region32
    $region31: #{bin_packing_transformer.1} parent=5 // pred_region
      // Predicated region
      $region33: #{bin_packing_transformer.1} parent=31 // pred_check
        %p558 = pneg %p47
      $region34: #{bin_packing_transformer.1} parent=31 // pred_check_branch
        %560 = sbr.rel (%p558) target = $region36
      $region35: #{bin_packing_transformer.1} parent=31 // pred_region
        %p561 = scmp.lt.s32.totalorder %s27, 1
        %s562 = scalar_select %p561, %s27, 1
        %s563 = smul.addr %s562, 2
        %s564 = smul.addr %s563, 8
        %s565 = scalar_lea.vmem %s0, %s564
      $region36: #{bin_packing_transformer.1} parent=31 // pred_fallthru
        _
      // Predicated region
      $region37: #{bin_packing_transformer.1} parent=31 // pred_check
        %p566 = pneg %p73
      $region38: #{bin_packing_transformer.1} parent=31 // pred_check_branch
        %568 = sbr.rel (%p566) target = $region40
      $region39: #{bin_packing_transformer.1} parent=31 // pred_region
        %p569 = scmp.lt.s32.totalorder %s27, 1
        %s570 = scalar_select %p569, %s27, 1
        %s571 = smul.addr %s570, 2
        %s572 = smul.addr %s571, 8
        %s573 = scalar_lea.vmem %s1, %s572
      $region40: #{bin_packing_transformer.1} parent=31 // pred_fallthru
        _
      // Predicated region
      $region41: #{bin_packing_transformer.1} parent=31 // pred_check
        %p574 = pneg %p99
      $region42: #{bin_packing_transformer.1} parent=31 // pred_check_branch
        %576 = sbr.rel (%p574) target = $region44
      $region43: #{bin_packing_transformer.1} parent=31 // pred_region
        %p577 = scmp.lt.s32.totalorder %s27, 1
        %s578 = scalar_select %p577, %s27, 1
        %s579 = smul.addr %s578, 2
        %s580 = smul.addr %s579, 8
        %s581 = scalar_lea.vmem %s2, %s580
      $region44: #{bin_packing_transformer.1} parent=31 // pred_fallthru
        _
      // Predicated region
      $region45: #{bin_packing_transformer.1} parent=31 // pred_check
        %p582 = pneg %p125
      $region46: #{bin_packing_transformer.1} parent=31 // pred_check_branch
        %584 = sbr.rel (%p582) target = $region48
      $region47: #{bin_packing_transformer.1} parent=31 // pred_region
        %p585 = scmp.lt.s32.totalorder %s27, 1
        %s586 = scalar_select %p585, %s27, 1
        %s587 = smul.addr %s586, 8
        %s588 = scalar_lea.vmem %s3, %s587
      $region48: #{bin_packing_transformer.1} parent=31 // pred_fallthru
        _
      // Predicated region
      $region49: #{bin_packing_transformer.1} parent=31 // pred_check
        %p589 = pneg %p151
      $region50: #{bin_packing_transformer.1} parent=31 // pred_check_branch
        %591 = sbr.rel (%p589) target = $region52
      $region51: #{bin_packing_transformer.1} parent=31 // pred_region
        %p592 = scmp.lt.s32.totalorder %s27, 1
        %s593 = scalar_select %p592, %s27, 1
        %s594 = scalar_lea.vmem %s4, %s593
      $region52: #{bin_packing_transformer.1} parent=31 // pred_fallthru
        _
      // Predicated region
      $region53: #{bin_packing_transformer.1} parent=31 // pred_check
        %p595 = pneg %p177
      $region54: #{bin_packing_transformer.1} parent=31 // pred_check_branch
        %597 = sbr.rel (%p595) target = $region56
      $region55: #{bin_packing_transformer.1} parent=31 // pred_region
        %p598 = scmp.lt.s32.totalorder %s27, 1
        %s599 = scalar_select %p598, %s27, 1
        %s600 = smul.addr %s599, 8
        %s601 = smul.addr %s600, 8
        %s602 = scalar_lea.vmem %s5, %s601
      $region56: #{bin_packing_transformer.1} parent=31 // pred_fallthru
        _
      // Predicated region
      $region57: #{bin_packing_transformer.1} parent=31 // pred_check
        %p603 = pneg %p203
      $region58: #{bin_packing_transformer.1} parent=31 // pred_check_branch
        %605 = sbr.rel (%p603) target = $region60
      $region59: #{bin_packing_transformer.1} parent=31 // pred_region
        %p606 = scmp.lt.s32.totalorder %s27, 1
        %s607 = scalar_select %p606, %s27, 1
        %s608 = smul.addr %s607, 2
        %s609 = scalar_lea.vmem %s6, %s608
      $region60: #{bin_packing_transformer.1} parent=31 // pred_fallthru
        _
      // Predicated region
      $region61: #{bin_packing_transformer.1} parent=31 // pred_check
        %p610 = pneg %p229
      $region62: #{bin_packing_transformer.1} parent=31 // pred_check_branch
        %612 = sbr.rel (%p610) target = $region64
      $region63: #{bin_packing_transformer.1} parent=31 // pred_region
        %p613 = scmp.lt.s32.totalorder %s27, 1
        %s614 = scalar_select %p613, %s27, 1
        %s615 = smul.addr %s614, 8
        %s616 = smul.addr %s615, 8
        %s617 = scalar_lea.vmem %s7, %s616
      $region64: #{bin_packing_transformer.1} parent=31 // pred_fallthru
        _
      // Predicated region
      $region65: #{bin_packing_transformer.1} parent=31 // pred_check
        %p618 = pneg %p255
      $region66: #{bin_packing_transformer.1} parent=31 // pred_check_branch
        %620 = sbr.rel (%p618) target = $region68
      $region67: #{bin_packing_transformer.1} parent=31 // pred_region
        %p621 = scmp.lt.s32.totalorder %s27, 1
        %s622 = scalar_select %p621, %s27, 1
        %s623 = smul.addr %s622, 2
        %s624 = scalar_lea.vmem %s8, %s623
      $region68: #{bin_packing_transformer.1} parent=31 // pred_fallthru
        _
      // Predicated region
      $region69: #{bin_packing_transformer.1} parent=31 // pred_check
        %p625 = pneg %p281
      $region70: #{bin_packing_transformer.1} parent=31 // pred_check_branch
        %627 = sbr.rel (%p625) target = $region72
      $region71: #{bin_packing_transformer.1} parent=31 // pred_region
        %p628 = scmp.lt.s32.totalorder %s27, 1
        %s629 = scalar_select %p628, %s27, 1
        %s630 = smul.addr %s629, 2
        %s631 = smul.addr %s630, 2
        %s632 = scalar_lea.vmem %s9, %s631
      $region72: #{bin_packing_transformer.1} parent=31 // pred_fallthru
        _
      // Predicated region
      $region73: #{bin_packing_transformer.1} parent=31 // pred_check
        %p633 = pneg %p307
      $region74: #{bin_packing_transformer.1} parent=31 // pred_check_branch
        %635 = sbr.rel (%p633) target = $region76
      $region75: #{bin_packing_transformer.1} parent=31 // pred_region
        %p636 = scmp.lt.s32.totalorder %s27, 1
        %s637 = scalar_select %p636, %s27, 1
        %s638 = smul.addr %s637, 8
        %s639 = smul.addr %s638, 8
        %s640 = scalar_lea.vmem %s10, %s639
      $region76: #{bin_packing_transformer.1} parent=31 // pred_fallthru
        _
      // Predicated region
      $region77: #{bin_packing_transformer.1} parent=31 // pred_check
        %p641 = pneg %p333
      $region78: #{bin_packing_transformer.1} parent=31 // pred_check_branch
        %643 = sbr.rel (%p641) target = $region80
      $region79: #{bin_packing_transformer.1} parent=31 // pred_region
        %p644 = scmp.lt.s32.totalorder %s27, 1
        %s645 = scalar_select %p644, %s27, 1
        %s646 = smul.addr %s645, 2
        %s647 = scalar_lea.vmem %s11, %s646
      $region80: #{bin_packing_transformer.1} parent=31 // pred_fallthru
        _
      // Predicated region
      $region81: #{bin_packing_transformer.1} parent=31 // pred_check
        %p648 = pneg %p359
      $region82: #{bin_packing_transformer.1} parent=31 // pred_check_branch
        %650 = sbr.rel (%p648) target = $region84
      $region83: #{bin_packing_transformer.1} parent=31 // pred_region
        %p651 = scmp.lt.s32.totalorder %s27, 1
        %s652 = scalar_select %p651, %s27, 1
        %s653 = smul.addr %s652, 16
        %s654 = smul.addr %s653, 8
        %s655 = scalar_lea.vmem %s12, %s654
      $region84: #{bin_packing_transformer.1} parent=31 // pred_fallthru
        _
      // Predicated region
      $region85: #{bin_packing_transformer.1} parent=31 // pred_check
        %p656 = pneg %p385
      $region86: #{bin_packing_transformer.1} parent=31 // pred_check_branch
        %658 = sbr.rel (%p656) target = $region88
      $region87: #{bin_packing_transformer.1} parent=31 // pred_region
        %p659 = scmp.lt.s32.totalorder %s27, 1
        %s660 = scalar_select %p659, %s27, 1
        %s661 = smul.addr %s660, 2
        %s662 = scalar_lea.vmem %s13, %s661
      $region88: #{bin_packing_transformer.1} parent=31 // pred_fallthru
        _
      // Predicated region
      $region89: #{bin_packing_transformer.1} parent=31 // pred_check
        %p663 = pneg %p411
      $region90: #{bin_packing_transformer.1} parent=31 // pred_check_branch
        %665 = sbr.rel (%p663) target = $region92
      $region91: #{bin_packing_transformer.1} parent=31 // pred_region
        %p666 = scmp.lt.s32.totalorder %s27, 1
        %s667 = scalar_select %p666, %s27, 1
        %s668 = smul.addr %s667, 2
        %s669 = smul.addr %s668, 2
        %s670 = scalar_lea.vmem %s14, %s669
      $region92: #{bin_packing_transformer.1} parent=31 // pred_fallthru
        _
    $region32: #{bin_packing_transformer.1} parent=5 // pred_fallthru
      _
    %p671 = scmp.le.s32.totalorder 1, %s27
    %p672 = scmp.lt.s32.totalorder %s27, 3
    %p673 = pnand %p671, %p672
    %p674 = pneg %p673
    // Predicated region
    $region93: #{bin_packing_transformer.1} parent=5 // pred_check
      _
    $region94: #{bin_packing_transformer.1} parent=5 // pred_check_branch
      %676 = sbr.rel (%p673) target = $region96
    $region95: #{bin_packing_transformer.1} parent=5 // pred_region
      %s677 = ssub.s32 %s27, 1
      %p678 = scmp.lt.s32.totalorder %s32, 1
      %s679 = scalar_select %p678, %s32, 1
      %s680 = smul.addr %s679, 2
      %s681 = smul.addr %s680, 8
      %s682 = scalar_lea.vmem %s0, %s681
      %p683 = pneg %p53
      %p684 = pneg %p50
      %p685 = scmp.lt.s32.totalorder %s32, 1
      %s686 = scalar_select %p685, %s32, 1
      %s687 = smul.addr %s686, 2
      %s688 = smul.addr %s687, 8
      %s689 = scalar_lea.vmem %s1, %s688
      %p690 = pneg %p79
      %p691 = pneg %p76
      %p692 = scmp.lt.s32.totalorder %s32, 1
      %s693 = scalar_select %p692, %s32, 1
      %s694 = smul.addr %s693, 2
      %s695 = smul.addr %s694, 8
      %s696 = scalar_lea.vmem %s2, %s695
      %p697 = pneg %p105
      %p698 = pneg %p102
      %p699 = scmp.lt.s32.totalorder %s32, 1
      %s700 = scalar_select %p699, %s32, 1
      %s701 = smul.addr %s700, 8
      %s702 = scalar_lea.vmem %s3, %s701
      %p703 = pneg %p131
      %p704 = pneg %p128
      %p705 = scmp.lt.s32.totalorder %s32, 1
      %s706 = scalar_select %p705, %s32, 1
      %s707 = scalar_lea.vmem %s4, %s706
      %p708 = pneg %p157
      %p709 = pneg %p154
      %p710 = scmp.lt.s32.totalorder %s32, 1
      %s711 = scalar_select %p710, %s32, 1
      %s712 = smul.addr %s711, 8
      %s713 = smul.addr %s712, 8
      %s714 = scalar_lea.vmem %s5, %s713
      %p715 = pneg %p183
      %p716 = pneg %p180
      %p717 = scmp.lt.s32.totalorder %s32, 1
      %s718 = scalar_select %p717, %s32, 1
      %s719 = smul.addr %s718, 2
      %s720 = scalar_lea.vmem %s6, %s719
      %p721 = pneg %p209
      %p722 = pneg %p206
      %p723 = scmp.lt.s32.totalorder %s32, 1
      %s724 = scalar_select %p723, %s32, 1
      %s725 = smul.addr %s724, 8
      %s726 = smul.addr %s725, 8
      %s727 = scalar_lea.vmem %s7, %s726
      %p728 = pneg %p235
      %p729 = pneg %p232
      %p730 = scmp.lt.s32.totalorder %s32, 1
      %s731 = scalar_select %p730, %s32, 1
      %s732 = smul.addr %s731, 2
      %s733 = scalar_lea.vmem %s8, %s732
      %p734 = pneg %p261
      %p735 = pneg %p258
      %p736 = scmp.lt.s32.totalorder %s32, 1
      %s737 = scalar_select %p736, %s32, 1
      %s738 = smul.addr %s737, 2
      %s739 = smul.addr %s738, 2
      %s740 = scalar_lea.vmem %s9, %s739
      %p741 = pneg %p287
      %p742 = pneg %p284
      %p743 = scmp.lt.s32.totalorder %s32, 1
      %s744 = scalar_select %p743, %s32, 1
      %s745 = smul.addr %s744, 8
      %s746 = smul.addr %s745, 8
      %s747 = scalar_lea.vmem %s10, %s746
      %p748 = pneg %p313
      %p749 = pneg %p310
      %p750 = scmp.lt.s32.totalorder %s32, 1
      %s751 = scalar_select %p750, %s32, 1
      %s752 = smul.addr %s751, 2
      %s753 = scalar_lea.vmem %s11, %s752
      %p754 = pneg %p339
      %p755 = pneg %p336
      %p756 = scmp.lt.s32.totalorder %s32, 1
      %s757 = scalar_select %p756, %s32, 1
      %s758 = smul.addr %s757, 16
      %s759 = smul.addr %s758, 8
      %s760 = scalar_lea.vmem %s12, %s759
      %p761 = pneg %p365
      %p762 = pneg %p362
      %p763 = scmp.lt.s32.totalorder %s32, 1
      %s764 = scalar_select %p763, %s32, 1
      %s765 = smul.addr %s764, 2
      %s766 = scalar_lea.vmem %s13, %s765
      %p767 = pneg %p391
      %p768 = pneg %p388
      %p769 = scmp.lt.s32.totalorder %s32, 1
      %s770 = scalar_select %p769, %s32, 1
      %s771 = smul.addr %s770, 2
      %s772 = smul.addr %s771, 2
      %s773 = scalar_lea.vmem %s14, %s772
      %p774 = pneg %p417
      %p775 = pneg %p414
      %p776 = pneg %p438
      %p777 = pneg %p435
      %p778 = pneg %p459
      %p779 = pneg %p456
      %p780 = pneg %p480
      %p781 = pneg %p477
      %p782 = pneg %p501
      %p783 = pneg %p498
      %p784 = pneg %p527
      %p785 = pneg %p524
      %p786 = scmp.lt.s32.totalorder %s32, 1
      %s787 = scalar_select %p786, %s32, 1
      %s788 = smul.addr %s787, 2
      %s789 = scalar_lea.vmem %s19, %s788
      %p790 = scmp.lt.s32.totalorder %s32, 1
      %s791 = scalar_select %p790, %s32, 1
      %s792 = smul.addr %s791, 2
      %s793 = smul.addr %s792, 8
      %s794 = scalar_lea.vmem %s0, %s793
      %p795 = scmp.lt.s32.totalorder %s32, 1
      %s796 = scalar_select %p795, %s32, 1
      %s797 = smul.addr %s796, 2
      %s798 = smul.addr %s797, 8
      %s799 = scalar_lea.vmem %s1, %s798
      %p800 = scmp.lt.s32.totalorder %s32, 1
      %s801 = scalar_select %p800, %s32, 1
      %s802 = smul.addr %s801, 2
      %s803 = smul.addr %s802, 8
      %s804 = scalar_lea.vmem %s2, %s803
      %p805 = scmp.lt.s32.totalorder %s32, 1
      %s806 = scalar_select %p805, %s32, 1
      %s807 = smul.addr %s806, 8
      %s808 = scalar_lea.vmem %s3, %s807
      %p809 = scmp.lt.s32.totalorder %s32, 1
      %s810 = scalar_select %p809, %s32, 1
      %s811 = scalar_lea.vmem %s4, %s810
      %p812 = scmp.lt.s32.totalorder %s32, 1
      %s813 = scalar_select %p812, %s32, 1
      %s814 = smul.addr %s813, 8
      %s815 = smul.addr %s814, 8
      %s816 = scalar_lea.vmem %s5, %s815
      %p817 = scmp.lt.s32.totalorder %s32, 1
      %s818 = scalar_select %p817, %s32, 1
      %s819 = smul.addr %s818, 2
      %s820 = scalar_lea.vmem %s6, %s819
      %p821 = scmp.lt.s32.totalorder %s32, 1
      %s822 = scalar_select %p821, %s32, 1
      %s823 = smul.addr %s822, 8
      %s824 = smul.addr %s823, 8
      %s825 = scalar_lea.vmem %s7, %s824
      %p826 = scmp.lt.s32.totalorder %s32, 1
      %s827 = scalar_select %p826, %s32, 1
      %s828 = smul.addr %s827, 2
      %s829 = scalar_lea.vmem %s8, %s828
      %p830 = scmp.lt.s32.totalorder %s32, 1
      %s831 = scalar_select %p830, %s32, 1
      %s832 = smul.addr %s831, 2
      %s833 = smul.addr %s832, 2
      %s834 = scalar_lea.vmem %s9, %s833
      %p835 = scmp.lt.s32.totalorder %s32, 1
      %s836 = scalar_select %p835, %s32, 1
      %s837 = smul.addr %s836, 8
      %s838 = smul.addr %s837, 8
      %s839 = scalar_lea.vmem %s10, %s838
      %p840 = scmp.lt.s32.totalorder %s32, 1
      %s841 = scalar_select %p840, %s32, 1
      %s842 = smul.addr %s841, 2
      %s843 = scalar_lea.vmem %s11, %s842
      %p844 = scmp.lt.s32.totalorder %s32, 1
      %s845 = scalar_select %p844, %s32, 1
      %s846 = smul.addr %s845, 16
      %s847 = smul.addr %s846, 8
      %s848 = scalar_lea.vmem %s12, %s847
      %p849 = scmp.lt.s32.totalorder %s32, 1
      %s850 = scalar_select %p849, %s32, 1
      %s851 = smul.addr %s850, 2
      %s852 = scalar_lea.vmem %s13, %s851
      %p853 = scmp.lt.s32.totalorder %s32, 1
      %s854 = scalar_select %p853, %s32, 1
      %s855 = smul.addr %s854, 2
      %s856 = smul.addr %s855, 2
      %s857 = scalar_lea.vmem %s14, %s856
      %p858 = scmp.lt.s32.totalorder %s32, 1
      %s859 = scalar_select %p858, %s32, 1
      %s860 = smul.addr %s859, 2
      %s861 = scalar_lea.vmem %s19, %s860
      %v862 = vld [vmem:[%s794] sm:$0xff]
      %v863 = vld [vmem:[%s794 + $0x8] sm:$0xff]
      %v864 = vld [vmem:[%s799] sm:$0xff]
      %v865 = vld [vmem:[%s799 + $0x8] sm:$0xff]
      %v866 = vld [vmem:[%s804] sm:$0xff]
      %v867 = vld [vmem:[%s804 + $0x8] sm:$0xff]
      %v868 = vld [vmem:[%s808] sm:$0x3f]
      %v869 = vld [vmem:[%s811] sm:$0x1]
      %v871 = vperm.slane %v869, 0
      %vm873 = vcmask 48128
      %v875 = vsel %vm873, %v862, 0
      %v878 = vsel %vm873, %v863, 0
      %vm880 = vcmask 1045504
      %v882 = vsel %vm880, %v868, 0
      %884 = vmatpush.msra.mxu0 0.0
      %885 = vmatpush.msra.mxu0 0.0
      %886 = vmatpush.msra.mxu0 0.0
      %887 = vmatpush.msra.mxu0 0.0
      %888 = vmatpush.msra.mxu0 0.0
      %889 = vmatpush.msra.mxu0 0.0
      %890 = vmatpush.msra.mxu0 0.0
      %891 = vmatpush.msra.mxu0 0.0
      %892 = vmatpush.msra.mxu0 0.0
      %893 = vmatpush.msra.mxu0 0.0
      %894 = vmatpush.msra.mxu0 0.0
      %895 = vmatpush.msra.mxu0 0.0
      %896 = vmatpush.msra.mxu0 0.0
      %897 = vmatpush.msra.mxu0 0.0
      %898 = vmatpush.msra.mxu0 0.0
      %899 = vmatpush.msra.mxu0 %v882
      %900 = vmatmul.f32.gmra.mxu0 %v875
      %v901 = vpop.f32.mrf.mxu0
      %v902 = vadd.f32 %v871, %v901
      %903 = vmatmul.f32.gmra.mxu0 %v878
      %v904 = vpop.f32.mrf.mxu0
      %v905 = vadd.f32 %v871, %v904
      %906 = vdwg.mxu0
      %v907 = vld [vmem:[%s816] sm:$0xff]
      %v908 = vld [vmem:[%s816 + $0x8] sm:$0xff]
      %v909 = vld [vmem:[%s816 + $0x10] sm:$0xff]
      %v910 = vld [vmem:[%s816 + $0x18] sm:$0xff]
      %v911 = vld [vmem:[%s820] sm:$0x1]
      %v913 = vperm.slane %v911, 0
      %vm915 = vcmask 261120
      %v917 = vsel %vm915, %v902, 0
      %v920 = vsel %vm915, %v905, 0
      %922 = vmatpush.msra.mxu0 0.0
      %923 = vmatpush.msra.mxu0 0.0
      %924 = vmatpush.msra.mxu0 0.0
      %925 = vmatpush.msra.mxu0 0.0
      %926 = vmatpush.msra.mxu0 0.0
      %927 = vmatpush.msra.mxu0 0.0
      %928 = vmatpush.msra.mxu0 0.0
      %929 = vmatpush.msra.mxu0 0.0
      %930 = vmatpush.msra.mxu0 0.0
      %931 = vmatpush.msra.mxu0 0.0
      %932 = vmatpush.msra.mxu0 0.0
      %933 = vmatpush.msra.mxu0 0.0
      %934 = vmatpush.msra.mxu0 %v910
      %935 = vmatpush.msra.mxu0 %v909
      %936 = vmatpush.msra.mxu0 %v908
      %937 = vmatpush.msra.mxu0 %v907
      %938 = vmatmul.f32.gmra.mxu0 %v917
      %v939 = vpop.f32.mrf.mxu0
      %v940 = vadd.f32 %v913, %v939
      %941 = vmatmul.f32.gmra.mxu0 %v920
      %v942 = vpop.f32.mrf.mxu0
      %v943 = vadd.f32 %v913, %v942
      %944 = vdwg.mxu0
      %v945 = vld [vmem:[%s825] sm:$0xff]
      %v946 = vld [vmem:[%s825 + $0x8] sm:$0xff]
      %v947 = vld [vmem:[%s825 + $0x10] sm:$0xff]
      %v948 = vld [vmem:[%s825 + $0x18] sm:$0xff]
      %951 = vrot.lane.b32.xlu0 %v940, 96
      %v952 = vpop.permute.xlu0 %951
      %953 = vrot.lane.b32.xlu0 %v943, 96
      %v954 = vpop.permute.xlu0 %953
      %vm955 = vcmask 64512
      %v956 = vsel %vm955, %v940, 0
      %v958 = vsel %vm955, %v943, 0
      %v960 = vsel %vm955, %v952, 0
      %v962 = vsel %vm955, %v954, 0
      %964 = vmatpush.xpose.msra.mxu0 0.0
      %965 = vmatpush.xpose.msra.mxu0 0.0
      %966 = vmatpush.xpose.msra.mxu0 0.0
      %967 = vmatpush.xpose.msra.mxu0 0.0
      %968 = vmatpush.xpose.msra.mxu0 0.0
      %969 = vmatpush.xpose.msra.mxu0 0.0
      %970 = vmatpush.xpose.msra.mxu0 0.0
      %971 = vmatpush.xpose.msra.mxu0 0.0
      %972 = vmatpush.xpose.msra.mxu0 0.0
      %973 = vmatpush.xpose.msra.mxu0 0.0
      %974 = vmatpush.xpose.msra.mxu0 0.0
      %975 = vmatpush.xpose.msra.mxu0 0.0
      %976 = vmatpush.xpose.msra.mxu0 0.0
      %977 = vmatpush.xpose.msra.mxu0 0.0
      %978 = vmatpush.xpose.msra.mxu0 %v962
      %979 = vmatpush.xpose.msra.mxu0 %v960
      %980 = vmatmul.f32.gmra.mxu0 %v956
      %v981 = vpop.f32.mrf.mxu0
      %v982 = vadd.f32 0.0, %v981
      %983 = vmatmul.f32.gmra.mxu0 %v958
      %v984 = vpop.f32.mrf.mxu0
      %v985 = vadd.f32 0.0, %v984
      %986 = vdwg.mxu0
      %v987 = vmul.f32 %v982, 0.35355338
      %v988 = vmul.f32 %v985, 0.35355338
      %v989 = vadd.f32 %v987, %v864
      %v990 = vadd.f32 %v988, %v865
      %vm991 = vcmask 130048
      %v992 = vsel %vm991, %v989, -inf
      %993 = vmax.xlane.f32.xlu0 %v992
      %v994 = vpop.xlane.xlu0 %993
      %v995 = vsel %vm991, %v990, -inf
      %996 = vmax.xlane.f32.xlu0 %v995
      %v997 = vpop.xlane.xlu0 %996
      %v998 = vsub.f32 %v989, %v994
      %v999 = vsub.f32 %v990, %v997
      %v1000 = vmul.f32 %v998, 1.442695
      %v1001 = vpow.pop %v1000
      %v1002 = vmul.f32 %v999, 1.442695
      %v1003 = vpow.pop %v1002
      %v1004 = vsel %vm991, %v1001, 0.0
      %1005 = vadd.xlane.f32.xlu0 %v1004
      %v1006 = vpop.xlane.xlu0 %1005
      %v1007 = vsel %vm991, %v1003, 0.0
      %1008 = vadd.xlane.f32.xlu0 %v1007
      %v1009 = vpop.xlane.xlu0 %1008
      %v1010 = vrcp.pop %v1006
      %v1011 = vrcp.pop %v1009
      %v1012 = vmul.f32 %v1001, %v1010
      %v1013 = vmul.f32 %v1003, %v1011
      %1014 = vrot.lane.b32.xlu0 %v940, 64
      %v1015 = vpop.permute.xlu0 %1014
      %1016 = vrot.lane.b32.xlu0 %v943, 64
      %v1017 = vpop.permute.xlu0 %1016
      %v1021 = vsel %vm991, %v1012, 0
      %v1024 = vsel %vm991, %v1013, 0
      %1026 = vmatpush.msra.mxu0 0.0
      %1027 = vmatpush.msra.mxu0 0.0
      %1028 = vmatpush.msra.mxu0 0.0
      %1029 = vmatpush.msra.mxu0 0.0
      %1030 = vmatpush.msra.mxu0 0.0
      %1031 = vmatpush.msra.mxu0 0.0
      %1032 = vmatpush.msra.mxu0 0.0
      %1033 = vmatpush.msra.mxu0 0.0
      %1034 = vmatpush.msra.mxu0 0.0
      %1035 = vmatpush.msra.mxu0 0.0
      %1036 = vmatpush.msra.mxu0 0.0
      %1037 = vmatpush.msra.mxu0 0.0
      %1038 = vmatpush.msra.mxu0 0.0
      %1039 = vmatpush.msra.mxu0 0.0
      %1040 = vmatpush.msra.mxu0 %v1017
      %1041 = vmatpush.msra.mxu0 %v1015
      %1042 = vmatmul.f32.gmra.mxu0 %v1021
      %v1043 = vpop.f32.mrf.mxu0
      %v1044 = vadd.f32 0.0, %v1043
      %1045 = vmatmul.f32.gmra.mxu0 %v1024
      %v1046 = vpop.f32.mrf.mxu0
      %v1047 = vadd.f32 0.0, %v1046
      %1048 = vdwg.mxu0
      %1049 = vrot.lane.b32.xlu0 %v940, 120
      %v1050 = vpop.permute.xlu0 %1049
      %1051 = vrot.lane.b32.xlu0 %v943, 120
      %v1052 = vpop.permute.xlu0 %1051
      %1053 = vrot.lane.b32.xlu0 %v940, 88
      %v1054 = vpop.permute.xlu0 %1053
      %1055 = vrot.lane.b32.xlu0 %v943, 88
      %v1056 = vpop.permute.xlu0 %1055
      %v1057 = vsel %vm955, %v1050, 0
      %v1059 = vsel %vm955, %v1052, 0
      %v1061 = vsel %vm955, %v1054, 0
      %v1063 = vsel %vm955, %v1056, 0
      %1065 = vmatpush.xpose.msra.mxu0 0.0
      %1066 = vmatpush.xpose.msra.mxu0 0.0
      %1067 = vmatpush.xpose.msra.mxu0 0.0
      %1068 = vmatpush.xpose.msra.mxu0 0.0
      %1069 = vmatpush.xpose.msra.mxu0 0.0
      %1070 = vmatpush.xpose.msra.mxu0 0.0
      %1071 = vmatpush.xpose.msra.mxu0 0.0
      %1072 = vmatpush.xpose.msra.mxu0 0.0
      %1073 = vmatpush.xpose.msra.mxu0 0.0
      %1074 = vmatpush.xpose.msra.mxu0 0.0
      %1075 = vmatpush.xpose.msra.mxu0 0.0
      %1076 = vmatpush.xpose.msra.mxu0 0.0
      %1077 = vmatpush.xpose.msra.mxu0 0.0
      %1078 = vmatpush.xpose.msra.mxu0 0.0
      %1079 = vmatpush.xpose.msra.mxu0 %v1063
      %1080 = vmatpush.xpose.msra.mxu0 %v1061
      %1081 = vmatmul.f32.gmra.mxu0 %v1057
      %v1082 = vpop.f32.mrf.mxu0
      %v1083 = vadd.f32 0.0, %v1082
      %1084 = vmatmul.f32.gmra.mxu0 %v1059
      %v1085 = vpop.f32.mrf.mxu0
      %v1086 = vadd.f32 0.0, %v1085
      %1087 = vdwg.mxu0
      %v1088 = vmul.f32 %v1083, 0.35355338
      %v1089 = vmul.f32 %v1086, 0.35355338
      %v1090 = vadd.f32 %v1088, %v864
      %v1091 = vadd.f32 %v1089, %v865
      %v1092 = vsel %vm991, %v1090, -inf
      %1093 = vmax.xlane.f32.xlu0 %v1092
      %v1094 = vpop.xlane.xlu0 %1093
      %v1095 = vsel %vm991, %v1091, -inf
      %1096 = vmax.xlane.f32.xlu0 %v1095
      %v1097 = vpop.xlane.xlu0 %1096
      %v1098 = vsub.f32 %v1090, %v1094
      %v1099 = vsub.f32 %v1091, %v1097
      %v1100 = vmul.f32 %v1098, 1.442695
      %v1101 = vpow.pop %v1100
      %v1102 = vmul.f32 %v1099, 1.442695
      %v1103 = vpow.pop %v1102
      %v1104 = vsel %vm991, %v1101, 0.0
      %1105 = vadd.xlane.f32.xlu0 %v1104
      %v1106 = vpop.xlane.xlu0 %1105
      %v1107 = vsel %vm991, %v1103, 0.0
      %1108 = vadd.xlane.f32.xlu0 %v1107
      %v1109 = vpop.xlane.xlu0 %1108
      %v1110 = vrcp.pop %v1106
      %v1111 = vrcp.pop %v1109
      %v1112 = vmul.f32 %v1101, %v1110
      %v1113 = vmul.f32 %v1103, %v1111
      %1114 = vrot.lane.b32.xlu0 %v940, 56
      %v1115 = vpop.permute.xlu0 %1114
      %1116 = vrot.lane.b32.xlu0 %v943, 56
      %v1117 = vpop.permute.xlu0 %1116
      %v1121 = vsel %vm991, %v1112, 0
      %v1124 = vsel %vm991, %v1113, 0
      %1126 = vmatpush.msra.mxu0 0.0
      %1127 = vmatpush.msra.mxu0 0.0
      %1128 = vmatpush.msra.mxu0 0.0
      %1129 = vmatpush.msra.mxu0 0.0
      %1130 = vmatpush.msra.mxu0 0.0
      %1131 = vmatpush.msra.mxu0 0.0
      %1132 = vmatpush.msra.mxu0 0.0
      %1133 = vmatpush.msra.mxu0 0.0
      %1134 = vmatpush.msra.mxu0 0.0
      %1135 = vmatpush.msra.mxu0 0.0
      %1136 = vmatpush.msra.mxu0 0.0
      %1137 = vmatpush.msra.mxu0 0.0
      %1138 = vmatpush.msra.mxu0 0.0
      %1139 = vmatpush.msra.mxu0 0.0
      %1140 = vmatpush.msra.mxu0 %v1117
      %1141 = vmatpush.msra.mxu0 %v1115
      %1142 = vmatmul.f32.gmra.mxu0 %v1121
      %v1143 = vpop.f32.mrf.mxu0
      %v1144 = vadd.f32 0.0, %v1143
      %1145 = vmatmul.f32.gmra.mxu0 %v1124
      %v1146 = vpop.f32.mrf.mxu0
      %v1147 = vadd.f32 0.0, %v1146
      %1148 = vdwg.mxu0
      %v1150 = vsel %vm955, %v1144, 0
      %v1153 = vsel %vm955, %v1147, 0
      %1155 = vmatpush.msra.mxu0 0.0
      %1156 = vmatpush.msra.mxu0 0.0
      %1157 = vmatpush.msra.mxu0 0.0
      %1158 = vmatpush.msra.mxu0 0.0
      %1159 = vmatpush.msra.mxu0 0.0
      %1160 = vmatpush.msra.mxu0 0.0
      %1161 = vmatpush.msra.mxu0 0.0
      %1162 = vmatpush.msra.mxu0 0.0
      %1163 = vmatpush.msra.mxu0 0.0
      %1164 = vmatpush.msra.mxu0 0.0
      %1165 = vmatpush.msra.mxu0 0.0
      %1166 = vmatpush.msra.mxu0 0.0
      %1167 = vmatpush.msra.mxu0 0.0
      %1168 = vmatpush.msra.mxu0 0.0
      %1169 = vmatpush.msra.mxu0 0.0
      %1170 = vmatpush.msra.mxu0 %v946
      %1171 = vmatmul.f32.gmra.mxu0 %v1150
      %v1172 = vpop.f32.mrf.mxu0
      %v1173 = vadd.f32 0.0, %v1172
      %1174 = vmatmul.f32.gmra.mxu0 %v1153
      %v1175 = vpop.f32.mrf.mxu0
      %v1176 = vadd.f32 0.0, %v1175
      %1177 = vdwg.mxu0
      %v1179 = vsel %vm955, %v1044, 0
      %v1182 = vsel %vm955, %v1047, 0
      %1184 = vmatpush.msra.mxu0 0.0
      %1185 = vmatpush.msra.mxu0 0.0
      %1186 = vmatpush.msra.mxu0 0.0
      %1187 = vmatpush.msra.mxu0 0.0
      %1188 = vmatpush.msra.mxu0 0.0
      %1189 = vmatpush.msra.mxu0 0.0
      %1190 = vmatpush.msra.mxu0 0.0
      %1191 = vmatpush.msra.mxu0 0.0
      %1192 = vmatpush.msra.mxu0 0.0
      %1193 = vmatpush.msra.mxu0 0.0
      %1194 = vmatpush.msra.mxu0 0.0
      %1195 = vmatpush.msra.mxu0 0.0
      %1196 = vmatpush.msra.mxu0 0.0
      %1197 = vmatpush.msra.mxu0 0.0
      %1198 = vmatpush.msra.mxu0 0.0
      %1199 = vmatpush.msra.mxu0 %v945
      %1200 = vmatmul.f32.gmra.mxu0 %v1179
      %v1201 = vpop.f32.mrf.mxu0
      %v1202 = vadd.f32 %v1173, %v1201
      %1203 = vmatmul.f32.gmra.mxu0 %v1182
      %v1204 = vpop.f32.mrf.mxu0
      %v1205 = vadd.f32 %v1176, %v1204
      %1206 = vdwg.mxu0
      %1207 = vrot.lane.b32.xlu0 %v940, 112
      %v1208 = vpop.permute.xlu0 %1207
      %1209 = vrot.lane.b32.xlu0 %v943, 112
      %v1210 = vpop.permute.xlu0 %1209
      %1211 = vrot.lane.b32.xlu0 %v940, 80
      %v1212 = vpop.permute.xlu0 %1211
      %1213 = vrot.lane.b32.xlu0 %v943, 80
      %v1214 = vpop.permute.xlu0 %1213
      %v1215 = vsel %vm955, %v1208, 0
      %v1217 = vsel %vm955, %v1210, 0
      %v1219 = vsel %vm955, %v1212, 0
      %v1221 = vsel %vm955, %v1214, 0
      %1223 = vmatpush.xpose.msra.mxu0 0.0
      %1224 = vmatpush.xpose.msra.mxu0 0.0
      %1225 = vmatpush.xpose.msra.mxu0 0.0
      %1226 = vmatpush.xpose.msra.mxu0 0.0
      %1227 = vmatpush.xpose.msra.mxu0 0.0
      %1228 = vmatpush.xpose.msra.mxu0 0.0
      %1229 = vmatpush.xpose.msra.mxu0 0.0
      %1230 = vmatpush.xpose.msra.mxu0 0.0
      %1231 = vmatpush.xpose.msra.mxu0 0.0
      %1232 = vmatpush.xpose.msra.mxu0 0.0
      %1233 = vmatpush.xpose.msra.mxu0 0.0
      %1234 = vmatpush.xpose.msra.mxu0 0.0
      %1235 = vmatpush.xpose.msra.mxu0 0.0
      %1236 = vmatpush.xpose.msra.mxu0 0.0
      %1237 = vmatpush.xpose.msra.mxu0 %v1221
      %1238 = vmatpush.xpose.msra.mxu0 %v1219
      %1239 = vmatmul.f32.gmra.mxu0 %v1215
      %v1240 = vpop.f32.mrf.mxu0
      %v1241 = vadd.f32 0.0, %v1240
      %1242 = vmatmul.f32.gmra.mxu0 %v1217
      %v1243 = vpop.f32.mrf.mxu0
      %v1244 = vadd.f32 0.0, %v1243
      %1245 = vdwg.mxu0
      %v1246 = vmul.f32 %v1241, 0.35355338
      %v1247 = vmul.f32 %v1244, 0.35355338
      %v1248 = vadd.f32 %v1246, %v864
      %v1249 = vadd.f32 %v1247, %v865
      %v1250 = vsel %vm991, %v1248, -inf
      %1251 = vmax.xlane.f32.xlu0 %v1250
      %v1252 = vpop.xlane.xlu0 %1251
      %v1253 = vsel %vm991, %v1249, -inf
      %1254 = vmax.xlane.f32.xlu0 %v1253
      %v1255 = vpop.xlane.xlu0 %1254
      %v1256 = vsub.f32 %v1248, %v1252
      %v1257 = vsub.f32 %v1249, %v1255
      %v1258 = vmul.f32 %v1256, 1.442695
      %v1259 = vpow.pop %v1258
      %v1260 = vmul.f32 %v1257, 1.442695
      %v1261 = vpow.pop %v1260
      %v1262 = vsel %vm991, %v1259, 0.0
      %1263 = vadd.xlane.f32.xlu0 %v1262
      %v1264 = vpop.xlane.xlu0 %1263
      %v1265 = vsel %vm991, %v1261, 0.0
      %1266 = vadd.xlane.f32.xlu0 %v1265
      %v1267 = vpop.xlane.xlu0 %1266
      %v1268 = vrcp.pop %v1264
      %v1269 = vrcp.pop %v1267
      %v1270 = vmul.f32 %v1259, %v1268
      %v1271 = vmul.f32 %v1261, %v1269
      %1272 = vrot.lane.b32.xlu0 %v940, 48
      %v1273 = vpop.permute.xlu0 %1272
      %1274 = vrot.lane.b32.xlu0 %v943, 48
      %v1275 = vpop.permute.xlu0 %1274
      %v1279 = vsel %vm991, %v1270, 0
      %v1282 = vsel %vm991, %v1271, 0
      %1284 = vmatpush.msra.mxu0 0.0
      %1285 = vmatpush.msra.mxu0 0.0
      %1286 = vmatpush.msra.mxu0 0.0
      %1287 = vmatpush.msra.mxu0 0.0
      %1288 = vmatpush.msra.mxu0 0.0
      %1289 = vmatpush.msra.mxu0 0.0
      %1290 = vmatpush.msra.mxu0 0.0
      %1291 = vmatpush.msra.mxu0 0.0
      %1292 = vmatpush.msra.mxu0 0.0
      %1293 = vmatpush.msra.mxu0 0.0
      %1294 = vmatpush.msra.mxu0 0.0
      %1295 = vmatpush.msra.mxu0 0.0
      %1296 = vmatpush.msra.mxu0 0.0
      %1297 = vmatpush.msra.mxu0 0.0
      %1298 = vmatpush.msra.mxu0 %v1275
      %1299 = vmatpush.msra.mxu0 %v1273
      %1300 = vmatmul.f32.gmra.mxu0 %v1279
      %v1301 = vpop.f32.mrf.mxu0
      %v1302 = vadd.f32 0.0, %v1301
      %1303 = vmatmul.f32.gmra.mxu0 %v1282
      %v1304 = vpop.f32.mrf.mxu0
      %v1305 = vadd.f32 0.0, %v1304
      %1306 = vdwg.mxu0
      %v1308 = vsel %vm955, %v1302, 0
      %v1311 = vsel %vm955, %v1305, 0
      %1313 = vmatpush.msra.mxu0 0.0
      %1314 = vmatpush.msra.mxu0 0.0
      %1315 = vmatpush.msra.mxu0 0.0
      %1316 = vmatpush.msra.mxu0 0.0
      %1317 = vmatpush.msra.mxu0 0.0
      %1318 = vmatpush.msra.mxu0 0.0
      %1319 = vmatpush.msra.mxu0 0.0
      %1320 = vmatpush.msra.mxu0 0.0
      %1321 = vmatpush.msra.mxu0 0.0
      %1322 = vmatpush.msra.mxu0 0.0
      %1323 = vmatpush.msra.mxu0 0.0
      %1324 = vmatpush.msra.mxu0 0.0
      %1325 = vmatpush.msra.mxu0 0.0
      %1326 = vmatpush.msra.mxu0 0.0
      %1327 = vmatpush.msra.mxu0 0.0
      %1328 = vmatpush.msra.mxu0 %v947
      %1329 = vmatmul.f32.gmra.mxu0 %v1308
      %v1330 = vpop.f32.mrf.mxu0
      %v1331 = vadd.f32 0.0, %v1330
      %1332 = vmatmul.f32.gmra.mxu0 %v1311
      %v1333 = vpop.f32.mrf.mxu0
      %v1334 = vadd.f32 0.0, %v1333
      %1335 = vdwg.mxu0
      %v1336 = vadd.f32 %v1202, %v1331
      %v1337 = vadd.f32 %v1205, %v1334
      %1338 = vrot.lane.b32.xlu0 %v940, 104
      %v1339 = vpop.permute.xlu0 %1338
      %1340 = vrot.lane.b32.xlu0 %v943, 104
      %v1341 = vpop.permute.xlu0 %1340
      %1342 = vrot.lane.b32.xlu0 %v940, 72
      %v1343 = vpop.permute.xlu0 %1342
      %1344 = vrot.lane.b32.xlu0 %v943, 72
      %v1345 = vpop.permute.xlu0 %1344
      %v1346 = vsel %vm955, %v1339, 0
      %v1348 = vsel %vm955, %v1341, 0
      %v1350 = vsel %vm955, %v1343, 0
      %v1352 = vsel %vm955, %v1345, 0
      %1354 = vmatpush.xpose.msra.mxu0 0.0
      %1355 = vmatpush.xpose.msra.mxu0 0.0
      %1356 = vmatpush.xpose.msra.mxu0 0.0
      %1357 = vmatpush.xpose.msra.mxu0 0.0
      %1358 = vmatpush.xpose.msra.mxu0 0.0
      %1359 = vmatpush.xpose.msra.mxu0 0.0
      %1360 = vmatpush.xpose.msra.mxu0 0.0
      %1361 = vmatpush.xpose.msra.mxu0 0.0
      %1362 = vmatpush.xpose.msra.mxu0 0.0
      %1363 = vmatpush.xpose.msra.mxu0 0.0
      %1364 = vmatpush.xpose.msra.mxu0 0.0
      %1365 = vmatpush.xpose.msra.mxu0 0.0
      %1366 = vmatpush.xpose.msra.mxu0 0.0
      %1367 = vmatpush.xpose.msra.mxu0 0.0
      %1368 = vmatpush.xpose.msra.mxu0 %v1352
      %1369 = vmatpush.xpose.msra.mxu0 %v1350
      %1370 = vmatmul.f32.gmra.mxu0 %v1346
      %v1371 = vpop.f32.mrf.mxu0
      %v1372 = vadd.f32 0.0, %v1371
      %1373 = vmatmul.f32.gmra.mxu0 %v1348
      %v1374 = vpop.f32.mrf.mxu0
      %v1375 = vadd.f32 0.0, %v1374
      %1376 = vdwg.mxu0
      %v1377 = vmul.f32 %v1372, 0.35355338
      %v1378 = vmul.f32 %v1375, 0.35355338
      %v1379 = vadd.f32 %v1377, %v864
      %v1380 = vadd.f32 %v1378, %v865
      %v1381 = vsel %vm991, %v1379, -inf
      %1382 = vmax.xlane.f32.xlu0 %v1381
      %v1383 = vpop.xlane.xlu0 %1382
      %v1384 = vsel %vm991, %v1380, -inf
      %1385 = vmax.xlane.f32.xlu0 %v1384
      %v1386 = vpop.xlane.xlu0 %1385
      %v1387 = vsub.f32 %v1379, %v1383
      %v1388 = vsub.f32 %v1380, %v1386
      %v1389 = vmul.f32 %v1387, 1.442695
      %v1390 = vpow.pop %v1389
      %v1391 = vmul.f32 %v1388, 1.442695
      %v1392 = vpow.pop %v1391
      %v1393 = vsel %vm991, %v1390, 0.0
      %1394 = vadd.xlane.f32.xlu0 %v1393
      %v1395 = vpop.xlane.xlu0 %1394
      %v1396 = vsel %vm991, %v1392, 0.0
      %1397 = vadd.xlane.f32.xlu0 %v1396
      %v1398 = vpop.xlane.xlu0 %1397
      %v1399 = vrcp.pop %v1395
      %v1400 = vrcp.pop %v1398
      %v1401 = vmul.f32 %v1390, %v1399
      %v1402 = vmul.f32 %v1392, %v1400
      %1403 = vrot.lane.b32.xlu0 %v940, 40
      %v1404 = vpop.permute.xlu0 %1403
      %1405 = vrot.lane.b32.xlu0 %v943, 40
      %v1406 = vpop.permute.xlu0 %1405
      %v1410 = vsel %vm991, %v1401, 0
      %v1413 = vsel %vm991, %v1402, 0
      %1415 = vmatpush.msra.mxu0 0.0
      %1416 = vmatpush.msra.mxu0 0.0
      %1417 = vmatpush.msra.mxu0 0.0
      %1418 = vmatpush.msra.mxu0 0.0
      %1419 = vmatpush.msra.mxu0 0.0
      %1420 = vmatpush.msra.mxu0 0.0
      %1421 = vmatpush.msra.mxu0 0.0
      %1422 = vmatpush.msra.mxu0 0.0
      %1423 = vmatpush.msra.mxu0 0.0
      %1424 = vmatpush.msra.mxu0 0.0
      %1425 = vmatpush.msra.mxu0 0.0
      %1426 = vmatpush.msra.mxu0 0.0
      %1427 = vmatpush.msra.mxu0 0.0
      %1428 = vmatpush.msra.mxu0 0.0
      %1429 = vmatpush.msra.mxu0 %v1406
      %1430 = vmatpush.msra.mxu0 %v1404
      %1431 = vmatmul.f32.gmra.mxu0 %v1410
      %v1432 = vpop.f32.mrf.mxu0
      %v1433 = vadd.f32 0.0, %v1432
      %1434 = vmatmul.f32.gmra.mxu0 %v1413
      %v1435 = vpop.f32.mrf.mxu0
      %v1436 = vadd.f32 0.0, %v1435
      %1437 = vdwg.mxu0
      %v1439 = vsel %vm955, %v1433, 0
      %v1442 = vsel %vm955, %v1436, 0
      %1444 = vmatpush.msra.mxu0 0.0
      %1445 = vmatpush.msra.mxu0 0.0
      %1446 = vmatpush.msra.mxu0 0.0
      %1447 = vmatpush.msra.mxu0 0.0
      %1448 = vmatpush.msra.mxu0 0.0
      %1449 = vmatpush.msra.mxu0 0.0
      %1450 = vmatpush.msra.mxu0 0.0
      %1451 = vmatpush.msra.mxu0 0.0
      %1452 = vmatpush.msra.mxu0 0.0
      %1453 = vmatpush.msra.mxu0 0.0
      %1454 = vmatpush.msra.mxu0 0.0
      %1455 = vmatpush.msra.mxu0 0.0
      %1456 = vmatpush.msra.mxu0 0.0
      %1457 = vmatpush.msra.mxu0 0.0
      %1458 = vmatpush.msra.mxu0 0.0
      %1459 = vmatpush.msra.mxu0 %v948
      %1460 = vmatmul.f32.gmra.mxu0 %v1439
      %v1461 = vpop.f32.mrf.mxu0
      %v1462 = vadd.f32 0.0, %v1461
      %1463 = vmatmul.f32.gmra.mxu0 %v1442
      %v1464 = vpop.f32.mrf.mxu0
      %v1465 = vadd.f32 0.0, %v1464
      %1466 = vdwg.mxu0
      %v1467 = vadd.f32 %v1336, %v1462
      %v1468 = vadd.f32 %v1337, %v1465
      %v1469 = vld [vmem:[%s829] sm:$0x1]
      %v1471 = vperm.slane %v1469, 0
      %v1473 = vadd.f32 %v1467, %v1471
      %v1474 = vadd.f32 %v1468, %v1471
      %v1475 = vld [vmem:[%s834] sm:$0x3]
      %v1476 = vadd.f32 %v902, %v1473
      %v1477 = vadd.f32 %v905, %v1474
      %v1478 = vsel %vm915, %v1476, 0.0
      %1479 = vadd.xlane.f32.xlu0 %v1478
      %v1480 = vpop.xlane.xlu0 %1479
      %v1481 = vsel %vm915, %v1477, 0.0
      %1482 = vadd.xlane.f32.xlu0 %v1481
      %v1483 = vpop.xlane.xlu0 %1482
      %v1484 = vrcp.pop 32.0
      %v1485 = vmul.f32 32.0, %v1484
      %v1486 = vsub.f32 1.0, %v1485
      %v1487 = vmul.f32 %v1484, %v1486
      %v1488 = vadd.f32 %v1484, %v1487
      %vm1489 = vweird.f32 %v1484
      %v1490 = vsel %vm1489, %v1484, %v1488
      %v1491 = vmul.f32 %v1480, %v1490
      %v1492 = vmul.f32 %v1483, %v1490
      %v1493 = vsub.f32 %v1476, %v1491
      %v1494 = vsub.f32 %v1477, %v1492
      %v1495 = vmul.f32 %v1493, %v1493
      %v1496 = vmul.f32 %v1494, %v1494
      %v1497 = vsel %vm915, %v1495, 0.0
      %1498 = vadd.xlane.f32.xlu0 %v1497
      %v1499 = vpop.xlane.xlu0 %1498
      %v1500 = vsel %vm915, %v1496, 0.0
      %1501 = vadd.xlane.f32.xlu0 %v1500
      %v1502 = vpop.xlane.xlu0 %1501
      %v1503 = vmul.f32 %v1499, %v1490
      %v1504 = vmul.f32 %v1502, %v1490
      %v1505 = vadd.f32 %v1503, 1e-05
      %v1506 = vadd.f32 %v1504, 1e-05
      %v1507 = vrsqrt.pop %v1505
      %v1508 = vmul.f32 %v1507, %v1505
      %v1509 = vmul.f32 %v1508, %v1507
      %v1510 = vmul.f32 0.5, %v1509
      %v1511 = vsub.f32 1.5, %v1510
      %v1512 = vmul.f32 %v1507, %v1511
      %vm1513 = vweird.f32 %v1505
      %vm1514 = vweird.f32 %v1507
      %vm1515 = vmor %vm1513, %vm1514
      %v1516 = vsel %vm1515, %v1507, %v1512
      %v1517 = vrsqrt.pop %v1506
      %v1518 = vmul.f32 %v1517, %v1506
      %v1519 = vmul.f32 %v1518, %v1517
      %v1520 = vmul.f32 0.5, %v1519
      %v1521 = vsub.f32 1.5, %v1520
      %v1522 = vmul.f32 %v1517, %v1521
      %vm1523 = vweird.f32 %v1506
      %vm1524 = vweird.f32 %v1517
      %vm1525 = vmor %vm1523, %vm1524
      %v1526 = vsel %vm1525, %v1517, %v1522
      %v1527 = vmul.f32 %v1493, %v1516
      %v1528 = vmul.f32 %v1494, %v1526
      %v1529 = vperm.slane %v1475, 0
      %v1530 = vmul.f32 %v1527, %v1529
      %v1531 = vmul.f32 %v1528, %v1529
      %v1532 = vperm.slane %v1475, 1
      %v1533 = vadd.f32 %v1530, %v1532
      %v1534 = vadd.f32 %v1531, %v1532
      %v1535 = vld [vmem:[%s839] sm:$0xff]
      %v1536 = vld [vmem:[%s839 + $0x8] sm:$0xff]
      %v1537 = vld [vmem:[%s839 + $0x10] sm:$0xff]
      %v1538 = vld [vmem:[%s839 + $0x18] sm:$0xff]
      %v1539 = vld [vmem:[%s843] sm:$0x1]
      %v1541 = vperm.slane %v1539, 0
      %v1544 = vsel %vm915, %v1533, 0
      %v1547 = vsel %vm915, %v1534, 0
      %1549 = vmatpush.msra.mxu0 0.0
      %1550 = vmatpush.msra.mxu0 0.0
      %1551 = vmatpush.msra.mxu0 0.0
      %1552 = vmatpush.msra.mxu0 0.0
      %1553 = vmatpush.msra.mxu0 0.0
      %1554 = vmatpush.msra.mxu0 0.0
      %1555 = vmatpush.msra.mxu0 0.0
      %1556 = vmatpush.msra.mxu0 0.0
      %1557 = vmatpush.msra.mxu0 0.0
      %1558 = vmatpush.msra.mxu0 0.0
      %1559 = vmatpush.msra.mxu0 0.0
      %1560 = vmatpush.msra.mxu0 0.0
      %1561 = vmatpush.msra.mxu0 %v1538
      %1562 = vmatpush.msra.mxu0 %v1537
      %1563 = vmatpush.msra.mxu0 %v1536
      %1564 = vmatpush.msra.mxu0 %v1535
      %1565 = vmatmul.f32.gmra.mxu0 %v1544
      %v1566 = vpop.f32.mrf.mxu0
      %v1567 = vadd.f32 %v1541, %v1566
      %1568 = vmatmul.f32.gmra.mxu0 %v1547
      %v1569 = vpop.f32.mrf.mxu0
      %v1570 = vadd.f32 %v1541, %v1569
      %1571 = vdwg.mxu0
      %v1572 = vmax.f32 %v1567, 0.0
      %v1573 = vmax.f32 %v1570, 0.0
      %v1574 = vld [vmem:[%s848] sm:$0xff]
      %v1575 = vld [vmem:[%s848 + $0x8] sm:$0xff]
      %v1576 = vld [vmem:[%s848 + $0x10] sm:$0xff]
      %v1577 = vld [vmem:[%s848 + $0x18] sm:$0xff]
      %v1578 = vld [vmem:[%s848 + $0x20] sm:$0xff]
      %v1579 = vld [vmem:[%s848 + $0x28] sm:$0xff]
      %v1580 = vld [vmem:[%s848 + $0x30] sm:$0xff]
      %v1581 = vld [vmem:[%s848 + $0x38] sm:$0xff]
      %v1582 = vld [vmem:[%s852] sm:$0x1]
      %v1584 = vperm.slane %v1582, 0
      %vm1586 = vcmask 523264
      %v1588 = vsel %vm1586, %v1572, 0
      %v1591 = vsel %vm1586, %v1573, 0
      %1593 = vmatpush.msra.mxu0 0.0
      %1594 = vmatpush.msra.mxu0 0.0
      %1595 = vmatpush.msra.mxu0 0.0
      %1596 = vmatpush.msra.mxu0 0.0
      %1597 = vmatpush.msra.mxu0 0.0
      %1598 = vmatpush.msra.mxu0 0.0
      %1599 = vmatpush.msra.mxu0 0.0
      %1600 = vmatpush.msra.mxu0 0.0
      %1601 = vmatpush.msra.mxu0 %v1581
      %1602 = vmatpush.msra.mxu0 %v1580
      %1603 = vmatpush.msra.mxu0 %v1579
      %1604 = vmatpush.msra.mxu0 %v1578
      %1605 = vmatpush.msra.mxu0 %v1577
      %1606 = vmatpush.msra.mxu0 %v1576
      %1607 = vmatpush.msra.mxu0 %v1575
      %1608 = vmatpush.msra.mxu0 %v1574
      %1609 = vmatmul.f32.gmra.mxu0 %v1588
      %v1610 = vpop.f32.mrf.mxu0
      %v1611 = vadd.f32 %v1584, %v1610
      %1612 = vmatmul.f32.gmra.mxu0 %v1591
      %v1613 = vpop.f32.mrf.mxu0
      %v1614 = vadd.f32 %v1584, %v1613
      %1615 = vdwg.mxu0
      %v1616 = vld [vmem:[%s857] sm:$0x3]
      %v1617 = vadd.f32 %v1533, %v1611
      %v1618 = vadd.f32 %v1534, %v1614
      %v1619 = vsel %vm915, %v1617, 0.0
      %1620 = vadd.xlane.f32.xlu0 %v1619
      %v1621 = vpop.xlane.xlu0 %1620
      %v1622 = vsel %vm915, %v1618, 0.0
      %1623 = vadd.xlane.f32.xlu0 %v1622
      %v1624 = vpop.xlane.xlu0 %1623
      %v1625 = vmul.f32 %v1621, %v1490
      %v1626 = vmul.f32 %v1624, %v1490
      %v1627 = vsub.f32 %v1617, %v1625
      %v1628 = vsub.f32 %v1618, %v1626
      %v1629 = vmul.f32 %v1627, %v1627
      %v1630 = vmul.f32 %v1628, %v1628
      %v1631 = vsel %vm915, %v1629, 0.0
      %1632 = vadd.xlane.f32.xlu0 %v1631
      %v1633 = vpop.xlane.xlu0 %1632
      %v1634 = vsel %vm915, %v1630, 0.0
      %1635 = vadd.xlane.f32.xlu0 %v1634
      %v1636 = vpop.xlane.xlu0 %1635
      %v1637 = vmul.f32 %v1633, %v1490
      %v1638 = vmul.f32 %v1636, %v1490
      %v1639 = vadd.f32 %v1637, 1e-05
      %v1640 = vadd.f32 %v1638, 1e-05
      %v1641 = vrsqrt.pop %v1639
      %v1642 = vmul.f32 %v1641, %v1639
      %v1643 = vmul.f32 %v1642, %v1641
      %v1644 = vmul.f32 0.5, %v1643
      %v1645 = vsub.f32 1.5, %v1644
      %v1646 = vmul.f32 %v1641, %v1645
      %vm1647 = vweird.f32 %v1639
      %vm1648 = vweird.f32 %v1641
      %vm1649 = vmor %vm1647, %vm1648
      %v1650 = vsel %vm1649, %v1641, %v1646
      %v1651 = vrsqrt.pop %v1640
      %v1652 = vmul.f32 %v1651, %v1640
      %v1653 = vmul.f32 %v1652, %v1651
      %v1654 = vmul.f32 0.5, %v1653
      %v1655 = vsub.f32 1.5, %v1654
      %v1656 = vmul.f32 %v1651, %v1655
      %vm1657 = vweird.f32 %v1640
      %vm1658 = vweird.f32 %v1651
      %vm1659 = vmor %vm1657, %vm1658
      %v1660 = vsel %vm1659, %v1651, %v1656
      %v1661 = vmul.f32 %v1627, %v1650
      %v1662 = vmul.f32 %v1628, %v1660
      %v1663 = vperm.slane %v1616, 0
      %v1664 = vmul.f32 %v1661, %v1663
      %v1665 = vmul.f32 %v1662, %v1663
      %v1666 = vperm.slane %v1616, 1
      %v1667 = vadd.f32 %v1664, %v1666
      %v1668 = vadd.f32 %v1665, %v1666
      %s1669 = scalar_lea.vmem %s816, 32
      %v1670 = vld [vmem:[%s1669] sm:$0xff]
      %v1671 = vld [vmem:[%s1669 + $0x8] sm:$0xff]
      %v1672 = vld [vmem:[%s1669 + $0x10] sm:$0xff]
      %v1673 = vld [vmem:[%s1669 + $0x18] sm:$0xff]
      %s1674 = scalar_lea.vmem %s820, 1
      %v1675 = vld [vmem:[%s1674] sm:$0x1]
      %v1677 = vperm.slane %v1675, 0
      %v1680 = vsel %vm915, %v1667, 0
      %v1683 = vsel %vm915, %v1668, 0
      %1685 = vmatpush.msra.mxu0 0.0
      %1686 = vmatpush.msra.mxu0 0.0
      %1687 = vmatpush.msra.mxu0 0.0
      %1688 = vmatpush.msra.mxu0 0.0
      %1689 = vmatpush.msra.mxu0 0.0
      %1690 = vmatpush.msra.mxu0 0.0
      %1691 = vmatpush.msra.mxu0 0.0
      %1692 = vmatpush.msra.mxu0 0.0
      %1693 = vmatpush.msra.mxu0 0.0
      %1694 = vmatpush.msra.mxu0 0.0
      %1695 = vmatpush.msra.mxu0 0.0
      %1696 = vmatpush.msra.mxu0 0.0
      %1697 = vmatpush.msra.mxu0 %v1673
      %1698 = vmatpush.msra.mxu0 %v1672
      %1699 = vmatpush.msra.mxu0 %v1671
      %1700 = vmatpush.msra.mxu0 %v1670
      %1701 = vmatmul.f32.gmra.mxu0 %v1680
      %v1702 = vpop.f32.mrf.mxu0
      %v1703 = vadd.f32 %v1677, %v1702
      %1704 = vmatmul.f32.gmra.mxu0 %v1683
      %v1705 = vpop.f32.mrf.mxu0
      %v1706 = vadd.f32 %v1677, %v1705
      %1707 = vdwg.mxu0
      %s1708 = scalar_lea.vmem %s825, 32
      %v1709 = vld [vmem:[%s1708] sm:$0xff]
      %v1710 = vld [vmem:[%s1708 + $0x8] sm:$0xff]
      %v1711 = vld [vmem:[%s1708 + $0x10] sm:$0xff]
      %v1712 = vld [vmem:[%s1708 + $0x18] sm:$0xff]
      %1715 = vrot.lane.b32.xlu0 %v1703, 96
      %v1716 = vpop.permute.xlu0 %1715
      %1717 = vrot.lane.b32.xlu0 %v1706, 96
      %v1718 = vpop.permute.xlu0 %1717
      %v1719 = vsel %vm955, %v1703, 0
      %v1721 = vsel %vm955, %v1706, 0
      %v1723 = vsel %vm955, %v1716, 0
      %v1725 = vsel %vm955, %v1718, 0
      %1727 = vmatpush.xpose.msra.mxu0 0.0
      %1728 = vmatpush.xpose.msra.mxu0 0.0
      %1729 = vmatpush.xpose.msra.mxu0 0.0
      %1730 = vmatpush.xpose.msra.mxu0 0.0
      %1731 = vmatpush.xpose.msra.mxu0 0.0
      %1732 = vmatpush.xpose.msra.mxu0 0.0
      %1733 = vmatpush.xpose.msra.mxu0 0.0
      %1734 = vmatpush.xpose.msra.mxu0 0.0
      %1735 = vmatpush.xpose.msra.mxu0 0.0
      %1736 = vmatpush.xpose.msra.mxu0 0.0
      %1737 = vmatpush.xpose.msra.mxu0 0.0
      %1738 = vmatpush.xpose.msra.mxu0 0.0
      %1739 = vmatpush.xpose.msra.mxu0 0.0
      %1740 = vmatpush.xpose.msra.mxu0 0.0
      %1741 = vmatpush.xpose.msra.mxu0 %v1725
      %1742 = vmatpush.xpose.msra.mxu0 %v1723
      %1743 = vmatmul.f32.gmra.mxu0 %v1719
      %v1744 = vpop.f32.mrf.mxu0
      %v1745 = vadd.f32 0.0, %v1744
      %1746 = vmatmul.f32.gmra.mxu0 %v1721
      %v1747 = vpop.f32.mrf.mxu0
      %v1748 = vadd.f32 0.0, %v1747
      %1749 = vdwg.mxu0
      %v1750 = vmul.f32 %v1745, 0.35355338
      %v1751 = vmul.f32 %v1748, 0.35355338
      %v1752 = vadd.f32 %v1750, %v864
      %v1753 = vadd.f32 %v1751, %v865
      %v1754 = vsel %vm991, %v1752, -inf
      %1755 = vmax.xlane.f32.xlu0 %v1754
      %v1756 = vpop.xlane.xlu0 %1755
      %v1757 = vsel %vm991, %v1753, -inf
      %1758 = vmax.xlane.f32.xlu0 %v1757
      %v1759 = vpop.xlane.xlu0 %1758
      %v1760 = vsub.f32 %v1752, %v1756
      %v1761 = vsub.f32 %v1753, %v1759
      %v1762 = vmul.f32 %v1760, 1.442695
      %v1763 = vpow.pop %v1762
      %v1764 = vmul.f32 %v1761, 1.442695
      %v1765 = vpow.pop %v1764
      %v1766 = vsel %vm991, %v1763, 0.0
      %1767 = vadd.xlane.f32.xlu0 %v1766
      %v1768 = vpop.xlane.xlu0 %1767
      %v1769 = vsel %vm991, %v1765, 0.0
      %1770 = vadd.xlane.f32.xlu0 %v1769
      %v1771 = vpop.xlane.xlu0 %1770
      %v1772 = vrcp.pop %v1768
      %v1773 = vrcp.pop %v1771
      %v1774 = vmul.f32 %v1763, %v1772
      %v1775 = vmul.f32 %v1765, %v1773
      %1776 = vrot.lane.b32.xlu0 %v1703, 64
      %v1777 = vpop.permute.xlu0 %1776
      %1778 = vrot.lane.b32.xlu0 %v1706, 64
      %v1779 = vpop.permute.xlu0 %1778
      %v1783 = vsel %vm991, %v1774, 0
      %v1786 = vsel %vm991, %v1775, 0
      %1788 = vmatpush.msra.mxu0 0.0
      %1789 = vmatpush.msra.mxu0 0.0
      %1790 = vmatpush.msra.mxu0 0.0
      %1791 = vmatpush.msra.mxu0 0.0
      %1792 = vmatpush.msra.mxu0 0.0
      %1793 = vmatpush.msra.mxu0 0.0
      %1794 = vmatpush.msra.mxu0 0.0
      %1795 = vmatpush.msra.mxu0 0.0
      %1796 = vmatpush.msra.mxu0 0.0
      %1797 = vmatpush.msra.mxu0 0.0
      %1798 = vmatpush.msra.mxu0 0.0
      %1799 = vmatpush.msra.mxu0 0.0
      %1800 = vmatpush.msra.mxu0 0.0
      %1801 = vmatpush.msra.mxu0 0.0
      %1802 = vmatpush.msra.mxu0 %v1779
      %1803 = vmatpush.msra.mxu0 %v1777
      %1804 = vmatmul.f32.gmra.mxu0 %v1783
      %v1805 = vpop.f32.mrf.mxu0
      %v1806 = vadd.f32 0.0, %v1805
      %1807 = vmatmul.f32.gmra.mxu0 %v1786
      %v1808 = vpop.f32.mrf.mxu0
      %v1809 = vadd.f32 0.0, %v1808
      %1810 = vdwg.mxu0
      %1811 = vrot.lane.b32.xlu0 %v1703, 120
      %v1812 = vpop.permute.xlu0 %1811
      %1813 = vrot.lane.b32.xlu0 %v1706, 120
      %v1814 = vpop.permute.xlu0 %1813
      %1815 = vrot.lane.b32.xlu0 %v1703, 88
      %v1816 = vpop.permute.xlu0 %1815
      %1817 = vrot.lane.b32.xlu0 %v1706, 88
      %v1818 = vpop.permute.xlu0 %1817
      %v1819 = vsel %vm955, %v1812, 0
      %v1821 = vsel %vm955, %v1814, 0
      %v1823 = vsel %vm955, %v1816, 0
      %v1825 = vsel %vm955, %v1818, 0
      %1827 = vmatpush.xpose.msra.mxu0 0.0
      %1828 = vmatpush.xpose.msra.mxu0 0.0
      %1829 = vmatpush.xpose.msra.mxu0 0.0
      %1830 = vmatpush.xpose.msra.mxu0 0.0
      %1831 = vmatpush.xpose.msra.mxu0 0.0
      %1832 = vmatpush.xpose.msra.mxu0 0.0
      %1833 = vmatpush.xpose.msra.mxu0 0.0
      %1834 = vmatpush.xpose.msra.mxu0 0.0
      %1835 = vmatpush.xpose.msra.mxu0 0.0
      %1836 = vmatpush.xpose.msra.mxu0 0.0
      %1837 = vmatpush.xpose.msra.mxu0 0.0
      %1838 = vmatpush.xpose.msra.mxu0 0.0
      %1839 = vmatpush.xpose.msra.mxu0 0.0
      %1840 = vmatpush.xpose.msra.mxu0 0.0
      %1841 = vmatpush.xpose.msra.mxu0 %v1825
      %1842 = vmatpush.xpose.msra.mxu0 %v1823
      %1843 = vmatmul.f32.gmra.mxu0 %v1819
      %v1844 = vpop.f32.mrf.mxu0
      %v1845 = vadd.f32 0.0, %v1844
      %1846 = vmatmul.f32.gmra.mxu0 %v1821
      %v1847 = vpop.f32.mrf.mxu0
      %v1848 = vadd.f32 0.0, %v1847
      %1849 = vdwg.mxu0
      %v1850 = vmul.f32 %v1845, 0.35355338
      %v1851 = vmul.f32 %v1848, 0.35355338
      %v1852 = vadd.f32 %v1850, %v864
      %v1853 = vadd.f32 %v1851, %v865
      %v1854 = vsel %vm991, %v1852, -inf
      %1855 = vmax.xlane.f32.xlu0 %v1854
      %v1856 = vpop.xlane.xlu0 %1855
      %v1857 = vsel %vm991, %v1853, -inf
      %1858 = vmax.xlane.f32.xlu0 %v1857
      %v1859 = vpop.xlane.xlu0 %1858
      %v1860 = vsub.f32 %v1852, %v1856
      %v1861 = vsub.f32 %v1853, %v1859
      %v1862 = vmul.f32 %v1860, 1.442695
      %v1863 = vpow.pop %v1862
      %v1864 = vmul.f32 %v1861, 1.442695
      %v1865 = vpow.pop %v1864
      %v1866 = vsel %vm991, %v1863, 0.0
      %1867 = vadd.xlane.f32.xlu0 %v1866
      %v1868 = vpop.xlane.xlu0 %1867
      %v1869 = vsel %vm991, %v1865, 0.0
      %1870 = vadd.xlane.f32.xlu0 %v1869
      %v1871 = vpop.xlane.xlu0 %1870
      %v1872 = vrcp.pop %v1868
      %v1873 = vrcp.pop %v1871
      %v1874 = vmul.f32 %v1863, %v1872
      %v1875 = vmul.f32 %v1865, %v1873
      %1876 = vrot.lane.b32.xlu0 %v1703, 56
      %v1877 = vpop.permute.xlu0 %1876
      %1878 = vrot.lane.b32.xlu0 %v1706, 56
      %v1879 = vpop.permute.xlu0 %1878
      %v1883 = vsel %vm991, %v1874, 0
      %v1886 = vsel %vm991, %v1875, 0
      %1888 = vmatpush.msra.mxu0 0.0
      %1889 = vmatpush.msra.mxu0 0.0
      %1890 = vmatpush.msra.mxu0 0.0
      %1891 = vmatpush.msra.mxu0 0.0
      %1892 = vmatpush.msra.mxu0 0.0
      %1893 = vmatpush.msra.mxu0 0.0
      %1894 = vmatpush.msra.mxu0 0.0
      %1895 = vmatpush.msra.mxu0 0.0
      %1896 = vmatpush.msra.mxu0 0.0
      %1897 = vmatpush.msra.mxu0 0.0
      %1898 = vmatpush.msra.mxu0 0.0
      %1899 = vmatpush.msra.mxu0 0.0
      %1900 = vmatpush.msra.mxu0 0.0
      %1901 = vmatpush.msra.mxu0 0.0
      %1902 = vmatpush.msra.mxu0 %v1879
      %1903 = vmatpush.msra.mxu0 %v1877
      %1904 = vmatmul.f32.gmra.mxu0 %v1883
      %v1905 = vpop.f32.mrf.mxu0
      %v1906 = vadd.f32 0.0, %v1905
      %1907 = vmatmul.f32.gmra.mxu0 %v1886
      %v1908 = vpop.f32.mrf.mxu0
      %v1909 = vadd.f32 0.0, %v1908
      %1910 = vdwg.mxu0
      %v1912 = vsel %vm955, %v1906, 0
      %v1915 = vsel %vm955, %v1909, 0
      %1917 = vmatpush.msra.mxu0 0.0
      %1918 = vmatpush.msra.mxu0 0.0
      %1919 = vmatpush.msra.mxu0 0.0
      %1920 = vmatpush.msra.mxu0 0.0
      %1921 = vmatpush.msra.mxu0 0.0
      %1922 = vmatpush.msra.mxu0 0.0
      %1923 = vmatpush.msra.mxu0 0.0
      %1924 = vmatpush.msra.mxu0 0.0
      %1925 = vmatpush.msra.mxu0 0.0
      %1926 = vmatpush.msra.mxu0 0.0
      %1927 = vmatpush.msra.mxu0 0.0
      %1928 = vmatpush.msra.mxu0 0.0
      %1929 = vmatpush.msra.mxu0 0.0
      %1930 = vmatpush.msra.mxu0 0.0
      %1931 = vmatpush.msra.mxu0 0.0
      %1932 = vmatpush.msra.mxu0 %v1710
      %1933 = vmatmul.f32.gmra.mxu0 %v1912
      %v1934 = vpop.f32.mrf.mxu0
      %v1935 = vadd.f32 0.0, %v1934
      %1936 = vmatmul.f32.gmra.mxu0 %v1915
      %v1937 = vpop.f32.mrf.mxu0
      %v1938 = vadd.f32 0.0, %v1937
      %1939 = vdwg.mxu0
      %v1941 = vsel %vm955, %v1806, 0
      %v1944 = vsel %vm955, %v1809, 0
      %1946 = vmatpush.msra.mxu0 0.0
      %1947 = vmatpush.msra.mxu0 0.0
      %1948 = vmatpush.msra.mxu0 0.0
      %1949 = vmatpush.msra.mxu0 0.0
      %1950 = vmatpush.msra.mxu0 0.0
      %1951 = vmatpush.msra.mxu0 0.0
      %1952 = vmatpush.msra.mxu0 0.0
      %1953 = vmatpush.msra.mxu0 0.0
      %1954 = vmatpush.msra.mxu0 0.0
      %1955 = vmatpush.msra.mxu0 0.0
      %1956 = vmatpush.msra.mxu0 0.0
      %1957 = vmatpush.msra.mxu0 0.0
      %1958 = vmatpush.msra.mxu0 0.0
      %1959 = vmatpush.msra.mxu0 0.0
      %1960 = vmatpush.msra.mxu0 0.0
      %1961 = vmatpush.msra.mxu0 %v1709
      %1962 = vmatmul.f32.gmra.mxu0 %v1941
      %v1963 = vpop.f32.mrf.mxu0
      %v1964 = vadd.f32 %v1935, %v1963
      %1965 = vmatmul.f32.gmra.mxu0 %v1944
      %v1966 = vpop.f32.mrf.mxu0
      %v1967 = vadd.f32 %v1938, %v1966
      %1968 = vdwg.mxu0
      %1969 = vrot.lane.b32.xlu0 %v1703, 112
      %v1970 = vpop.permute.xlu0 %1969
      %1971 = vrot.lane.b32.xlu0 %v1706, 112
      %v1972 = vpop.permute.xlu0 %1971
      %1973 = vrot.lane.b32.xlu0 %v1703, 80
      %v1974 = vpop.permute.xlu0 %1973
      %1975 = vrot.lane.b32.xlu0 %v1706, 80
      %v1976 = vpop.permute.xlu0 %1975
      %v1977 = vsel %vm955, %v1970, 0
      %v1979 = vsel %vm955, %v1972, 0
      %v1981 = vsel %vm955, %v1974, 0
      %v1983 = vsel %vm955, %v1976, 0
      %1985 = vmatpush.xpose.msra.mxu0 0.0
      %1986 = vmatpush.xpose.msra.mxu0 0.0
      %1987 = vmatpush.xpose.msra.mxu0 0.0
      %1988 = vmatpush.xpose.msra.mxu0 0.0
      %1989 = vmatpush.xpose.msra.mxu0 0.0
      %1990 = vmatpush.xpose.msra.mxu0 0.0
      %1991 = vmatpush.xpose.msra.mxu0 0.0
      %1992 = vmatpush.xpose.msra.mxu0 0.0
      %1993 = vmatpush.xpose.msra.mxu0 0.0
      %1994 = vmatpush.xpose.msra.mxu0 0.0
      %1995 = vmatpush.xpose.msra.mxu0 0.0
      %1996 = vmatpush.xpose.msra.mxu0 0.0
      %1997 = vmatpush.xpose.msra.mxu0 0.0
      %1998 = vmatpush.xpose.msra.mxu0 0.0
      %1999 = vmatpush.xpose.msra.mxu0 %v1983
      %2000 = vmatpush.xpose.msra.mxu0 %v1981
      %2001 = vmatmul.f32.gmra.mxu0 %v1977
      %v2002 = vpop.f32.mrf.mxu0
      %v2003 = vadd.f32 0.0, %v2002
      %2004 = vmatmul.f32.gmra.mxu0 %v1979
      %v2005 = vpop.f32.mrf.mxu0
      %v2006 = vadd.f32 0.0, %v2005
      %2007 = vdwg.mxu0
      %v2008 = vmul.f32 %v2003, 0.35355338
      %v2009 = vmul.f32 %v2006, 0.35355338
      %v2010 = vadd.f32 %v2008, %v864
      %v2011 = vadd.f32 %v2009, %v865
      %v2012 = vsel %vm991, %v2010, -inf
      %2013 = vmax.xlane.f32.xlu0 %v2012
      %v2014 = vpop.xlane.xlu0 %2013
      %v2015 = vsel %vm991, %v2011, -inf
      %2016 = vmax.xlane.f32.xlu0 %v2015
      %v2017 = vpop.xlane.xlu0 %2016
      %v2018 = vsub.f32 %v2010, %v2014
      %v2019 = vsub.f32 %v2011, %v2017
      %v2020 = vmul.f32 %v2018, 1.442695
      %v2021 = vpow.pop %v2020
      %v2022 = vmul.f32 %v2019, 1.442695
      %v2023 = vpow.pop %v2022
      %v2024 = vsel %vm991, %v2021, 0.0
      %2025 = vadd.xlane.f32.xlu0 %v2024
      %v2026 = vpop.xlane.xlu0 %2025
      %v2027 = vsel %vm991, %v2023, 0.0
      %2028 = vadd.xlane.f32.xlu0 %v2027
      %v2029 = vpop.xlane.xlu0 %2028
      %v2030 = vrcp.pop %v2026
      %v2031 = vrcp.pop %v2029
      %v2032 = vmul.f32 %v2021, %v2030
      %v2033 = vmul.f32 %v2023, %v2031
      %2034 = vrot.lane.b32.xlu0 %v1703, 48
      %v2035 = vpop.permute.xlu0 %2034
      %2036 = vrot.lane.b32.xlu0 %v1706, 48
      %v2037 = vpop.permute.xlu0 %2036
      %v2041 = vsel %vm991, %v2032, 0
      %v2044 = vsel %vm991, %v2033, 0
      %2046 = vmatpush.msra.mxu0 0.0
      %2047 = vmatpush.msra.mxu0 0.0
      %2048 = vmatpush.msra.mxu0 0.0
      %2049 = vmatpush.msra.mxu0 0.0
      %2050 = vmatpush.msra.mxu0 0.0
      %2051 = vmatpush.msra.mxu0 0.0
      %2052 = vmatpush.msra.mxu0 0.0
      %2053 = vmatpush.msra.mxu0 0.0
      %2054 = vmatpush.msra.mxu0 0.0
      %2055 = vmatpush.msra.mxu0 0.0
      %2056 = vmatpush.msra.mxu0 0.0
      %2057 = vmatpush.msra.mxu0 0.0
      %2058 = vmatpush.msra.mxu0 0.0
      %2059 = vmatpush.msra.mxu0 0.0
      %2060 = vmatpush.msra.mxu0 %v2037
      %2061 = vmatpush.msra.mxu0 %v2035
      %2062 = vmatmul.f32.gmra.mxu0 %v2041
      %v2063 = vpop.f32.mrf.mxu0
      %v2064 = vadd.f32 0.0, %v2063
      %2065 = vmatmul.f32.gmra.mxu0 %v2044
      %v2066 = vpop.f32.mrf.mxu0
      %v2067 = vadd.f32 0.0, %v2066
      %2068 = vdwg.mxu0
      %v2070 = vsel %vm955, %v2064, 0
      %v2073 = vsel %vm955, %v2067, 0
      %2075 = vmatpush.msra.mxu0 0.0
      %2076 = vmatpush.msra.mxu0 0.0
      %2077 = vmatpush.msra.mxu0 0.0
      %2078 = vmatpush.msra.mxu0 0.0
      %2079 = vmatpush.msra.mxu0 0.0
      %2080 = vmatpush.msra.mxu0 0.0
      %2081 = vmatpush.msra.mxu0 0.0
      %2082 = vmatpush.msra.mxu0 0.0
      %2083 = vmatpush.msra.mxu0 0.0
      %2084 = vmatpush.msra.mxu0 0.0
      %2085 = vmatpush.msra.mxu0 0.0
      %2086 = vmatpush.msra.mxu0 0.0
      %2087 = vmatpush.msra.mxu0 0.0
      %2088 = vmatpush.msra.mxu0 0.0
      %2089 = vmatpush.msra.mxu0 0.0
      %2090 = vmatpush.msra.mxu0 %v1711
      %2091 = vmatmul.f32.gmra.mxu0 %v2070
      %v2092 = vpop.f32.mrf.mxu0
      %v2093 = vadd.f32 0.0, %v2092
      %2094 = vmatmul.f32.gmra.mxu0 %v2073
      %v2095 = vpop.f32.mrf.mxu0
      %v2096 = vadd.f32 0.0, %v2095
      %2097 = vdwg.mxu0
      %v2098 = vadd.f32 %v1964, %v2093
      %v2099 = vadd.f32 %v1967, %v2096
      %2100 = vrot.lane.b32.xlu0 %v1703, 104
      %v2101 = vpop.permute.xlu0 %2100
      %2102 = vrot.lane.b32.xlu0 %v1706, 104
      %v2103 = vpop.permute.xlu0 %2102
      %2104 = vrot.lane.b32.xlu0 %v1703, 72
      %v2105 = vpop.permute.xlu0 %2104
      %2106 = vrot.lane.b32.xlu0 %v1706, 72
      %v2107 = vpop.permute.xlu0 %2106
      %v2108 = vsel %vm955, %v2101, 0
      %v2110 = vsel %vm955, %v2103, 0
      %v2112 = vsel %vm955, %v2105, 0
      %v2114 = vsel %vm955, %v2107, 0
      %2116 = vmatpush.xpose.msra.mxu0 0.0
      %2117 = vmatpush.xpose.msra.mxu0 0.0
      %2118 = vmatpush.xpose.msra.mxu0 0.0
      %2119 = vmatpush.xpose.msra.mxu0 0.0
      %2120 = vmatpush.xpose.msra.mxu0 0.0
      %2121 = vmatpush.xpose.msra.mxu0 0.0
      %2122 = vmatpush.xpose.msra.mxu0 0.0
      %2123 = vmatpush.xpose.msra.mxu0 0.0
      %2124 = vmatpush.xpose.msra.mxu0 0.0
      %2125 = vmatpush.xpose.msra.mxu0 0.0
      %2126 = vmatpush.xpose.msra.mxu0 0.0
      %2127 = vmatpush.xpose.msra.mxu0 0.0
      %2128 = vmatpush.xpose.msra.mxu0 0.0
      %2129 = vmatpush.xpose.msra.mxu0 0.0
      %2130 = vmatpush.xpose.msra.mxu0 %v2114
      %2131 = vmatpush.xpose.msra.mxu0 %v2112
      %2132 = vmatmul.f32.gmra.mxu0 %v2108
      %v2133 = vpop.f32.mrf.mxu0
      %v2134 = vadd.f32 0.0, %v2133
      %2135 = vmatmul.f32.gmra.mxu0 %v2110
      %v2136 = vpop.f32.mrf.mxu0
      %v2137 = vadd.f32 0.0, %v2136
      %2138 = vdwg.mxu0
      %v2139 = vmul.f32 %v2134, 0.35355338
      %v2140 = vmul.f32 %v2137, 0.35355338
      %v2141 = vadd.f32 %v2139, %v864
      %v2142 = vadd.f32 %v2140, %v865
      %v2143 = vsel %vm991, %v2141, -inf
      %2144 = vmax.xlane.f32.xlu0 %v2143
      %v2145 = vpop.xlane.xlu0 %2144
      %v2146 = vsel %vm991, %v2142, -inf
      %2147 = vmax.xlane.f32.xlu0 %v2146
      %v2148 = vpop.xlane.xlu0 %2147
      %v2149 = vsub.f32 %v2141, %v2145
      %v2150 = vsub.f32 %v2142, %v2148
      %v2151 = vmul.f32 %v2149, 1.442695
      %v2152 = vpow.pop %v2151
      %v2153 = vmul.f32 %v2150, 1.442695
      %v2154 = vpow.pop %v2153
      %v2155 = vsel %vm991, %v2152, 0.0
      %2156 = vadd.xlane.f32.xlu0 %v2155
      %v2157 = vpop.xlane.xlu0 %2156
      %v2158 = vsel %vm991, %v2154, 0.0
      %2159 = vadd.xlane.f32.xlu0 %v2158
      %v2160 = vpop.xlane.xlu0 %2159
      %v2161 = vrcp.pop %v2157
      %v2162 = vrcp.pop %v2160
      %v2163 = vmul.f32 %v2152, %v2161
      %v2164 = vmul.f32 %v2154, %v2162
      %2165 = vrot.lane.b32.xlu0 %v1703, 40
      %v2166 = vpop.permute.xlu0 %2165
      %2167 = vrot.lane.b32.xlu0 %v1706, 40
      %v2168 = vpop.permute.xlu0 %2167
      %v2172 = vsel %vm991, %v2163, 0
      %v2175 = vsel %vm991, %v2164, 0
      %2177 = vmatpush.msra.mxu0 0.0
      %2178 = vmatpush.msra.mxu0 0.0
      %2179 = vmatpush.msra.mxu0 0.0
      %2180 = vmatpush.msra.mxu0 0.0
      %2181 = vmatpush.msra.mxu0 0.0
      %2182 = vmatpush.msra.mxu0 0.0
      %2183 = vmatpush.msra.mxu0 0.0
      %2184 = vmatpush.msra.mxu0 0.0
      %2185 = vmatpush.msra.mxu0 0.0
      %2186 = vmatpush.msra.mxu0 0.0
      %2187 = vmatpush.msra.mxu0 0.0
      %2188 = vmatpush.msra.mxu0 0.0
      %2189 = vmatpush.msra.mxu0 0.0
      %2190 = vmatpush.msra.mxu0 0.0
      %2191 = vmatpush.msra.mxu0 %v2168
      %2192 = vmatpush.msra.mxu0 %v2166
      %2193 = vmatmul.f32.gmra.mxu0 %v2172
      %v2194 = vpop.f32.mrf.mxu0
      %v2195 = vadd.f32 0.0, %v2194
      %2196 = vmatmul.f32.gmra.mxu0 %v2175
      %v2197 = vpop.f32.mrf.mxu0
      %v2198 = vadd.f32 0.0, %v2197
      %2199 = vdwg.mxu0
      %v2201 = vsel %vm955, %v2195, 0
      %v2204 = vsel %vm955, %v2198, 0
      %2206 = vmatpush.msra.mxu0 0.0
      %2207 = vmatpush.msra.mxu0 0.0
      %2208 = vmatpush.msra.mxu0 0.0
      %2209 = vmatpush.msra.mxu0 0.0
      %2210 = vmatpush.msra.mxu0 0.0
      %2211 = vmatpush.msra.mxu0 0.0
      %2212 = vmatpush.msra.mxu0 0.0
      %2213 = vmatpush.msra.mxu0 0.0
      %2214 = vmatpush.msra.mxu0 0.0
      %2215 = vmatpush.msra.mxu0 0.0
      %2216 = vmatpush.msra.mxu0 0.0
      %2217 = vmatpush.msra.mxu0 0.0
      %2218 = vmatpush.msra.mxu0 0.0
      %2219 = vmatpush.msra.mxu0 0.0
      %2220 = vmatpush.msra.mxu0 0.0
      %2221 = vmatpush.msra.mxu0 %v1712
      %2222 = vmatmul.f32.gmra.mxu0 %v2201
      %v2223 = vpop.f32.mrf.mxu0
      %v2224 = vadd.f32 0.0, %v2223
      %2225 = vmatmul.f32.gmra.mxu0 %v2204
      %v2226 = vpop.f32.mrf.mxu0
      %v2227 = vadd.f32 0.0, %v2226
      %2228 = vdwg.mxu0
      %v2229 = vadd.f32 %v2098, %v2224
      %v2230 = vadd.f32 %v2099, %v2227
      %s2231 = scalar_lea.vmem %s829, 1
      %v2232 = vld [vmem:[%s2231] sm:$0x1]
      %v2234 = vperm.slane %v2232, 0
      %v2236 = vadd.f32 %v2229, %v2234
      %v2237 = vadd.f32 %v2230, %v2234
      %s2238 = scalar_lea.vmem %s834, 2
      %v2239 = vld [vmem:[%s2238] sm:$0x3]
      %v2240 = vadd.f32 %v1667, %v2236
      %v2241 = vadd.f32 %v1668, %v2237
      %v2242 = vsel %vm915, %v2240, 0.0
      %2243 = vadd.xlane.f32.xlu0 %v2242
      %v2244 = vpop.xlane.xlu0 %2243
      %v2245 = vsel %vm915, %v2241, 0.0
      %2246 = vadd.xlane.f32.xlu0 %v2245
      %v2247 = vpop.xlane.xlu0 %2246
      %v2248 = vmul.f32 %v2244, %v1490
      %v2249 = vmul.f32 %v2247, %v1490
      %v2250 = vsub.f32 %v2240, %v2248
      %v2251 = vsub.f32 %v2241, %v2249
      %v2252 = vmul.f32 %v2250, %v2250
      %v2253 = vmul.f32 %v2251, %v2251
      %v2254 = vsel %vm915, %v2252, 0.0
      %2255 = vadd.xlane.f32.xlu0 %v2254
      %v2256 = vpop.xlane.xlu0 %2255
      %v2257 = vsel %vm915, %v2253, 0.0
      %2258 = vadd.xlane.f32.xlu0 %v2257
      %v2259 = vpop.xlane.xlu0 %2258
      %v2260 = vmul.f32 %v2256, %v1490
      %v2261 = vmul.f32 %v2259, %v1490
      %v2262 = vadd.f32 %v2260, 1e-05
      %v2263 = vadd.f32 %v2261, 1e-05
      %v2264 = vrsqrt.pop %v2262
      %v2265 = vmul.f32 %v2264, %v2262
      %v2266 = vmul.f32 %v2265, %v2264
      %v2267 = vmul.f32 0.5, %v2266
      %v2268 = vsub.f32 1.5, %v2267
      %v2269 = vmul.f32 %v2264, %v2268
      %vm2270 = vweird.f32 %v2262
      %vm2271 = vweird.f32 %v2264
      %vm2272 = vmor %vm2270, %vm2271
      %v2273 = vsel %vm2272, %v2264, %v2269
      %v2274 = vrsqrt.pop %v2263
      %v2275 = vmul.f32 %v2274, %v2263
      %v2276 = vmul.f32 %v2275, %v2274
      %v2277 = vmul.f32 0.5, %v2276
      %v2278 = vsub.f32 1.5, %v2277
      %v2279 = vmul.f32 %v2274, %v2278
      %vm2280 = vweird.f32 %v2263
      %vm2281 = vweird.f32 %v2274
      %vm2282 = vmor %vm2280, %vm2281
      %v2283 = vsel %vm2282, %v2274, %v2279
      %v2284 = vmul.f32 %v2250, %v2273
      %v2285 = vmul.f32 %v2251, %v2283
      %v2286 = vperm.slane %v2239, 0
      %v2287 = vmul.f32 %v2284, %v2286
      %v2288 = vmul.f32 %v2285, %v2286
      %v2289 = vperm.slane %v2239, 1
      %v2290 = vadd.f32 %v2287, %v2289
      %v2291 = vadd.f32 %v2288, %v2289
      %s2292 = scalar_lea.vmem %s839, 32
      %v2293 = vld [vmem:[%s2292] sm:$0xff]
      %v2294 = vld [vmem:[%s2292 + $0x8] sm:$0xff]
      %v2295 = vld [vmem:[%s2292 + $0x10] sm:$0xff]
      %v2296 = vld [vmem:[%s2292 + $0x18] sm:$0xff]
      %s2297 = scalar_lea.vmem %s843, 1
      %v2298 = vld [vmem:[%s2297] sm:$0x1]
      %v2300 = vperm.slane %v2298, 0
      %v2303 = vsel %vm915, %v2290, 0
      %v2306 = vsel %vm915, %v2291, 0
      %2308 = vmatpush.msra.mxu0 0.0
      %2309 = vmatpush.msra.mxu0 0.0
      %2310 = vmatpush.msra.mxu0 0.0
      %2311 = vmatpush.msra.mxu0 0.0
      %2312 = vmatpush.msra.mxu0 0.0
      %2313 = vmatpush.msra.mxu0 0.0
      %2314 = vmatpush.msra.mxu0 0.0
      %2315 = vmatpush.msra.mxu0 0.0
      %2316 = vmatpush.msra.mxu0 0.0
      %2317 = vmatpush.msra.mxu0 0.0
      %2318 = vmatpush.msra.mxu0 0.0
      %2319 = vmatpush.msra.mxu0 0.0
      %2320 = vmatpush.msra.mxu0 %v2296
      %2321 = vmatpush.msra.mxu0 %v2295
      %2322 = vmatpush.msra.mxu0 %v2294
      %2323 = vmatpush.msra.mxu0 %v2293
      %2324 = vmatmul.f32.gmra.mxu0 %v2303
      %v2325 = vpop.f32.mrf.mxu0
      %v2326 = vadd.f32 %v2300, %v2325
      %2327 = vmatmul.f32.gmra.mxu0 %v2306
      %v2328 = vpop.f32.mrf.mxu0
      %v2329 = vadd.f32 %v2300, %v2328
      %2330 = vdwg.mxu0
      %v2331 = vmax.f32 %v2326, 0.0
      %v2332 = vmax.f32 %v2329, 0.0
      %s2333 = scalar_lea.vmem %s848, 64
      %v2334 = vld [vmem:[%s2333] sm:$0xff]
      %v2335 = vld [vmem:[%s2333 + $0x8] sm:$0xff]
      %v2336 = vld [vmem:[%s2333 + $0x10] sm:$0xff]
      %v2337 = vld [vmem:[%s2333 + $0x18] sm:$0xff]
      %v2338 = vld [vmem:[%s2333 + $0x20] sm:$0xff]
      %v2339 = vld [vmem:[%s2333 + $0x28] sm:$0xff]
      %v2340 = vld [vmem:[%s2333 + $0x30] sm:$0xff]
      %v2341 = vld [vmem:[%s2333 + $0x38] sm:$0xff]
      %s2342 = scalar_lea.vmem %s852, 1
      %v2343 = vld [vmem:[%s2342] sm:$0x1]
      %v2345 = vperm.slane %v2343, 0
      %v2348 = vsel %vm1586, %v2331, 0
      %v2351 = vsel %vm1586, %v2332, 0
      %2353 = vmatpush.msra.mxu0 0.0
      %2354 = vmatpush.msra.mxu0 0.0
      %2355 = vmatpush.msra.mxu0 0.0
      %2356 = vmatpush.msra.mxu0 0.0
      %2357 = vmatpush.msra.mxu0 0.0
      %2358 = vmatpush.msra.mxu0 0.0
      %2359 = vmatpush.msra.mxu0 0.0
      %2360 = vmatpush.msra.mxu0 0.0
      %2361 = vmatpush.msra.mxu0 %v2341
      %2362 = vmatpush.msra.mxu0 %v2340
      %2363 = vmatpush.msra.mxu0 %v2339
      %2364 = vmatpush.msra.mxu0 %v2338
      %2365 = vmatpush.msra.mxu0 %v2337
      %2366 = vmatpush.msra.mxu0 %v2336
      %2367 = vmatpush.msra.mxu0 %v2335
      %2368 = vmatpush.msra.mxu0 %v2334
      %2369 = vmatmul.f32.gmra.mxu0 %v2348
      %v2370 = vpop.f32.mrf.mxu0
      %v2371 = vadd.f32 %v2345, %v2370
      %2372 = vmatmul.f32.gmra.mxu0 %v2351
      %v2373 = vpop.f32.mrf.mxu0
      %v2374 = vadd.f32 %v2345, %v2373
      %2375 = vdwg.mxu0
      %s2376 = scalar_lea.vmem %s857, 2
      %v2377 = vld [vmem:[%s2376] sm:$0x3]
      %v2378 = vadd.f32 %v2290, %v2371
      %v2379 = vadd.f32 %v2291, %v2374
      %v2380 = vsel %vm915, %v2378, 0.0
      %2381 = vadd.xlane.f32.xlu0 %v2380
      %v2382 = vpop.xlane.xlu0 %2381
      %v2383 = vsel %vm915, %v2379, 0.0
      %2384 = vadd.xlane.f32.xlu0 %v2383
      %v2385 = vpop.xlane.xlu0 %2384
      %v2386 = vmul.f32 %v2382, %v1490
      %v2387 = vmul.f32 %v2385, %v1490
      %v2388 = vsub.f32 %v2378, %v2386
      %v2389 = vsub.f32 %v2379, %v2387
      %v2390 = vmul.f32 %v2388, %v2388
      %v2391 = vmul.f32 %v2389, %v2389
      %v2392 = vsel %vm915, %v2390, 0.0
      %2393 = vadd.xlane.f32.xlu0 %v2392
      %v2394 = vpop.xlane.xlu0 %2393
      %v2395 = vsel %vm915, %v2391, 0.0
      %2396 = vadd.xlane.f32.xlu0 %v2395
      %v2397 = vpop.xlane.xlu0 %2396
      %v2398 = vmul.f32 %v2394, %v1490
      %v2399 = vmul.f32 %v2397, %v1490
      %v2400 = vadd.f32 %v2398, 1e-05
      %v2401 = vadd.f32 %v2399, 1e-05
      %v2402 = vrsqrt.pop %v2400
      %v2403 = vmul.f32 %v2402, %v2400
      %v2404 = vmul.f32 %v2403, %v2402
      %v2405 = vmul.f32 0.5, %v2404
      %v2406 = vsub.f32 1.5, %v2405
      %v2407 = vmul.f32 %v2402, %v2406
      %vm2408 = vweird.f32 %v2400
      %vm2409 = vweird.f32 %v2402
      %vm2410 = vmor %vm2408, %vm2409
      %v2411 = vsel %vm2410, %v2402, %v2407
      %v2412 = vrsqrt.pop %v2401
      %v2413 = vmul.f32 %v2412, %v2401
      %v2414 = vmul.f32 %v2413, %v2412
      %v2415 = vmul.f32 0.5, %v2414
      %v2416 = vsub.f32 1.5, %v2415
      %v2417 = vmul.f32 %v2412, %v2416
      %vm2418 = vweird.f32 %v2401
      %vm2419 = vweird.f32 %v2412
      %vm2420 = vmor %vm2418, %vm2419
      %v2421 = vsel %vm2420, %v2412, %v2417
      %v2422 = vmul.f32 %v2388, %v2411
      %v2423 = vmul.f32 %v2389, %v2421
      %v2424 = vperm.slane %v2377, 0
      %v2425 = vmul.f32 %v2422, %v2424
      %v2426 = vmul.f32 %v2423, %v2424
      %v2427 = vperm.slane %v2377, 1
      %v2428 = vadd.f32 %v2425, %v2427
      %v2429 = vadd.f32 %v2426, %v2427
      %v2430 = vld [vmem:[%s15] sm:$0x1]
      %v2431 = vld [vmem:[#allocation2] sm:$0x1]
      %v2432 = vld [vmem:[%s17] sm:$0xff]
      %v2433 = vld [vmem:[%s17 + $0x8] sm:$0xff]
      %v2434 = vld [vmem:[%s17 + $0x10] sm:$0xff]
      %v2435 = vld [vmem:[%s17 + $0x18] sm:$0xff]
      %v2436 = vld [vmem:[%s17 + $0x20] sm:$0xff]
      %v2437 = vld [vmem:[%s17 + $0x28] sm:$0xff]
      %v2438 = vld [vmem:[%s17 + $0x30] sm:$0xff]
      %v2439 = vld [vmem:[%s17 + $0x38] sm:$0xff]
      %v2440 = vld [vmem:[%s17 + $0x40] sm:$0xff]
      %v2441 = vld [vmem:[%s17 + $0x48] sm:$0xff]
      %v2442 = vld [vmem:[%s17 + $0x50] sm:$0xff]
      %v2443 = vld [vmem:[%s17 + $0x58] sm:$0xff]
      %v2444 = vld [vmem:[%s18] sm:$0x1]
      %vm2445 = vcmask 7168
      %v2446 = vsel %vm2445, %v866, 0.0
      %v2447 = vrot.slane %v2446, 4
      %v2448 = vadd.f32 %v2446, %v2447
      %v2449 = vrot.slane %v2448, 2
      %v2450 = vadd.f32 %v2448, %v2449
      %v2451 = vrot.slane %v2450, 1
      %v2452 = vadd.f32 %v2450, %v2451
      %2454 = vset.pattern.permute.xlu0 0
      %2455 = vperm.xlu0 %2454, %v866
      %v2456 = vpop.permute.xlu0 %2455
      %v2458 = vmul.f32 %v2428, %v2456
      %v2459 = vsel %vm915, %v2458, 0.0
      %v2460 = vrot.slane %v2459, 4
      %v2461 = vadd.f32 %v2459, %v2460
      %v2462 = vrot.slane %v2461, 2
      %v2463 = vadd.f32 %v2461, %v2462
      %v2464 = vrot.slane %v2463, 1
      %v2465 = vadd.f32 %v2463, %v2464
      %2467 = vset.pattern.permute.xlu0 0
      %2468 = vperm.xlu0 %2467, %v2452
      %v2469 = vpop.permute.xlu0 %2468
      %v2471 = vrcp.pop %v2469
      %v2472 = vmul.f32 %v2469, %v2471
      %v2473 = vsub.f32 1.0, %v2472
      %v2474 = vmul.f32 %v2471, %v2473
      %v2475 = vadd.f32 %v2471, %v2474
      %vm2476 = vweird.f32 %v2469
      %vm2477 = vweird.f32 %v2471
      %vm2478 = vmor %vm2476, %vm2477
      %v2479 = vsel %vm2478, %v2471, %v2475
      %v2480 = vand.u32 2147483647, %v2469
      %vm2481 = vcmp.eq.f32.partialorder %v2480, 8.507059e+37
      %v2482 = vand.u32 %v2469, 2147483648
      %v2483 = vor.u32 1.1754944e-38, %v2482
      %v2484 = vsel %vm2481, %v2483, %v2479
      %v2485 = vmul.f32 %v2465, %v2484
      %vm2486 = vcmp.gt.f32.partialorder %v866, 0.5
      %v2487 = vsel %vm2486, 1, 0
      %2488 = vset.pattern.permute.xlu0 0
      %2489 = vperm.xlu0 %2488, %v2487
      %v2490 = vpop.permute.xlu0 %2489
      %vm2491 = vcmp.eq.s32.totalorder %v2490, 1
      %v2492 = vsel %vm2491, %v2428, -1e+30
      %v2493 = vsel %vm915, %v2492, -inf
      %v2494 = vrot.slane %v2493, 4
      %v2495 = vmax.f32 %v2493, %v2494
      %v2496 = vrot.slane %v2495, 2
      %v2497 = vmax.f32 %v2495, %v2496
      %v2498 = vrot.slane %v2497, 1
      %v2499 = vmax.f32 %v2497, %v2498
      %v2501 = vperm.slane %v2430, 0
      %v2503 = vmul.f32 %v2428, %v2501
      %v2504 = vsel %vm915, %v2503, 0.0
      %2505 = vadd.xlane.f32.xlu0 %v2504
      %v2506 = vpop.xlane.xlu0 %2505
      %v2508 = vperm.slane %v2431, 0
      %v2510 = vadd.f32 %v2506, %v2508
      %v2511 = vsel %vm2486, %v2510, -1e+30
      %v2512 = vsel %vm2445, %v2511, -inf
      %v2513 = vrot.slane %v2512, 4
      %v2514 = vmax.f32 %v2512, %v2513
      %v2515 = vrot.slane %v2514, 2
      %v2516 = vmax.f32 %v2514, %v2515
      %v2517 = vrot.slane %v2516, 1
      %v2518 = vmax.f32 %v2516, %v2517
      %v2519 = vsub.f32 %v2511, %v2518
      %v2520 = vmul.f32 %v2519, 1.442695
      %v2521 = vpow.pop %v2520
      %v2522 = vsel %vm2445, %v2521, 0.0
      %v2523 = vrot.slane %v2522, 4
      %v2524 = vadd.f32 %v2522, %v2523
      %v2525 = vrot.slane %v2524, 2
      %v2526 = vadd.f32 %v2524, %v2525
      %v2527 = vrot.slane %v2526, 1
      %v2528 = vadd.f32 %v2526, %v2527
      %v2529 = vrcp.pop %v2528
      %v2530 = vmul.f32 %v2521, %v2529
      %2532 = vset.pattern.permute.xlu0 0
      %2533 = vperm.xlu0 %2532, %v2530
      %v2534 = vpop.permute.xlu0 %2533
      %v2536 = vmul.f32 %v2428, %v2534
      %v2537 = vsel %vm915, %v2536, 0.0
      %v2538 = vrot.slane %v2537, 4
      %v2539 = vadd.f32 %v2537, %v2538
      %v2540 = vrot.slane %v2539, 2
      %v2541 = vadd.f32 %v2539, %v2540
      %v2542 = vrot.slane %v2541, 1
      %v2543 = vadd.f32 %v2541, %v2542
      %v2545 = vsel %vm915, %v2499, 0
      %2547 = vmatpush.msra.mxu0 0.0
      %2548 = vmatpush.msra.mxu0 0.0
      %2549 = vmatpush.msra.mxu0 0.0
      %2550 = vmatpush.msra.mxu0 0.0
      %2551 = vmatpush.msra.mxu0 0.0
      %2552 = vmatpush.msra.mxu0 0.0
      %2553 = vmatpush.msra.mxu0 0.0
      %2554 = vmatpush.msra.mxu0 0.0
      %2555 = vmatpush.msra.mxu0 0.0
      %2556 = vmatpush.msra.mxu0 0.0
      %2557 = vmatpush.msra.mxu0 0.0
      %2558 = vmatpush.msra.mxu0 0.0
      %2559 = vmatpush.msra.mxu0 %v2439
      %2560 = vmatpush.msra.mxu0 %v2438
      %2561 = vmatpush.msra.mxu0 %v2437
      %2562 = vmatpush.msra.mxu0 %v2436
      %2563 = vmatmul.f32.gmra.mxu0 %v2545
      %v2564 = vpop.f32.mrf.mxu0
      %v2565 = vadd.f32 0.0, %v2564
      %2566 = vdwg.mxu0
      %v2568 = vsel %vm915, %v2485, 0
      %2570 = vmatpush.msra.mxu0 0.0
      %2571 = vmatpush.msra.mxu0 0.0
      %2572 = vmatpush.msra.mxu0 0.0
      %2573 = vmatpush.msra.mxu0 0.0
      %2574 = vmatpush.msra.mxu0 0.0
      %2575 = vmatpush.msra.mxu0 0.0
      %2576 = vmatpush.msra.mxu0 0.0
      %2577 = vmatpush.msra.mxu0 0.0
      %2578 = vmatpush.msra.mxu0 0.0
      %2579 = vmatpush.msra.mxu0 0.0
      %2580 = vmatpush.msra.mxu0 0.0
      %2581 = vmatpush.msra.mxu0 0.0
      %2582 = vmatpush.msra.mxu0 %v2435
      %2583 = vmatpush.msra.mxu0 %v2434
      %2584 = vmatpush.msra.mxu0 %v2433
      %2585 = vmatpush.msra.mxu0 %v2432
      %2586 = vmatmul.f32.gmra.mxu0 %v2568
      %v2587 = vpop.f32.mrf.mxu0
      %v2588 = vadd.f32 %v2565, %v2587
      %2589 = vdwg.mxu0
      %v2591 = vsel %vm915, %v2543, 0
      %2593 = vmatpush.msra.mxu0 0.0
      %2594 = vmatpush.msra.mxu0 0.0
      %2595 = vmatpush.msra.mxu0 0.0
      %2596 = vmatpush.msra.mxu0 0.0
      %2597 = vmatpush.msra.mxu0 0.0
      %2598 = vmatpush.msra.mxu0 0.0
      %2599 = vmatpush.msra.mxu0 0.0
      %2600 = vmatpush.msra.mxu0 0.0
      %2601 = vmatpush.msra.mxu0 0.0
      %2602 = vmatpush.msra.mxu0 0.0
      %2603 = vmatpush.msra.mxu0 0.0
      %2604 = vmatpush.msra.mxu0 0.0
      %2605 = vmatpush.msra.mxu0 %v2443
      %2606 = vmatpush.msra.mxu0 %v2442
      %2607 = vmatpush.msra.mxu0 %v2441
      %2608 = vmatpush.msra.mxu0 %v2440
      %2609 = vmatmul.f32.gmra.mxu0 %v2591
      %v2610 = vpop.f32.mrf.mxu0
      %v2611 = vadd.f32 0.0, %v2610
      %2612 = vdwg.mxu0
      %v2613 = vadd.f32 %v2588, %v2611
      %v2614 = vadd.f32 %v2613, %v2444
      %vm2615 = vcmask 253952
      %2616 = vst.msk [vmem:[%s861] sm:$0x1] %vm2615, %v2614
      %v2617 = vsel %vm2445, %v867, 0.0
      %v2618 = vrot.slane %v2617, 4
      %v2619 = vadd.f32 %v2617, %v2618
      %v2620 = vrot.slane %v2619, 2
      %v2621 = vadd.f32 %v2619, %v2620
      %v2622 = vrot.slane %v2621, 1
      %v2623 = vadd.f32 %v2621, %v2622
      %2625 = vset.pattern.permute.xlu0 0
      %2626 = vperm.xlu0 %2625, %v867
      %v2627 = vpop.permute.xlu0 %2626
      %v2629 = vmul.f32 %v2429, %v2627
      %v2630 = vsel %vm915, %v2629, 0.0
      %v2631 = vrot.slane %v2630, 4
      %v2632 = vadd.f32 %v2630, %v2631
      %v2633 = vrot.slane %v2632, 2
      %v2634 = vadd.f32 %v2632, %v2633
      %v2635 = vrot.slane %v2634, 1
      %v2636 = vadd.f32 %v2634, %v2635
      %2638 = vset.pattern.permute.xlu0 0
      %2639 = vperm.xlu0 %2638, %v2623
      %v2640 = vpop.permute.xlu0 %2639
      %v2642 = vrcp.pop %v2640
      %v2643 = vmul.f32 %v2640, %v2642
      %v2644 = vsub.f32 1.0, %v2643
      %v2645 = vmul.f32 %v2642, %v2644
      %v2646 = vadd.f32 %v2642, %v2645
      %vm2647 = vweird.f32 %v2640
      %vm2648 = vweird.f32 %v2642
      %vm2649 = vmor %vm2647, %vm2648
      %v2650 = vsel %vm2649, %v2642, %v2646
      %v2651 = vand.u32 2147483647, %v2640
      %vm2652 = vcmp.eq.f32.partialorder %v2651, 8.507059e+37
      %v2653 = vand.u32 %v2640, 2147483648
      %v2654 = vor.u32 1.1754944e-38, %v2653
      %v2655 = vsel %vm2652, %v2654, %v2650
      %v2656 = vmul.f32 %v2636, %v2655
      %vm2657 = vcmp.gt.f32.partialorder %v867, 0.5
      %v2658 = vsel %vm2657, 1, 0
      %2659 = vset.pattern.permute.xlu0 0
      %2660 = vperm.xlu0 %2659, %v2658
      %v2661 = vpop.permute.xlu0 %2660
      %vm2662 = vcmp.eq.s32.totalorder %v2661, 1
      %v2663 = vsel %vm2662, %v2429, -1e+30
      %v2664 = vsel %vm915, %v2663, -inf
      %v2665 = vrot.slane %v2664, 4
      %v2666 = vmax.f32 %v2664, %v2665
      %v2667 = vrot.slane %v2666, 2
      %v2668 = vmax.f32 %v2666, %v2667
      %v2669 = vrot.slane %v2668, 1
      %v2670 = vmax.f32 %v2668, %v2669
      %v2671 = vmul.f32 %v2429, %v2501
      %v2672 = vsel %vm915, %v2671, 0.0
      %2673 = vadd.xlane.f32.xlu0 %v2672
      %v2674 = vpop.xlane.xlu0 %2673
      %v2675 = vadd.f32 %v2674, %v2508
      %v2676 = vsel %vm2657, %v2675, -1e+30
      %v2677 = vsel %vm2445, %v2676, -inf
      %v2678 = vrot.slane %v2677, 4
      %v2679 = vmax.f32 %v2677, %v2678
      %v2680 = vrot.slane %v2679, 2
      %v2681 = vmax.f32 %v2679, %v2680
      %v2682 = vrot.slane %v2681, 1
      %v2683 = vmax.f32 %v2681, %v2682
      %v2684 = vsub.f32 %v2676, %v2683
      %v2685 = vmul.f32 %v2684, 1.442695
      %v2686 = vpow.pop %v2685
      %v2687 = vsel %vm2445, %v2686, 0.0
      %v2688 = vrot.slane %v2687, 4
      %v2689 = vadd.f32 %v2687, %v2688
      %v2690 = vrot.slane %v2689, 2
      %v2691 = vadd.f32 %v2689, %v2690
      %v2692 = vrot.slane %v2691, 1
      %v2693 = vadd.f32 %v2691, %v2692
      %v2694 = vrcp.pop %v2693
      %v2695 = vmul.f32 %v2686, %v2694
      %2697 = vset.pattern.permute.xlu0 0
      %2698 = vperm.xlu0 %2697, %v2695
      %v2699 = vpop.permute.xlu0 %2698
      %v2701 = vmul.f32 %v2429, %v2699
      %v2702 = vsel %vm915, %v2701, 0.0
      %v2703 = vrot.slane %v2702, 4
      %v2704 = vadd.f32 %v2702, %v2703
      %v2705 = vrot.slane %v2704, 2
      %v2706 = vadd.f32 %v2704, %v2705
      %v2707 = vrot.slane %v2706, 1
      %v2708 = vadd.f32 %v2706, %v2707
      %v2710 = vsel %vm915, %v2670, 0
      %2712 = vmatpush.msra.mxu0 0.0
      %2713 = vmatpush.msra.mxu0 0.0
      %2714 = vmatpush.msra.mxu0 0.0
      %2715 = vmatpush.msra.mxu0 0.0
      %2716 = vmatpush.msra.mxu0 0.0
      %2717 = vmatpush.msra.mxu0 0.0
      %2718 = vmatpush.msra.mxu0 0.0
      %2719 = vmatpush.msra.mxu0 0.0
      %2720 = vmatpush.msra.mxu0 0.0
      %2721 = vmatpush.msra.mxu0 0.0
      %2722 = vmatpush.msra.mxu0 0.0
      %2723 = vmatpush.msra.mxu0 0.0
      %2724 = vmatpush.msra.mxu0 %v2439
      %2725 = vmatpush.msra.mxu0 %v2438
      %2726 = vmatpush.msra.mxu0 %v2437
      %2727 = vmatpush.msra.mxu0 %v2436
      %2728 = vmatmul.f32.gmra.mxu0 %v2710
      %v2729 = vpop.f32.mrf.mxu0
      %v2730 = vadd.f32 0.0, %v2729
      %2731 = vdwg.mxu0
      %v2733 = vsel %vm915, %v2656, 0
      %2735 = vmatpush.msra.mxu0 0.0
      %2736 = vmatpush.msra.mxu0 0.0
      %2737 = vmatpush.msra.mxu0 0.0
      %2738 = vmatpush.msra.mxu0 0.0
      %2739 = vmatpush.msra.mxu0 0.0
      %2740 = vmatpush.msra.mxu0 0.0
      %2741 = vmatpush.msra.mxu0 0.0
      %2742 = vmatpush.msra.mxu0 0.0
      %2743 = vmatpush.msra.mxu0 0.0
      %2744 = vmatpush.msra.mxu0 0.0
      %2745 = vmatpush.msra.mxu0 0.0
      %2746 = vmatpush.msra.mxu0 0.0
      %2747 = vmatpush.msra.mxu0 %v2435
      %2748 = vmatpush.msra.mxu0 %v2434
      %2749 = vmatpush.msra.mxu0 %v2433
      %2750 = vmatpush.msra.mxu0 %v2432
      %2751 = vmatmul.f32.gmra.mxu0 %v2733
      %v2752 = vpop.f32.mrf.mxu0
      %v2753 = vadd.f32 %v2730, %v2752
      %2754 = vdwg.mxu0
      %v2756 = vsel %vm915, %v2708, 0
      %2758 = vmatpush.msra.mxu0 0.0
      %2759 = vmatpush.msra.mxu0 0.0
      %2760 = vmatpush.msra.mxu0 0.0
      %2761 = vmatpush.msra.mxu0 0.0
      %2762 = vmatpush.msra.mxu0 0.0
      %2763 = vmatpush.msra.mxu0 0.0
      %2764 = vmatpush.msra.mxu0 0.0
      %2765 = vmatpush.msra.mxu0 0.0
      %2766 = vmatpush.msra.mxu0 0.0
      %2767 = vmatpush.msra.mxu0 0.0
      %2768 = vmatpush.msra.mxu0 0.0
      %2769 = vmatpush.msra.mxu0 0.0
      %2770 = vmatpush.msra.mxu0 %v2443
      %2771 = vmatpush.msra.mxu0 %v2442
      %2772 = vmatpush.msra.mxu0 %v2441
      %2773 = vmatpush.msra.mxu0 %v2440
      %2774 = vmatmul.f32.gmra.mxu0 %v2756
      %v2775 = vpop.f32.mrf.mxu0
      %v2776 = vadd.f32 0.0, %v2775
      %2777 = vdwg.mxu0
      %v2778 = vadd.f32 %v2753, %v2776
      %v2779 = vadd.f32 %v2778, %v2444
      %2780 = vst.msk [vmem:[%s861 + $0x1] sm:$0x1] %vm2615, %v2779
      %p2781 = scmp.lt.s32.totalorder %s32, 1
      %s2782 = scalar_select %p2781, %s32, 1
      %s2783 = smul.addr %s2782, 2
      %s2784 = scalar_lea.vmem %s19, %s2783
      // Predicated region
      $region97: #{bin_packing_transformer.1} parent=95 // pred_check
        %p2785 = pneg %p524
      $region98: #{bin_packing_transformer.1} parent=95 // pred_check_branch
        %2787 = sbr.rel (%p2785) target = $region100
      $region99: #{bin_packing_transformer.1} parent=95 // pred_region
        _
      $region100: #{bin_packing_transformer.1} parent=95 // pred_fallthru
        _
    $region96: #{bin_packing_transformer.1} parent=5 // pred_fallthru
      _
    %p2788 = scmp.le.s32.totalorder 2, %s27
    // Predicated region
    $region101: #{bin_packing_transformer.1} parent=5 // pred_check
      %p2789 = pneg %p2788
    $region102: #{bin_packing_transformer.1} parent=5 // pred_check_branch
      %2791 = sbr.rel (%p2789) target = $region104
    $region103: #{bin_packing_transformer.1} parent=5 // pred_region
      %s2792 = ssub.s32 %s27, 2
      // Predicated region
      $region105: #{bin_packing_transformer.1} parent=103 // pred_check
        %p2793 = pneg %p530
      $region106: #{bin_packing_transformer.1} parent=103 // pred_check_branch
        %2795 = sbr.rel (%p2793) target = $region108
      $region107: #{bin_packing_transformer.1} parent=103 // pred_region
        %p2796 = scmp.lt.s32.totalorder %s33, 1
        %s2797 = scalar_select %p2796, %s33, 1
        %s2798 = smul.addr %s2797, 2
        %s2799 = scalar_lea.vmem %s19, %s2798
      $region108: #{bin_packing_transformer.1} parent=103 // pred_fallthru
        _
    $region104: #{bin_packing_transformer.1} parent=5 // pred_fallthru
      _
  $region6: #{bin_packing_transformer.1} parent=0 // loop_footer
    %s31 = sadd.s32 1, %s27
  $region7: #{bin_packing_transformer.1} parent=0 // loop_footer_branch
    %26 = sbr.rel target = $region3
  $region8: #{bin_packing_transformer.1} parent=0 // loop_exit
    _

</llo_original>
